<compile_context>
chip_gen: v7x
topology: tpu7x:2x2x1
jax: 0.10.0
libtpu: 0.0.40
codegen_flags: <defaults>
</compile_context>

<pallas_src>
import functools
import math

import jax
import jax.numpy as jnp
from jax.experimental import pallas as pl
from jax.experimental.pallas import tpu as pltpu


# ----------------------------------------------------------------------------
# Helpers
# ----------------------------------------------------------------------------

_BN = 128        # lane width for matmul N blocks (true padded N)
_LANES = 512     # lane width for element-wise blocks


def _ceil(a, m):
    return -(-a // m) * m


def _m_tiling(m):
    """Pick (padded M, M block). >=2 blocks when M is large (v7x megacore)."""
    mp = _ceil(m, 16)
    if mp > 256:
        bm = 256
        mp = _ceil(m, bm)
    else:
        bm = mp
    return mp, bm


# ----------------------------------------------------------------------------
# Pallas kernels
# ----------------------------------------------------------------------------

def _mm_kernel(x_ref, w_ref, b_ref, o_ref, *, act):
    """o = act(x @ w + b); x/w bf16, f32 accumulation. act: 0=none,1=relu,2=leaky."""
    y = jnp.dot(x_ref[...], w_ref[...], preferred_element_type=jnp.float32)
    y = y + b_ref[...]
    if act == 1:
        y = jnp.maximum(y, 0.0)
    elif act == 2:
        y = jnp.where(y >= 0.0, y, 0.01 * y)   # PyTorch LeakyReLU default slope
    o_ref[...] = y.astype(o_ref.dtype)


def _gdn_kernel(x_ref, g_ref, b_ref, o_ref):
    """Fused GDN: out = x * rsqrt(max(x^2 @ gamma + beta, eps))."""
    x = x_ref[...]
    norm = jnp.dot(x * x, g_ref[...], preferred_element_type=jnp.float32)
    norm = jnp.maximum(norm + b_ref[...], 1e-6)
    o_ref[...] = (x * jax.lax.rsqrt(norm)).astype(o_ref.dtype)


def _ew2_kernel(a_ref, b_ref, o_ref, *, op):
    """op 0: a+b   op 1: relu(a+b)."""
    y = a_ref[...] + b_ref[...]
    if op == 1:
        y = jnp.maximum(y, 0.0)
    o_ref[...] = y


def _ew3_kernel(a_ref, b_ref, c_ref, o_ref):
    """a * sigmoid(b) + c  (AttentionBlock epilogue)."""
    o_ref[...] = a_ref[...] * jax.nn.sigmoid(b_ref[...]) + c_ref[...]


def _pool_kernel(x_ref, avg_ref, max_ref):
    """x: (1, HW, C). Spatial avg/max over the sublane axis; C stays on lanes."""
    x = x_ref[...]
    avg_ref[...] = jnp.mean(x, axis=1, keepdims=True)
    max_ref[...] = jnp.max(x, axis=1, keepdims=True)


def _cbam_scale_kernel(x_ref, att_ref, o_ref):
    """x: (1, HW, C), att: (1, 1, C). Broadcast gating done in-kernel."""
    o_ref[...] = x_ref[...] * jax.nn.sigmoid(att_ref[...])


# ----------------------------------------------------------------------------
# Cached pallas_call builders (built once per unique static config)
# ----------------------------------------------------------------------------

@functools.lru_cache(maxsize=None)
def _matmul_call(mp, bm, kp, np_, act):
    kernel = functools.partial(_mm_kernel, act=act)
    return pl.pallas_call(
        kernel,
        out_shape=jax.ShapeDtypeStruct((mp, np_), jnp.float32),
        grid=(mp // bm, np_ // _BN),
        in_specs=[
            pl.BlockSpec((bm, kp), lambda i, j: (i, 0)),
            pl.BlockSpec((kp, _BN), lambda i, j: (0, j)),
            pl.BlockSpec((1, _BN), lambda i, j: (0, j)),
        ],
        out_specs=pl.BlockSpec((bm, _BN), lambda i, j: (i, j)),
        compiler_params=pltpu.CompilerParams(
            dimension_semantics=("parallel", "parallel")),
    )


@functools.lru_cache(maxsize=None)
def _gdn_call(mp, bm, cp):
    return pl.pallas_call(
        _gdn_kernel,
        out_shape=jax.ShapeDtypeStruct((mp, cp), jnp.float32),
        grid=(mp // bm,),
        in_specs=[
            pl.BlockSpec((bm, cp), lambda i: (i, 0)),
            pl.BlockSpec((cp, cp), lambda i: (0, 0)),
            pl.BlockSpec((1, cp), lambda i: (0, 0)),
        ],
        out_specs=pl.BlockSpec((bm, cp), lambda i: (i, 0)),
        compiler_params=pltpu.CompilerParams(dimension_semantics=("parallel",)),
    )


@functools.lru_cache(maxsize=None)
def _ew2_call(rows, br, op):
    kernel = functools.partial(_ew2_kernel, op=op)
    return pl.pallas_call(
        kernel,
        out_shape=jax.ShapeDtypeStruct((rows, _LANES), jnp.float32),
        grid=(rows // br,),
        in_specs=[
            pl.BlockSpec((br, _LANES), lambda i: (i, 0)),
            pl.BlockSpec((br, _LANES), lambda i: (i, 0)),
        ],
        out_specs=pl.BlockSpec((br, _LANES), lambda i: (i, 0)),
        compiler_params=pltpu.CompilerParams(dimension_semantics=("parallel",)),
    )


@functools.lru_cache(maxsize=None)
def _ew3_call(rows, br):
    return pl.pallas_call(
        _ew3_kernel,
        out_shape=jax.ShapeDtypeStruct((rows, _LANES), jnp.float32),
        grid=(rows // br,),
        in_specs=[
            pl.BlockSpec((br, _LANES), lambda i: (i, 0)),
            pl.BlockSpec((br, _LANES), lambda i: (i, 0)),
            pl.BlockSpec((br, _LANES), lambda i: (i, 0)),
        ],
        out_specs=pl.BlockSpec((br, _LANES), lambda i: (i, 0)),
        compiler_params=pltpu.CompilerParams(dimension_semantics=("parallel",)),
    )


@functools.lru_cache(maxsize=None)
def _pool_call(b, hw, c):
    return pl.pallas_call(
        _pool_kernel,
        out_shape=(jax.ShapeDtypeStruct((b, 1, c), jnp.float32),
                   jax.ShapeDtypeStruct((b, 1, c), jnp.float32)),
        grid=(b,),
        in_specs=[pl.BlockSpec((1, hw, c), lambda i: (i, 0, 0))],
        out_specs=(pl.BlockSpec((1, 1, c), lambda i: (i, 0, 0)),
                   pl.BlockSpec((1, 1, c), lambda i: (i, 0, 0))),
        compiler_params=pltpu.CompilerParams(dimension_semantics=("parallel",)),
    )


@functools.lru_cache(maxsize=None)
def _scale_call(b, hw, c):
    return pl.pallas_call(
        _cbam_scale_kernel,
        out_shape=jax.ShapeDtypeStruct((b, hw, c), jnp.float32),
        grid=(b,),
        in_specs=[pl.BlockSpec((1, hw, c), lambda i: (i, 0, 0)),
                  pl.BlockSpec((1, 1, c), lambda i: (i, 0, 0))],
        out_specs=pl.BlockSpec((1, hw, c), lambda i: (i, 0, 0)),
        compiler_params=pltpu.CompilerParams(dimension_semantics=("parallel",)),
    )


# ----------------------------------------------------------------------------
# Wrappers (plain-JAX glue; everything runs under one outer jit)
# ----------------------------------------------------------------------------

def matmul_bias_act(x, p, act=0):
    """x: (M, K) f32.  p holds pre-padded bf16 weight (Kp,Np) and f32 bias (1,Np)."""
    m, k = x.shape
    kp, np_ = p["wmat"].shape
    mp, bm = _m_tiling(m)
    xp = jnp.pad(x, ((0, mp - m), (0, kp - k))).astype(jnp.bfloat16)
    out = _matmul_call(mp, bm, kp, np_, act)(xp, p["wmat"], p["b"])
    return out[:m, :p["cout"]]


def conv2d(x, p, stride=1, padding=0, act=0):
    """x: (B,H,W,Cin) NHWC.  Returns (B,Ho,Wo,Cout)."""
    b, h, w, cin = x.shape
    kh, kw, cout = p["kh"], p["kw"], p["cout"]
    if padding:
        x = jnp.pad(x, ((0, 0), (padding, padding), (padding, padding), (0, 0)))
    hp, wp = x.shape[1], x.shape[2]
    ho = (hp - kh) // stride + 1
    wo = (wp - kw) // stride + 1
    if kh == 1 and kw == 1:
        cols = x[:, ::stride, ::stride, :][:, :ho, :wo, :].reshape(b * ho * wo, cin)
    else:
        pieces = []
        for ki in range(kh):
            for kj in range(kw):
                pieces.append(x[:, ki:ki + stride * (ho - 1) + 1:stride,
                                kj:kj + stride * (wo - 1) + 1:stride, :])
        cols = jnp.concatenate(pieces, axis=-1).reshape(b * ho * wo, kh * kw * cin)
    y = matmul_bias_act(cols, p, act)
    return y.reshape(b, ho, wo, cout)


def _ew_shape(n):
    rows = -(-n // _LANES)
    if rows <= 256:
        br = _ceil(rows, 8)
        rows_p = br
    else:
        br = 256
        rows_p = _ceil(rows, br)
    return rows_p, br


def _prep_flat(t, npad, rows_p):
    n = t.size
    return jnp.pad(t.reshape(-1), (0, npad - n)).reshape(rows_p, _LANES)


def ew_add(a, b, relu=False):
    shape, n = a.shape, a.size
    rows_p, br = _ew_shape(n)
    npad = rows_p * _LANES
    out = _ew2_call(rows_p, br, 1 if relu else 0)(
        _prep_flat(a, npad, rows_p), _prep_flat(b, npad, rows_p))
    return out.reshape(-1)[:n].reshape(shape)


def ew_gate_add(a, b, c):
    """a * sigmoid(b) + c."""
    shape, n = a.shape, a.size
    rows_p, br = _ew_shape(n)
    npad = rows_p * _LANES
    out = _ew3_call(rows_p, br)(
        _prep_flat(a, npad, rows_p), _prep_flat(b, npad, rows_p),
        _prep_flat(c, npad, rows_p))
    return out.reshape(-1)[:n].reshape(shape)


# ----------------------------------------------------------------------------
# Module forwards
# ----------------------------------------------------------------------------

def gdn_forward(p, x):
    b, h, w, c = x.shape
    m = b * h * w
    cp = p["gamma"].shape[0]
    mp, bm = _m_tiling(m)
    xp = jnp.pad(x.reshape(m, c), ((0, mp - m), (0, cp - c)))
    out = _gdn_call(mp, bm, cp)(xp, p["gamma"], p["beta"])
    return out[:m, :c].reshape(b, h, w, c)


def rbs_forward(p, x, stride=2):
    y = conv2d(x, p["conv1"], stride, 1, act=2)        # leaky relu
    y = conv2d(y, p["conv2"], 1, 1, act=0)
    y = gdn_forward(p["gdn"], y)
    xs = conv2d(x, p["skip"], stride, 0, act=0)
    return ew_add(xs, y)


def rb_forward(p, x):
    y = conv2d(x, p["conv1"], 1, 1, act=2)             # leaky relu
    y = conv2d(y, p["conv2"], 1, 1, act=2)             # leaky relu
    return ew_add(x, y)                                # (skip is identity: cin==cout)


def cbam_forward(p, x):
    b, h, w, c = x.shape
    hw = h * w
    x3 = x.reshape(b, hw, c)
    avg, mx = _pool_call(b, hw, c)(x3)                 # (B,1,C) each
    avg, mx = avg.reshape(b, c), mx.reshape(b, c)

    def mlp(v):                                        # tiny: plain jnp under jit
        return jnp.maximum(v @ p["fc1"], 0.0) @ p["fc2"]

    att = (mlp(avg) + mlp(mx)).reshape(b, 1, c)
    out = _scale_call(b, hw, c)(x3, att)               # x * sigmoid(att), bcast in-kernel
    return out.reshape(b, h, w, c)


def ru_forward(p, x):
    y = conv2d(x, p["c1"], 1, 0, act=1)                # relu
    y = conv2d(y, p["c2"], 1, 1, act=1)                # relu
    y = conv2d(y, p["c3"], 1, 0, act=0)
    return ew_add(y, x, relu=True)                     # relu(y + x)


def att_forward(p, x):
    a = x
    for ru in p["a"]:
        a = ru_forward(ru, a)
    b = x
    for ru in p["b"]:
        b = ru_forward(ru, b)
    b = conv2d(b, p["b_conv"], 1, 0, act=0)
    return ew_gate_add(a, b, x)                        # a * sigmoid(b) + x


def encoder_forward(params, x_nchw):
    x = jnp.transpose(x_nchw, (0, 2, 3, 1))            # NCHW -> NHWC
    x = rbs_forward(params["RBS1"], x, stride=2)
    x = rb_forward(params["RB1"], x)
    x = rbs_forward(params["RBS2"], x, stride=2)
    x = cbam_forward(params["ca1"], x)
    x = att_forward(params["att1"], x)
    x = rb_forward(params["RB2"], x)
    x = rbs_forward(params["RBS3"], x, stride=2)
    x = rb_forward(params["RB3"], x)
    x = conv2d(x, params["conv"], stride=2, padding=1, act=0)
    x = cbam_forward(params["ca2"], x)
    x = att_forward(params["att2"], x)
    return jnp.transpose(x, (0, 3, 1, 2))              # NHWC -> NCHW


# ----------------------------------------------------------------------------
# Deterministic parameter init (weights pre-reshaped / pre-padded / bf16 once)
# ----------------------------------------------------------------------------

def _prep_conv(key, kh, kw, cin, cout):
    k1, k2 = jax.random.split(key)
    w = jax.random.normal(k1, (kh, kw, cin, cout), jnp.float32) / math.sqrt(kh * kw * cin)
    b = 0.01 * jax.random.normal(k2, (cout,), jnp.float32)
    k = kh * kw * cin
    kp, np_ = _ceil(k, 128), _ceil(cout, 128)
    wmat = jnp.zeros((kp, np_), jnp.float32).at[:k, :cout].set(
        w.reshape(k, cout)).astype(jnp.bfloat16)
    brow = jnp.zeros((1, np_), jnp.float32).at[0, :cout].set(b)
    return {"wmat": wmat, "b": brow, "kh": kh, "kw": kw, "cout": cout}


def _prep_gdn(c):
    cp = _ceil(c, 128)
    gamma = jnp.zeros((cp, cp), jnp.float32).at[:c, :c].set(
        (0.1 * jnp.eye(c, dtype=jnp.float32)).T)
    beta = jnp.ones((1, cp), jnp.float32)
    return {"gamma": gamma, "beta": beta}


def init_encoder(key, cin, cmid, cout, ratio=4):
    keys = iter(jax.random.split(key, 128))
    nk = lambda: next(keys)

    def rbs(ci, co):
        return {"conv1": _prep_conv(nk(), 3, 3, ci, co),
                "conv2": _prep_conv(nk(), 3, 3, co, co),
                "skip": _prep_conv(nk(), 1, 1, ci, co),
                "gdn": _prep_gdn(co)}

    def rb(c):
        return {"conv1": _prep_conv(nk(), 3, 3, c, c),
                "conv2": _prep_conv(nk(), 3, 3, c, c)}

    def cbam(c):
        h = max(1, c // ratio)
        return {"fc1": jax.random.normal(nk(), (c, h), jnp.float32) / math.sqrt(c),
                "fc2": jax.random.normal(nk(), (h, c), jnp.float32) / math.sqrt(h)}

    def ru(c):
        return {"c1": _prep_conv(nk(), 1, 1, c, c // 2),
                "c2": _prep_conv(nk(), 3, 3, c // 2, c // 2),
                "c3": _prep_conv(nk(), 1, 1, c // 2, c)}

    def att(c):
        return {"a": [ru(c) for _ in range(3)],
                "b": [ru(c) for _ in range(3)],
                "b_conv": _prep_conv(nk(), 1, 1, c, c)}

    return {
        "RBS1": rbs(cin, cmid), "RB1": rb(cmid), "RBS2": rbs(cmid, cmid),
        "ca1": cbam(cmid), "att1": att(cmid), "RB2": rb(cmid),
        "RBS3": rbs(cmid, cmid), "RB3": rb(cmid),
        "conv": _prep_conv(nk(), 3, 3, cmid, cout),
        "ca2": cbam(cout), "att2": att(cout),
    }


# ----------------------------------------------------------------------------
# Main
# ----------------------------------------------------------------------------

if __name__ == "__main__":
    key = jax.random.PRNGKey(0)
    kp, kx = jax.random.split(key)

    # Small shapes consistent with the module (channel_in=3, 4 stride-2 stages).
    B, Cin, H, W = 2, 3, 32, 32
    Cmid, Cout = 8, 16

    params = init_encoder(kp, Cin, Cmid, Cout)
    x = jax.random.normal(kx, (B, Cin, H, W), jnp.float32)

    # Single outer jit over the whole forward; params are closure constants so
    # their static metadata (kernel sizes, true channel counts) stays static.
    fwd = jax.jit(functools.partial(encoder_forward, params))

    out = jax.block_until_ready(fwd(x))

    assert out.shape == (B, Cout, H // 16, W // 16), out.shape
    assert bool(jnp.all(jnp.isfinite(out)))
    print("KERNEL_OK")
</pallas_src>

<mosaic_0001>
module attributes {stable_mosaic.version = 11 : i64} {
  func.func @_mm_kernel(%arg0: i32, %arg1: i32, %arg2: memref<256x128xbf16, #tpu.memory_space<vmem>>, %arg3: memref<128x128xbf16, #tpu.memory_space<vmem>>, %arg4: memref<1x128xf32, #tpu.memory_space<vmem>>, %arg5: memref<256x128xf32, #tpu.memory_space<vmem>>) attributes {dimension_semantics = [#tpu.dimension_semantics<parallel>, #tpu.dimension_semantics<parallel>], iteration_bounds = array<i64: 2, 1>, scalar_prefetch = 0 : i64, scratch_operands = 0 : i64, tpu.core_type = #tpu.core_type<tc>, window_params = [{transform_indices = @transform_0, window_bounds = array<i64: 256, 128>}, {transform_indices = @transform_1, window_bounds = array<i64: 128, 128>}, {transform_indices = @transform_2, window_bounds = array<i64: 1, 128>}, {transform_indices = @transform_3, window_bounds = array<i64: 256, 128>}]} {
    %c0 = arith.constant 0 : index
    %c0_0 = arith.constant 0 : index
    %0 = vector.load %arg2[%c0, %c0_0] : memref<256x128xbf16, #tpu.memory_space<vmem>>, vector<256x128xbf16>
    %c0_1 = arith.constant 0 : index
    %c0_2 = arith.constant 0 : index
    %1 = vector.load %arg3[%c0_1, %c0_2] : memref<128x128xbf16, #tpu.memory_space<vmem>>, vector<128x128xbf16>
    %cst = arith.constant dense<0.000000e+00> : vector<256x128xf32>
    %2 = tpu.matmul %0, %1, %cst {dimension_numbers = #tpu.dot_dimension_numbers<[1], [0], [0], [1], [0, 0, 1, 1], [], []>} : vector<256x128xbf16>, vector<128x128xbf16>, vector<256x128xf32> -> vector<256x128xf32>
    %c0_3 = arith.constant 0 : index
    %c0_4 = arith.constant 0 : index
    %3 = vector.load %arg4[%c0_3, %c0_4] : memref<1x128xf32, #tpu.memory_space<vmem>>, vector<1x128xf32>
    %4 = vector.broadcast %3 : vector<1x128xf32> to vector<256x128xf32>
    %5 = arith.addf %2, %4 : vector<256x128xf32>
    %c0_5 = arith.constant 0 : index
    %c0_6 = arith.constant 0 : index
    %6 = vector.load %arg5[%c0_5, %c0_6] : memref<256x128xf32, #tpu.memory_space<vmem>>, vector<256x128xf32>
    tpu.vector_store %arg5[%c0_5, %c0_6], %5 {strides = array<i32>} : memref<256x128xf32, #tpu.memory_space<vmem>>, vector<256x128xf32>,
    return
  }
  func.func @transform_0(%arg0: i32, %arg1: i32) -> (i32, i32) {
    %c0_i32 = arith.constant 0 : i32
    %c0_i32_0 = arith.constant 0 : i32
    return %arg0, %c0_i32 : i32, i32
  }
  func.func @transform_1(%arg0: i32, %arg1: i32) -> (i32, i32) {
    %c0_i32 = arith.constant 0 : i32
    %c0_i32_0 = arith.constant 0 : i32
    return %c0_i32, %arg1 : i32, i32
  }
  func.func @transform_2(%arg0: i32, %arg1: i32) -> (i32, i32) {
    %c0_i32 = arith.constant 0 : i32
    %c0_i32_0 = arith.constant 0 : i32
    return %c0_i32, %arg1 : i32, i32
  }
  func.func @transform_3(%arg0: i32, %arg1: i32) -> (i32, i32) {
    %c0_i32 = arith.constant 0 : i32
    return %arg0, %arg1 : i32, i32
  }
}

module attributes {stable_mosaic.version = 11 : i64} {
  func.func @_mm_kernel(%arg0: i32, %arg1: i32, %arg2: memref<256x128xbf16, #tpu.memory_space<vmem>>, %arg3: memref<128x128xbf16, #tpu.memory_space<vmem>>, %arg4: memref<1x128xf32, #tpu.memory_space<vmem>>, %arg5: memref<256x128xf32, #tpu.memory_space<vmem>>) attributes {dimension_semantics = [#tpu.dimension_semantics<parallel>, #tpu.dimension_semantics<parallel>], iteration_bounds = array<i64: 2, 1>, scalar_prefetch = 0 : i64, scratch_operands = 0 : i64, tpu.core_type = #tpu.core_type<tc>, window_params = [{transform_indices = @transform_0, window_bounds = array<i64: 256, 128>}, {transform_indices = @transform_1, window_bounds = array<i64: 128, 128>}, {transform_indices = @transform_2, window_bounds = array<i64: 1, 128>}, {transform_indices = @transform_3, window_bounds = array<i64: 256, 128>}]} {
    %c0 = arith.constant 0 : index
    %c0_0 = arith.constant 0 : index
    %0 = vector.load %arg2[%c0, %c0_0] : memref<256x128xbf16, #tpu.memory_space<vmem>>, vector<256x128xbf16>
    %c0_1 = arith.constant 0 : index
    %c0_2 = arith.constant 0 : index
    %1 = vector.load %arg3[%c0_1, %c0_2] : memref<128x128xbf16, #tpu.memory_space<vmem>>, vector<128x128xbf16>
    %cst = arith.constant dense<0.000000e+00> : vector<256x128xf32>
    %2 = tpu.matmul %0, %1, %cst {dimension_numbers = #tpu.dot_dimension_numbers<[1], [0], [0], [1], [0, 0, 1, 1], [], []>} : vector<256x128xbf16>, vector<128x128xbf16>, vector<256x128xf32> -> vector<256x128xf32>
    %c0_3 = arith.constant 0 : index
    %c0_4 = arith.constant 0 : index
    %3 = vector.load %arg4[%c0_3, %c0_4] : memref<1x128xf32, #tpu.memory_space<vmem>>, vector<1x128xf32>
    %4 = vector.broadcast %3 : vector<1x128xf32> to vector<256x128xf32>
    %5 = arith.addf %2, %4 : vector<256x128xf32>
    %cst_5 = arith.constant 0.000000e+00 : f32
    %6 = vector.broadcast %cst_5 : f32 to vector<256x128xf32>
    %7 = arith.cmpf oge, %5, %6 : vector<256x128xf32>
    %cst_6 = arith.constant 0.00999999977 : f32
    %8 = vector.broadcast %cst_6 : f32 to vector<256x128xf32>
    %9 = arith.mulf %8, %5 : vector<256x128xf32>
    %10 = arith.select %7, %5, %9 : vector<256x128xi1>, vector<256x128xf32>
    %c0_7 = arith.constant 0 : index
    %c0_8 = arith.constant 0 : index
    %11 = vector.load %arg5[%c0_7, %c0_8] : memref<256x128xf32, #tpu.memory_space<vmem>>, vector<256x128xf32>
    tpu.vector_store %arg5[%c0_7, %c0_8], %10 {strides = array<i32>} : memref<256x128xf32, #tpu.memory_space<vmem>>, vector<256x128xf32>,
    return
  }
  func.func @transform_0(%arg0: i32, %arg1: i32) -> (i32, i32) {
    %c0_i32 = arith.constant 0 : i32
    %c0_i32_0 = arith.constant 0 : i32
    return %arg0, %c0_i32 : i32, i32
  }
  func.func @transform_1(%arg0: i32, %arg1: i32) -> (i32, i32) {
    %c0_i32 = arith.constant 0 : i32
    %c0_i32_0 = arith.constant 0 : i32
    return %c0_i32, %arg1 : i32, i32
  }
  func.func @transform_2(%arg0: i32, %arg1: i32) -> (i32, i32) {
    %c0_i32 = arith.constant 0 : i32
    %c0_i32_0 = arith.constant 0 : i32
    return %c0_i32, %arg1 : i32, i32
  }
  func.func @transform_3(%arg0: i32, %arg1: i32) -> (i32, i32) {
    %c0_i32 = arith.constant 0 : i32
    return %arg0, %arg1 : i32, i32
  }
}

module attributes {stable_mosaic.version = 11 : i64} {
  func.func @_gdn_kernel(%arg0: i32, %arg1: memref<256x128xf32, #tpu.memory_space<vmem>>, %arg2: memref<128x128xf32, #tpu.memory_space<vmem>>, %arg3: memref<1x128xf32, #tpu.memory_space<vmem>>, %arg4: memref<256x128xf32, #tpu.memory_space<vmem>>) attributes {dimension_semantics = [#tpu.dimension_semantics<parallel>], iteration_bounds = array<i64: 2>, scalar_prefetch = 0 : i64, scratch_operands = 0 : i64, tpu.core_type = #tpu.core_type<tc>, window_params = [{transform_indices = @transform_0, window_bounds = array<i64: 256, 128>}, {pipeline_mode = #tpu.pipeline_mode<synchronous>, transform_indices = @transform_1, window_bounds = array<i64: 128, 128>}, {pipeline_mode = #tpu.pipeline_mode<synchronous>, transform_indices = @transform_2, window_bounds = array<i64: 1, 128>}, {transform_indices = @transform_3, window_bounds = array<i64: 256, 128>}]} {
    %c0 = arith.constant 0 : index
    %c0_0 = arith.constant 0 : index
    %0 = vector.load %arg1[%c0, %c0_0] : memref<256x128xf32, #tpu.memory_space<vmem>>, vector<256x128xf32>
    %1 = arith.mulf %0, %0 : vector<256x128xf32>
    %c0_1 = arith.constant 0 : index
    %c0_2 = arith.constant 0 : index
    %2 = vector.load %arg2[%c0_1, %c0_2] : memref<128x128xf32, #tpu.memory_space<vmem>>, vector<128x128xf32>
    %cst = arith.constant dense<0.000000e+00> : vector<256x128xf32>
    %3 = tpu.matmul %1, %2, %cst {dimension_numbers = #tpu.dot_dimension_numbers<[1], [0], [0], [1], [0, 0, 1, 1], [], []>} : vector<256x128xf32>, vector<128x128xf32>, vector<256x128xf32> -> vector<256x128xf32>
    %c0_3 = arith.constant 0 : index
    %c0_4 = arith.constant 0 : index
    %4 = vector.load %arg3[%c0_3, %c0_4] : memref<1x128xf32, #tpu.memory_space<vmem>>, vector<1x128xf32>
    %5 = vector.broadcast %4 : vector<1x128xf32> to vector<256x128xf32>
    %6 = arith.addf %3, %5 : vector<256x128xf32>
    %cst_5 = arith.constant 9.99999997E-7 : f32
    %7 = vector.broadcast %cst_5 : f32 to vector<256x128xf32>
    %8 = arith.maximumf %6, %7 : vector<256x128xf32>
    %9 = math.rsqrt %8 : vector<256x128xf32>
    %10 = arith.mulf %0, %9 : vector<256x128xf32>
    %c0_6 = arith.constant 0 : index
    %c0_7 = arith.constant 0 : index
    %11 = vector.load %arg4[%c0_6, %c0_7] : memref<256x128xf32, #tpu.memory_space<vmem>>, vector<256x128xf32>
    tpu.vector_store %arg4[%c0_6, %c0_7], %10 {strides = array<i32>} : memref<256x128xf32, #tpu.memory_space<vmem>>, vector<256x128xf32>,
    return
  }
  func.func @transform_0(%arg0: i32) -> (i32, i32) {
    %c0_i32 = arith.constant 0 : i32
    %c0_i32_0 = arith.constant 0 : i32
    return %arg0, %c0_i32 : i32, i32
  }
  func.func @transform_1(%arg0: i32) -> (i32, i32) {
    %c0_i32 = arith.constant 0 : i32
    %c0_i32_0 = arith.constant 0 : i32
    %c0_i32_1 = arith.constant 0 : i32
    return %c0_i32, %c0_i32_0 : i32, i32
  }
  func.func @transform_2(%arg0: i32) -> (i32, i32) {
    %c0_i32 = arith.constant 0 : i32
    %c0_i32_0 = arith.constant 0 : i32
    %c0_i32_1 = arith.constant 0 : i32
    return %c0_i32, %c0_i32_0 : i32, i32
  }
  func.func @transform_3(%arg0: i32) -> (i32, i32) {
    %c0_i32 = arith.constant 0 : i32
    %c0_i32_0 = arith.constant 0 : i32
    return %arg0, %c0_i32 : i32, i32
  }
}

module attributes {stable_mosaic.version = 11 : i64} {
  func.func @_ew2_kernel(%arg0: i32, %arg1: memref<8x512xf32, #tpu.memory_space<vmem>>, %arg2: memref<8x512xf32, #tpu.memory_space<vmem>>, %arg3: memref<8x512xf32, #tpu.memory_space<vmem>>) attributes {dimension_semantics = [#tpu.dimension_semantics<parallel>], iteration_bounds = array<i64: 1>, scalar_prefetch = 0 : i64, scratch_operands = 0 : i64, tpu.core_type = #tpu.core_type<tc>, window_params = [{transform_indices = @transform_0, window_bounds = array<i64: 8, 512>}, {transform_indices = @transform_1, window_bounds = array<i64: 8, 512>}, {transform_indices = @transform_2, window_bounds = array<i64: 8, 512>}]} {
    %c0 = arith.constant 0 : index
    %c0_0 = arith.constant 0 : index
    %0 = vector.load %arg1[%c0, %c0_0] : memref<8x512xf32, #tpu.memory_space<vmem>>, vector<8x512xf32>
    %c0_1 = arith.constant 0 : index
    %c0_2 = arith.constant 0 : index
    %1 = vector.load %arg2[%c0_1, %c0_2] : memref<8x512xf32, #tpu.memory_space<vmem>>, vector<8x512xf32>
    %2 = arith.addf %0, %1 : vector<8x512xf32>
    %c0_3 = arith.constant 0 : index
    %c0_4 = arith.constant 0 : index
    %3 = vector.load %arg3[%c0_3, %c0_4] : memref<8x512xf32, #tpu.memory_space<vmem>>, vector<8x512xf32>
    tpu.vector_store %arg3[%c0_3, %c0_4], %2 {strides = array<i32>} : memref<8x512xf32, #tpu.memory_space<vmem>>, vector<8x512xf32>,
    return
  }
  func.func @transform_0(%arg0: i32) -> (i32, i32) {
    %c0_i32 = arith.constant 0 : i32
    %c0_i32_0 = arith.constant 0 : i32
    return %arg0, %c0_i32 : i32, i32
  }
  func.func @transform_1(%arg0: i32) -> (i32, i32) {
    %c0_i32 = arith.constant 0 : i32
    %c0_i32_0 = arith.constant 0 : i32
    return %arg0, %c0_i32 : i32, i32
  }
  func.func @transform_2(%arg0: i32) -> (i32, i32) {
    %c0_i32 = arith.constant 0 : i32
    %c0_i32_0 = arith.constant 0 : i32
    return %arg0, %c0_i32 : i32, i32
  }
}

module attributes {stable_mosaic.version = 11 : i64} {
  func.func @_mm_kernel(%arg0: i32, %arg1: i32, %arg2: memref<128x128xbf16, #tpu.memory_space<vmem>>, %arg3: memref<128x128xbf16, #tpu.memory_space<vmem>>, %arg4: memref<1x128xf32, #tpu.memory_space<vmem>>, %arg5: memref<128x128xf32, #tpu.memory_space<vmem>>) attributes {dimension_semantics = [#tpu.dimension_semantics<parallel>, #tpu.dimension_semantics<parallel>], iteration_bounds = array<i64: 1, 1>, scalar_prefetch = 0 : i64, scratch_operands = 0 : i64, tpu.core_type = #tpu.core_type<tc>, window_params = [{transform_indices = @transform_0, window_bounds = array<i64: 128, 128>}, {transform_indices = @transform_1, window_bounds = array<i64: 128, 128>}, {transform_indices = @transform_2, window_bounds = array<i64: 1, 128>}, {transform_indices = @transform_3, window_bounds = array<i64: 128, 128>}]} {
    %c0 = arith.constant 0 : index
    %c0_0 = arith.constant 0 : index
    %0 = vector.load %arg2[%c0, %c0_0] : memref<128x128xbf16, #tpu.memory_space<vmem>>, vector<128x128xbf16>
    %c0_1 = arith.constant 0 : index
    %c0_2 = arith.constant 0 : index
    %1 = vector.load %arg3[%c0_1, %c0_2] : memref<128x128xbf16, #tpu.memory_space<vmem>>, vector<128x128xbf16>
    %cst = arith.constant dense<0.000000e+00> : vector<128x128xf32>
    %2 = tpu.matmul %0, %1, %cst {dimension_numbers = #tpu.dot_dimension_numbers<[1], [0], [0], [1], [0, 0, 1, 1], [], []>} : vector<128x128xbf16>, vector<128x128xbf16>, vector<128x128xf32> -> vector<128x128xf32>
    %c0_3 = arith.constant 0 : index
    %c0_4 = arith.constant 0 : index
    %3 = vector.load %arg4[%c0_3, %c0_4] : memref<1x128xf32, #tpu.memory_space<vmem>>, vector<1x128xf32>
    %4 = vector.broadcast %3 : vector<1x128xf32> to vector<128x128xf32>
    %5 = arith.addf %2, %4 : vector<128x128xf32>
    %c0_5 = arith.constant 0 : index
    %c0_6 = arith.constant 0 : index
    %6 = vector.load %arg5[%c0_5, %c0_6] : memref<128x128xf32, #tpu.memory_space<vmem>>, vector<128x128xf32>
    tpu.vector_store %arg5[%c0_5, %c0_6], %5 {strides = array<i32>} : memref<128x128xf32, #tpu.memory_space<vmem>>, vector<128x128xf32>,
    return
  }
  func.func @transform_0(%arg0: i32, %arg1: i32) -> (i32, i32) {
    %c0_i32 = arith.constant 0 : i32
    %c0_i32_0 = arith.constant 0 : i32
    return %arg0, %c0_i32 : i32, i32
  }
  func.func @transform_1(%arg0: i32, %arg1: i32) -> (i32, i32) {
    %c0_i32 = arith.constant 0 : i32
    %c0_i32_0 = arith.constant 0 : i32
    return %c0_i32, %arg1 : i32, i32
  }
  func.func @transform_2(%arg0: i32, %arg1: i32) -> (i32, i32) {
    %c0_i32 = arith.constant 0 : i32
    %c0_i32_0 = arith.constant 0 : i32
    return %c0_i32, %arg1 : i32, i32
  }
  func.func @transform_3(%arg0: i32, %arg1: i32) -> (i32, i32) {
    %c0_i32 = arith.constant 0 : i32
    return %arg0, %arg1 : i32, i32
  }
}

module attributes {stable_mosaic.version = 11 : i64} {
  func.func @_mm_kernel(%arg0: i32, %arg1: i32, %arg2: memref<128x128xbf16, #tpu.memory_space<vmem>>, %arg3: memref<128x128xbf16, #tpu.memory_space<vmem>>, %arg4: memref<1x128xf32, #tpu.memory_space<vmem>>, %arg5: memref<128x128xf32, #tpu.memory_space<vmem>>) attributes {dimension_semantics = [#tpu.dimension_semantics<parallel>, #tpu.dimension_semantics<parallel>], iteration_bounds = array<i64: 1, 1>, scalar_prefetch = 0 : i64, scratch_operands = 0 : i64, tpu.core_type = #tpu.core_type<tc>, window_params = [{transform_indices = @transform_0, window_bounds = array<i64: 128, 128>}, {transform_indices = @transform_1, window_bounds = array<i64: 128, 128>}, {transform_indices = @transform_2, window_bounds = array<i64: 1, 128>}, {transform_indices = @transform_3, window_bounds = array<i64: 128, 128>}]} {
    %c0 = arith.constant 0 : index
    %c0_0 = arith.constant 0 : index
    %0 = vector.load %arg2[%c0, %c0_0] : memref<128x128xbf16, #tpu.memory_space<vmem>>, vector<128x128xbf16>
    %c0_1 = arith.constant 0 : index
    %c0_2 = arith.constant 0 : index
    %1 = vector.load %arg3[%c0_1, %c0_2] : memref<128x128xbf16, #tpu.memory_space<vmem>>, vector<128x128xbf16>
    %cst = arith.constant dense<0.000000e+00> : vector<128x128xf32>
    %2 = tpu.matmul %0, %1, %cst {dimension_numbers = #tpu.dot_dimension_numbers<[1], [0], [0], [1], [0, 0, 1, 1], [], []>} : vector<128x128xbf16>, vector<128x128xbf16>, vector<128x128xf32> -> vector<128x128xf32>
    %c0_3 = arith.constant 0 : index
    %c0_4 = arith.constant 0 : index
    %3 = vector.load %arg4[%c0_3, %c0_4] : memref<1x128xf32, #tpu.memory_space<vmem>>, vector<1x128xf32>
    %4 = vector.broadcast %3 : vector<1x128xf32> to vector<128x128xf32>
    %5 = arith.addf %2, %4 : vector<128x128xf32>
    %cst_5 = arith.constant 0.000000e+00 : f32
    %6 = vector.broadcast %cst_5 : f32 to vector<128x128xf32>
    %7 = arith.cmpf oge, %5, %6 : vector<128x128xf32>
    %cst_6 = arith.constant 0.00999999977 : f32
    %8 = vector.broadcast %cst_6 : f32 to vector<128x128xf32>
    %9 = arith.mulf %8, %5 : vector<128x128xf32>
    %10 = arith.select %7, %5, %9 : vector<128x128xi1>, vector<128x128xf32>
    %c0_7 = arith.constant 0 : index
    %c0_8 = arith.constant 0 : index
    %11 = vector.load %arg5[%c0_7, %c0_8] : memref<128x128xf32, #tpu.memory_space<vmem>>, vector<128x128xf32>
    tpu.vector_store %arg5[%c0_7, %c0_8], %10 {strides = array<i32>} : memref<128x128xf32, #tpu.memory_space<vmem>>, vector<128x128xf32>,
    return
  }
  func.func @transform_0(%arg0: i32, %arg1: i32) -> (i32, i32) {
    %c0_i32 = arith.constant 0 : i32
    %c0_i32_0 = arith.constant 0 : i32
    return %arg0, %c0_i32 : i32, i32
  }
  func.func @transform_1(%arg0: i32, %arg1: i32) -> (i32, i32) {
    %c0_i32 = arith.constant 0 : i32
    %c0_i32_0 = arith.constant 0 : i32
    return %c0_i32, %arg1 : i32, i32
  }
  func.func @transform_2(%arg0: i32, %arg1: i32) -> (i32, i32) {
    %c0_i32 = arith.constant 0 : i32
    %c0_i32_0 = arith.constant 0 : i32
    return %c0_i32, %arg1 : i32, i32
  }
  func.func @transform_3(%arg0: i32, %arg1: i32) -> (i32, i32) {
    %c0_i32 = arith.constant 0 : i32
    return %arg0, %arg1 : i32, i32
  }
}

module attributes {stable_mosaic.version = 11 : i64} {
  func.func @_gdn_kernel(%arg0: i32, %arg1: memref<128x128xf32, #tpu.memory_space<vmem>>, %arg2: memref<128x128xf32, #tpu.memory_space<vmem>>, %arg3: memref<1x128xf32, #tpu.memory_space<vmem>>, %arg4: memref<128x128xf32, #tpu.memory_space<vmem>>) attributes {dimension_semantics = [#tpu.dimension_semantics<parallel>], iteration_bounds = array<i64: 1>, scalar_prefetch = 0 : i64, scratch_operands = 0 : i64, tpu.core_type = #tpu.core_type<tc>, window_params = [{transform_indices = @transform_0, window_bounds = array<i64: 128, 128>}, {pipeline_mode = #tpu.pipeline_mode<synchronous>, transform_indices = @transform_1, window_bounds = array<i64: 128, 128>}, {pipeline_mode = #tpu.pipeline_mode<synchronous>, transform_indices = @transform_2, window_bounds = array<i64: 1, 128>}, {transform_indices = @transform_3, window_bounds = array<i64: 128, 128>}]} {
    %c0 = arith.constant 0 : index
    %c0_0 = arith.constant 0 : index
    %0 = vector.load %arg1[%c0, %c0_0] : memref<128x128xf32, #tpu.memory_space<vmem>>, vector<128x128xf32>
    %1 = arith.mulf %0, %0 : vector<128x128xf32>
    %c0_1 = arith.constant 0 : index
    %c0_2 = arith.constant 0 : index
    %2 = vector.load %arg2[%c0_1, %c0_2] : memref<128x128xf32, #tpu.memory_space<vmem>>, vector<128x128xf32>
    %cst = arith.constant dense<0.000000e+00> : vector<128x128xf32>
    %3 = tpu.matmul %1, %2, %cst {dimension_numbers = #tpu.dot_dimension_numbers<[1], [0], [0], [1], [0, 0, 1, 1], [], []>} : vector<128x128xf32>, vector<128x128xf32>, vector<128x128xf32> -> vector<128x128xf32>
    %c0_3 = arith.constant 0 : index
    %c0_4 = arith.constant 0 : index
    %4 = vector.load %arg3[%c0_3, %c0_4] : memref<1x128xf32, #tpu.memory_space<vmem>>, vector<1x128xf32>
    %5 = vector.broadcast %4 : vector<1x128xf32> to vector<128x128xf32>
    %6 = arith.addf %3, %5 : vector<128x128xf32>
    %cst_5 = arith.constant 9.99999997E-7 : f32
    %7 = vector.broadcast %cst_5 : f32 to vector<128x128xf32>
    %8 = arith.maximumf %6, %7 : vector<128x128xf32>
    %9 = math.rsqrt %8 : vector<128x128xf32>
    %10 = arith.mulf %0, %9 : vector<128x128xf32>
    %c0_6 = arith.constant 0 : index
    %c0_7 = arith.constant 0 : index
    %11 = vector.load %arg4[%c0_6, %c0_7] : memref<128x128xf32, #tpu.memory_space<vmem>>, vector<128x128xf32>
    tpu.vector_store %arg4[%c0_6, %c0_7], %10 {strides = array<i32>} : memref<128x128xf32, #tpu.memory_space<vmem>>, vector<128x128xf32>,
    return
  }
  func.func @transform_0(%arg0: i32) -> (i32, i32) {
    %c0_i32 = arith.constant 0 : i32
    %c0_i32_0 = arith.constant 0 : i32
    return %arg0, %c0_i32 : i32, i32
  }
  func.func @transform_1(%arg0: i32) -> (i32, i32) {
    %c0_i32 = arith.constant 0 : i32
    %c0_i32_0 = arith.constant 0 : i32
    %c0_i32_1 = arith.constant 0 : i32
    return %c0_i32, %c0_i32_0 : i32, i32
  }
  func.func @transform_2(%arg0: i32) -> (i32, i32) {
    %c0_i32 = arith.constant 0 : i32
    %c0_i32_0 = arith.constant 0 : i32
    %c0_i32_1 = arith.constant 0 : i32
    return %c0_i32, %c0_i32_0 : i32, i32
  }
  func.func @transform_3(%arg0: i32) -> (i32, i32) {
    %c0_i32 = arith.constant 0 : i32
    %c0_i32_0 = arith.constant 0 : i32
    return %arg0, %c0_i32 : i32, i32
  }
}

module attributes {stable_mosaic.version = 11 : i64} {
  func.func @_pool_kernel(%arg0: i32, %arg1: memref<1x64x8xf32, #tpu.memory_space<vmem>>, %arg2: memref<1x1x8xf32, #tpu.memory_space<vmem>>, %arg3: memref<1x1x8xf32, #tpu.memory_space<vmem>>) attributes {dimension_semantics = [#tpu.dimension_semantics<parallel>], iteration_bounds = array<i64: 2>, scalar_prefetch = 0 : i64, scratch_operands = 0 : i64, tpu.core_type = #tpu.core_type<tc>, window_params = [{transform_indices = @transform_0, window_bounds = array<i64: 1, 64, 8>}, {transform_indices = @transform_1, window_bounds = array<i64: 1, 1, 8>}, {transform_indices = @transform_2, window_bounds = array<i64: 1, 1, 8>}]} {
    %c0 = arith.constant 0 : index
    %c0_0 = arith.constant 0 : index
    %c0_1 = arith.constant 0 : index
    %0 = vector.load %arg1[%c0, %c0_0, %c0_1] : memref<1x64x8xf32, #tpu.memory_space<vmem>>, vector<1x64x8xf32>
    %cst = arith.constant dense<0.000000e+00> : vector<1x8xf32>
    %1 = vector.multi_reduction <add>, %0, %cst [1] : vector<1x64x8xf32> to vector<1x8xf32>
    %2 = vector.shape_cast %1 : vector<1x8xf32> to vector<1x1x8xf32>
    %cst_2 = arith.constant 6.400000e+01 : f32
    %3 = vector.broadcast %cst_2 : f32 to vector<1x1x8xf32>
    %4 = arith.divf %2, %3 : vector<1x1x8xf32>
    %c0_3 = arith.constant 0 : index
    %c0_4 = arith.constant 0 : index
    %c0_5 = arith.constant 0 : index
    %5 = vector.load %arg2[%c0_3, %c0_4, %c0_5] : memref<1x1x8xf32, #tpu.memory_space<vmem>>, vector<1x1x8xf32>
    tpu.vector_store %arg2[%c0_3, %c0_4, %c0_5], %4 {strides = array<i32>} : memref<1x1x8xf32, #tpu.memory_space<vmem>>, vector<1x1x8xf32>,
    %cst_6 = arith.constant dense<0xFF800000> : vector<1x8xf32>
    %6 = vector.multi_reduction <maximumf>, %0, %cst_6 [1] : vector<1x64x8xf32> to vector<1x8xf32>
    %7 = vector.shape_cast %6 : vector<1x8xf32> to vector<1x1x8xf32>
    %c0_7 = arith.constant 0 : index
    %c0_8 = arith.constant 0 : index
    %c0_9 = arith.constant 0 : index
    %8 = vector.load %arg3[%c0_7, %c0_8, %c0_9] : memref<1x1x8xf32, #tpu.memory_space<vmem>>, vector<1x1x8xf32>
    tpu.vector_store %arg3[%c0_7, %c0_8, %c0_9], %7 {strides = array<i32>} : memref<1x1x8xf32, #tpu.memory_space<vmem>>, vector<1x1x8xf32>,
    return
  }
  func.func @transform_0(%arg0: i32) -> (i32, i32, i32) {
    %c0_i32 = arith.constant 0 : i32
    %c0_i32_0 = arith.constant 0 : i32
    %c0_i32_1 = arith.constant 0 : i32
    return %arg0, %c0_i32, %c0_i32_0 : i32, i32, i32
  }
  func.func @transform_1(%arg0: i32) -> (i32, i32, i32) {
    %c0_i32 = arith.constant 0 : i32
    %c0_i32_0 = arith.constant 0 : i32
    %c0_i32_1 = arith.constant 0 : i32
    return %arg0, %c0_i32, %c0_i32_0 : i32, i32, i32
  }
  func.func @transform_2(%arg0: i32) -> (i32, i32, i32) {
    %c0_i32 = arith.constant 0 : i32
    %c0_i32_0 = arith.constant 0 : i32
    %c0_i32_1 = arith.constant 0 : i32
    return %arg0, %c0_i32, %c0_i32_0 : i32, i32, i32
  }
}

module attributes {stable_mosaic.version = 11 : i64} {
  func.func @_cbam_scale_kernel(%arg0: i32, %arg1: memref<1x64x8xf32, #tpu.memory_space<vmem>>, %arg2: memref<1x1x8xf32, #tpu.memory_space<vmem>>, %arg3: memref<1x64x8xf32, #tpu.memory_space<vmem>>) attributes {dimension_semantics = [#tpu.dimension_semantics<parallel>], iteration_bounds = array<i64: 2>, scalar_prefetch = 0 : i64, scratch_operands = 0 : i64, tpu.core_type = #tpu.core_type<tc>, window_params = [{transform_indices = @transform_0, window_bounds = array<i64: 1, 64, 8>}, {transform_indices = @transform_1, window_bounds = array<i64: 1, 1, 8>}, {transform_indices = @transform_2, window_bounds = array<i64: 1, 64, 8>}]} {
    %c0 = arith.constant 0 : index
    %c0_0 = arith.constant 0 : index
    %c0_1 = arith.constant 0 : index
    %0 = vector.load %arg1[%c0, %c0_0, %c0_1] : memref<1x64x8xf32, #tpu.memory_space<vmem>>, vector<1x64x8xf32>
    %c0_2 = arith.constant 0 : index
    %c0_3 = arith.constant 0 : index
    %c0_4 = arith.constant 0 : index
    %1 = vector.load %arg2[%c0_2, %c0_3, %c0_4] : memref<1x1x8xf32, #tpu.memory_space<vmem>>, vector<1x1x8xf32>
    %2 = arith.negf %1 : vector<1x1x8xf32>
    %3 = math.exp %2 : vector<1x1x8xf32>
    %cst = arith.constant 1.000000e+00 : f32
    %4 = vector.broadcast %cst : f32 to vector<1x1x8xf32>
    %5 = arith.addf %4, %3 : vector<1x1x8xf32>
    %6 = arith.divf %4, %5 : vector<1x1x8xf32>
    %7 = vector.broadcast %6 : vector<1x1x8xf32> to vector<1x64x8xf32>
    %8 = arith.mulf %0, %7 : vector<1x64x8xf32>
    %c0_5 = arith.constant 0 : index
    %c0_6 = arith.constant 0 : index
    %c0_7 = arith.constant 0 : index
    %9 = vector.load %arg3[%c0_5, %c0_6, %c0_7] : memref<1x64x8xf32, #tpu.memory_space<vmem>>, vector<1x64x8xf32>
    tpu.vector_store %arg3[%c0_5, %c0_6, %c0_7], %8 {strides = array<i32>} : memref<1x64x8xf32, #tpu.memory_space<vmem>>, vector<1x64x8xf32>,
    return
  }
  func.func @transform_0(%arg0: i32) -> (i32, i32, i32) {
    %c0_i32 = arith.constant 0 : i32
    %c0_i32_0 = arith.constant 0 : i32
    %c0_i32_1 = arith.constant 0 : i32
    return %arg0, %c0_i32, %c0_i32_0 : i32, i32, i32
  }
  func.func @transform_1(%arg0: i32) -> (i32, i32, i32) {
    %c0_i32 = arith.constant 0 : i32
    %c0_i32_0 = arith.constant 0 : i32
    %c0_i32_1 = arith.constant 0 : i32
    return %arg0, %c0_i32, %c0_i32_0 : i32, i32, i32
  }
  func.func @transform_2(%arg0: i32) -> (i32, i32, i32) {
    %c0_i32 = arith.constant 0 : i32
    %c0_i32_0 = arith.constant 0 : i32
    %c0_i32_1 = arith.constant 0 : i32
    return %arg0, %c0_i32, %c0_i32_0 : i32, i32, i32
  }
}

module attributes {stable_mosaic.version = 11 : i64} {
  func.func @_mm_kernel(%arg0: i32, %arg1: i32, %arg2: memref<128x128xbf16, #tpu.memory_space<vmem>>, %arg3: memref<128x128xbf16, #tpu.memory_space<vmem>>, %arg4: memref<1x128xf32, #tpu.memory_space<vmem>>, %arg5: memref<128x128xf32, #tpu.memory_space<vmem>>) attributes {dimension_semantics = [#tpu.dimension_semantics<parallel>, #tpu.dimension_semantics<parallel>], iteration_bounds = array<i64: 1, 1>, scalar_prefetch = 0 : i64, scratch_operands = 0 : i64, tpu.core_type = #tpu.core_type<tc>, window_params = [{transform_indices = @transform_0, window_bounds = array<i64: 128, 128>}, {transform_indices = @transform_1, window_bounds = array<i64: 128, 128>}, {transform_indices = @transform_2, window_bounds = array<i64: 1, 128>}, {transform_indices = @transform_3, window_bounds = array<i64: 128, 128>}]} {
    %c0 = arith.constant 0 : index
    %c0_0 = arith.constant 0 : index
    %0 = vector.load %arg2[%c0, %c0_0] : memref<128x128xbf16, #tpu.memory_space<vmem>>, vector<128x128xbf16>
    %c0_1 = arith.constant 0 : index
    %c0_2 = arith.constant 0 : index
    %1 = vector.load %arg3[%c0_1, %c0_2] : memref<128x128xbf16, #tpu.memory_space<vmem>>, vector<128x128xbf16>
    %cst = arith.constant dense<0.000000e+00> : vector<128x128xf32>
    %2 = tpu.matmul %0, %1, %cst {dimension_numbers = #tpu.dot_dimension_numbers<[1], [0], [0], [1], [0, 0, 1, 1], [], []>} : vector<128x128xbf16>, vector<128x128xbf16>, vector<128x128xf32> -> vector<128x128xf32>
    %c0_3 = arith.constant 0 : index
    %c0_4 = arith.constant 0 : index
    %3 = vector.load %arg4[%c0_3, %c0_4] : memref<1x128xf32, #tpu.memory_space<vmem>>, vector<1x128xf32>
    %4 = vector.broadcast %3 : vector<1x128xf32> to vector<128x128xf32>
    %5 = arith.addf %2, %4 : vector<128x128xf32>
    %cst_5 = arith.constant 0.000000e+00 : f32
    %6 = vector.broadcast %cst_5 : f32 to vector<128x128xf32>
    %7 = arith.maximumf %5, %6 : vector<128x128xf32>
    %c0_6 = arith.constant 0 : index
    %c0_7 = arith.constant 0 : index
    %8 = vector.load %arg5[%c0_6, %c0_7] : memref<128x128xf32, #tpu.memory_space<vmem>>, vector<128x128xf32>
    tpu.vector_store %arg5[%c0_6, %c0_7], %7 {strides = array<i32>} : memref<128x128xf32, #tpu.memory_space<vmem>>, vector<128x128xf32>,
    return
  }
  func.func @transform_0(%arg0: i32, %arg1: i32) -> (i32, i32) {
    %c0_i32 = arith.constant 0 : i32
    %c0_i32_0 = arith.constant 0 : i32
    return %arg0, %c0_i32 : i32, i32
  }
  func.func @transform_1(%arg0: i32, %arg1: i32) -> (i32, i32) {
    %c0_i32 = arith.constant 0 : i32
    %c0_i32_0 = arith.constant 0 : i32
    return %c0_i32, %arg1 : i32, i32
  }
  func.func @transform_2(%arg0: i32, %arg1: i32) -> (i32, i32) {
    %c0_i32 = arith.constant 0 : i32
    %c0_i32_0 = arith.constant 0 : i32
    return %c0_i32, %arg1 : i32, i32
  }
  func.func @transform_3(%arg0: i32, %arg1: i32) -> (i32, i32) {
    %c0_i32 = arith.constant 0 : i32
    return %arg0, %arg1 : i32, i32
  }
}

module attributes {stable_mosaic.version = 11 : i64} {
  func.func @_ew2_kernel(%arg0: i32, %arg1: memref<8x512xf32, #tpu.memory_space<vmem>>, %arg2: memref<8x512xf32, #tpu.memory_space<vmem>>, %arg3: memref<8x512xf32, #tpu.memory_space<vmem>>) attributes {dimension_semantics = [#tpu.dimension_semantics<parallel>], iteration_bounds = array<i64: 1>, scalar_prefetch = 0 : i64, scratch_operands = 0 : i64, tpu.core_type = #tpu.core_type<tc>, window_params = [{transform_indices = @transform_0, window_bounds = array<i64: 8, 512>}, {transform_indices = @transform_1, window_bounds = array<i64: 8, 512>}, {transform_indices = @transform_2, window_bounds = array<i64: 8, 512>}]} {
    %c0 = arith.constant 0 : index
    %c0_0 = arith.constant 0 : index
    %0 = vector.load %arg1[%c0, %c0_0] : memref<8x512xf32, #tpu.memory_space<vmem>>, vector<8x512xf32>
    %c0_1 = arith.constant 0 : index
    %c0_2 = arith.constant 0 : index
    %1 = vector.load %arg2[%c0_1, %c0_2] : memref<8x512xf32, #tpu.memory_space<vmem>>, vector<8x512xf32>
    %2 = arith.addf %0, %1 : vector<8x512xf32>
    %cst = arith.constant 0.000000e+00 : f32
    %3 = vector.broadcast %cst : f32 to vector<8x512xf32>
    %4 = arith.maximumf %2, %3 : vector<8x512xf32>
    %c0_3 = arith.constant 0 : index
    %c0_4 = arith.constant 0 : index
    %5 = vector.load %arg3[%c0_3, %c0_4] : memref<8x512xf32, #tpu.memory_space<vmem>>, vector<8x512xf32>
    tpu.vector_store %arg3[%c0_3, %c0_4], %4 {strides = array<i32>} : memref<8x512xf32, #tpu.memory_space<vmem>>, vector<8x512xf32>,
    return
  }
  func.func @transform_0(%arg0: i32) -> (i32, i32) {
    %c0_i32 = arith.constant 0 : i32
    %c0_i32_0 = arith.constant 0 : i32
    return %arg0, %c0_i32 : i32, i32
  }
  func.func @transform_1(%arg0: i32) -> (i32, i32) {
    %c0_i32 = arith.constant 0 : i32
    %c0_i32_0 = arith.constant 0 : i32
    return %arg0, %c0_i32 : i32, i32
  }
  func.func @transform_2(%arg0: i32) -> (i32, i32) {
    %c0_i32 = arith.constant 0 : i32
    %c0_i32_0 = arith.constant 0 : i32
    return %arg0, %c0_i32 : i32, i32
  }
}

module attributes {stable_mosaic.version = 11 : i64} {
  func.func @_ew3_kernel(%arg0: i32, %arg1: memref<8x512xf32, #tpu.memory_space<vmem>>, %arg2: memref<8x512xf32, #tpu.memory_space<vmem>>, %arg3: memref<8x512xf32, #tpu.memory_space<vmem>>, %arg4: memref<8x512xf32, #tpu.memory_space<vmem>>) attributes {dimension_semantics = [#tpu.dimension_semantics<parallel>], iteration_bounds = array<i64: 1>, scalar_prefetch = 0 : i64, scratch_operands = 0 : i64, tpu.core_type = #tpu.core_type<tc>, window_params = [{transform_indices = @transform_0, window_bounds = array<i64: 8, 512>}, {transform_indices = @transform_1, window_bounds = array<i64: 8, 512>}, {transform_indices = @transform_2, window_bounds = array<i64: 8, 512>}, {transform_indices = @transform_3, window_bounds = array<i64: 8, 512>}]} {
    %c0 = arith.constant 0 : index
    %c0_0 = arith.constant 0 : index
    %0 = vector.load %arg1[%c0, %c0_0] : memref<8x512xf32, #tpu.memory_space<vmem>>, vector<8x512xf32>
    %c0_1 = arith.constant 0 : index
    %c0_2 = arith.constant 0 : index
    %1 = vector.load %arg2[%c0_1, %c0_2] : memref<8x512xf32, #tpu.memory_space<vmem>>, vector<8x512xf32>
    %2 = arith.negf %1 : vector<8x512xf32>
    %3 = math.exp %2 : vector<8x512xf32>
    %cst = arith.constant 1.000000e+00 : f32
    %4 = vector.broadcast %cst : f32 to vector<8x512xf32>
    %5 = arith.addf %4, %3 : vector<8x512xf32>
    %6 = arith.divf %4, %5 : vector<8x512xf32>
    %7 = arith.mulf %0, %6 : vector<8x512xf32>
    %c0_3 = arith.constant 0 : index
    %c0_4 = arith.constant 0 : index
    %8 = vector.load %arg3[%c0_3, %c0_4] : memref<8x512xf32, #tpu.memory_space<vmem>>, vector<8x512xf32>
    %9 = arith.addf %7, %8 : vector<8x512xf32>
    %c0_5 = arith.constant 0 : index
    %c0_6 = arith.constant 0 : index
    %10 = vector.load %arg4[%c0_5, %c0_6] : memref<8x512xf32, #tpu.memory_space<vmem>>, vector<8x512xf32>
    tpu.vector_store %arg4[%c0_5, %c0_6], %9 {strides = array<i32>} : memref<8x512xf32, #tpu.memory_space<vmem>>, vector<8x512xf32>,
    return
  }
  func.func @transform_0(%arg0: i32) -> (i32, i32) {
    %c0_i32 = arith.constant 0 : i32
    %c0_i32_0 = arith.constant 0 : i32
    return %arg0, %c0_i32 : i32, i32
  }
  func.func @transform_1(%arg0: i32) -> (i32, i32) {
    %c0_i32 = arith.constant 0 : i32
    %c0_i32_0 = arith.constant 0 : i32
    return %arg0, %c0_i32 : i32, i32
  }
  func.func @transform_2(%arg0: i32) -> (i32, i32) {
    %c0_i32 = arith.constant 0 : i32
    %c0_i32_0 = arith.constant 0 : i32
    return %arg0, %c0_i32 : i32, i32
  }
  func.func @transform_3(%arg0: i32) -> (i32, i32) {
    %c0_i32 = arith.constant 0 : i32
    %c0_i32_0 = arith.constant 0 : i32
    return %arg0, %c0_i32 : i32, i32
  }
}

module attributes {stable_mosaic.version = 11 : i64} {
  func.func @_mm_kernel(%arg0: i32, %arg1: i32, %arg2: memref<32x128xbf16, #tpu.memory_space<vmem>>, %arg3: memref<128x128xbf16, #tpu.memory_space<vmem>>, %arg4: memref<1x128xf32, #tpu.memory_space<vmem>>, %arg5: memref<32x128xf32, #tpu.memory_space<vmem>>) attributes {dimension_semantics = [#tpu.dimension_semantics<parallel>, #tpu.dimension_semantics<parallel>], iteration_bounds = array<i64: 1, 1>, scalar_prefetch = 0 : i64, scratch_operands = 0 : i64, tpu.core_type = #tpu.core_type<tc>, window_params = [{transform_indices = @transform_0, window_bounds = array<i64: 32, 128>}, {transform_indices = @transform_1, window_bounds = array<i64: 128, 128>}, {transform_indices = @transform_2, window_bounds = array<i64: 1, 128>}, {transform_indices = @transform_3, window_bounds = array<i64: 32, 128>}]} {
    %c0 = arith.constant 0 : index
    %c0_0 = arith.constant 0 : index
    %0 = vector.load %arg2[%c0, %c0_0] : memref<32x128xbf16, #tpu.memory_space<vmem>>, vector<32x128xbf16>
    %c0_1 = arith.constant 0 : index
    %c0_2 = arith.constant 0 : index
    %1 = vector.load %arg3[%c0_1, %c0_2] : memref<128x128xbf16, #tpu.memory_space<vmem>>, vector<128x128xbf16>
    %cst = arith.constant dense<0.000000e+00> : vector<32x128xf32>
    %2 = tpu.matmul %0, %1, %cst {dimension_numbers = #tpu.dot_dimension_numbers<[1], [0], [0], [1], [0, 0, 1, 1], [], []>} : vector<32x128xbf16>, vector<128x128xbf16>, vector<32x128xf32> -> vector<32x128xf32>
    %c0_3 = arith.constant 0 : index
    %c0_4 = arith.constant 0 : index
    %3 = vector.load %arg4[%c0_3, %c0_4] : memref<1x128xf32, #tpu.memory_space<vmem>>, vector<1x128xf32>
    %4 = vector.broadcast %3 : vector<1x128xf32> to vector<32x128xf32>
    %5 = arith.addf %2, %4 : vector<32x128xf32>
    %c0_5 = arith.constant 0 : index
    %c0_6 = arith.constant 0 : index
    %6 = vector.load %arg5[%c0_5, %c0_6] : memref<32x128xf32, #tpu.memory_space<vmem>>, vector<32x128xf32>
    tpu.vector_store %arg5[%c0_5, %c0_6], %5 {strides = array<i32>} : memref<32x128xf32, #tpu.memory_space<vmem>>, vector<32x128xf32>,
    return
  }
  func.func @transform_0(%arg0: i32, %arg1: i32) -> (i32, i32) {
    %c0_i32 = arith.constant 0 : i32
    %c0_i32_0 = arith.constant 0 : i32
    return %arg0, %c0_i32 : i32, i32
  }
  func.func @transform_1(%arg0: i32, %arg1: i32) -> (i32, i32) {
    %c0_i32 = arith.constant 0 : i32
    %c0_i32_0 = arith.constant 0 : i32
    return %c0_i32, %arg1 : i32, i32
  }
  func.func @transform_2(%arg0: i32, %arg1: i32) -> (i32, i32) {
    %c0_i32 = arith.constant 0 : i32
    %c0_i32_0 = arith.constant 0 : i32
    return %c0_i32, %arg1 : i32, i32
  }
  func.func @transform_3(%arg0: i32, %arg1: i32) -> (i32, i32) {
    %c0_i32 = arith.constant 0 : i32
    return %arg0, %arg1 : i32, i32
  }
}

module attributes {stable_mosaic.version = 11 : i64} {
  func.func @_mm_kernel(%arg0: i32, %arg1: i32, %arg2: memref<32x128xbf16, #tpu.memory_space<vmem>>, %arg3: memref<128x128xbf16, #tpu.memory_space<vmem>>, %arg4: memref<1x128xf32, #tpu.memory_space<vmem>>, %arg5: memref<32x128xf32, #tpu.memory_space<vmem>>) attributes {dimension_semantics = [#tpu.dimension_semantics<parallel>, #tpu.dimension_semantics<parallel>], iteration_bounds = array<i64: 1, 1>, scalar_prefetch = 0 : i64, scratch_operands = 0 : i64, tpu.core_type = #tpu.core_type<tc>, window_params = [{transform_indices = @transform_0, window_bounds = array<i64: 32, 128>}, {transform_indices = @transform_1, window_bounds = array<i64: 128, 128>}, {transform_indices = @transform_2, window_bounds = array<i64: 1, 128>}, {transform_indices = @transform_3, window_bounds = array<i64: 32, 128>}]} {
    %c0 = arith.constant 0 : index
    %c0_0 = arith.constant 0 : index
    %0 = vector.load %arg2[%c0, %c0_0] : memref<32x128xbf16, #tpu.memory_space<vmem>>, vector<32x128xbf16>
    %c0_1 = arith.constant 0 : index
    %c0_2 = arith.constant 0 : index
    %1 = vector.load %arg3[%c0_1, %c0_2] : memref<128x128xbf16, #tpu.memory_space<vmem>>, vector<128x128xbf16>
    %cst = arith.constant dense<0.000000e+00> : vector<32x128xf32>
    %2 = tpu.matmul %0, %1, %cst {dimension_numbers = #tpu.dot_dimension_numbers<[1], [0], [0], [1], [0, 0, 1, 1], [], []>} : vector<32x128xbf16>, vector<128x128xbf16>, vector<32x128xf32> -> vector<32x128xf32>
    %c0_3 = arith.constant 0 : index
    %c0_4 = arith.constant 0 : index
    %3 = vector.load %arg4[%c0_3, %c0_4] : memref<1x128xf32, #tpu.memory_space<vmem>>, vector<1x128xf32>
    %4 = vector.broadcast %3 : vector<1x128xf32> to vector<32x128xf32>
    %5 = arith.addf %2, %4 : vector<32x128xf32>
    %cst_5 = arith.constant 0.000000e+00 : f32
    %6 = vector.broadcast %cst_5 : f32 to vector<32x128xf32>
    %7 = arith.cmpf oge, %5, %6 : vector<32x128xf32>
    %cst_6 = arith.constant 0.00999999977 : f32
    %8 = vector.broadcast %cst_6 : f32 to vector<32x128xf32>
    %9 = arith.mulf %8, %5 : vector<32x128xf32>
    %10 = arith.select %7, %5, %9 : vector<32x128xi1>, vector<32x128xf32>
    %c0_7 = arith.constant 0 : index
    %c0_8 = arith.constant 0 : index
    %11 = vector.load %arg5[%c0_7, %c0_8] : memref<32x128xf32, #tpu.memory_space<vmem>>, vector<32x128xf32>
    tpu.vector_store %arg5[%c0_7, %c0_8], %10 {strides = array<i32>} : memref<32x128xf32, #tpu.memory_space<vmem>>, vector<32x128xf32>,
    return
  }
  func.func @transform_0(%arg0: i32, %arg1: i32) -> (i32, i32) {
    %c0_i32 = arith.constant 0 : i32
    %c0_i32_0 = arith.constant 0 : i32
    return %arg0, %c0_i32 : i32, i32
  }
  func.func @transform_1(%arg0: i32, %arg1: i32) -> (i32, i32) {
    %c0_i32 = arith.constant 0 : i32
    %c0_i32_0 = arith.constant 0 : i32
    return %c0_i32, %arg1 : i32, i32
  }
  func.func @transform_2(%arg0: i32, %arg1: i32) -> (i32, i32) {
    %c0_i32 = arith.constant 0 : i32
    %c0_i32_0 = arith.constant 0 : i32
    return %c0_i32, %arg1 : i32, i32
  }
  func.func @transform_3(%arg0: i32, %arg1: i32) -> (i32, i32) {
    %c0_i32 = arith.constant 0 : i32
    return %arg0, %arg1 : i32, i32
  }
}

module attributes {stable_mosaic.version = 11 : i64} {
  func.func @_gdn_kernel(%arg0: i32, %arg1: memref<32x128xf32, #tpu.memory_space<vmem>>, %arg2: memref<128x128xf32, #tpu.memory_space<vmem>>, %arg3: memref<1x128xf32, #tpu.memory_space<vmem>>, %arg4: memref<32x128xf32, #tpu.memory_space<vmem>>) attributes {dimension_semantics = [#tpu.dimension_semantics<parallel>], iteration_bounds = array<i64: 1>, scalar_prefetch = 0 : i64, scratch_operands = 0 : i64, tpu.core_type = #tpu.core_type<tc>, window_params = [{transform_indices = @transform_0, window_bounds = array<i64: 32, 128>}, {pipeline_mode = #tpu.pipeline_mode<synchronous>, transform_indices = @transform_1, window_bounds = array<i64: 128, 128>}, {pipeline_mode = #tpu.pipeline_mode<synchronous>, transform_indices = @transform_2, window_bounds = array<i64: 1, 128>}, {transform_indices = @transform_3, window_bounds = array<i64: 32, 128>}]} {
    %c0 = arith.constant 0 : index
    %c0_0 = arith.constant 0 : index
    %0 = vector.load %arg1[%c0, %c0_0] : memref<32x128xf32, #tpu.memory_space<vmem>>, vector<32x128xf32>
    %1 = arith.mulf %0, %0 : vector<32x128xf32>
    %c0_1 = arith.constant 0 : index
    %c0_2 = arith.constant 0 : index
    %2 = vector.load %arg2[%c0_1, %c0_2] : memref<128x128xf32, #tpu.memory_space<vmem>>, vector<128x128xf32>
    %cst = arith.constant dense<0.000000e+00> : vector<32x128xf32>
    %3 = tpu.matmul %1, %2, %cst {dimension_numbers = #tpu.dot_dimension_numbers<[1], [0], [0], [1], [0, 0, 1, 1], [], []>} : vector<32x128xf32>, vector<128x128xf32>, vector<32x128xf32> -> vector<32x128xf32>
    %c0_3 = arith.constant 0 : index
    %c0_4 = arith.constant 0 : index
    %4 = vector.load %arg3[%c0_3, %c0_4] : memref<1x128xf32, #tpu.memory_space<vmem>>, vector<1x128xf32>
    %5 = vector.broadcast %4 : vector<1x128xf32> to vector<32x128xf32>
    %6 = arith.addf %3, %5 : vector<32x128xf32>
    %cst_5 = arith.constant 9.99999997E-7 : f32
    %7 = vector.broadcast %cst_5 : f32 to vector<32x128xf32>
    %8 = arith.maximumf %6, %7 : vector<32x128xf32>
    %9 = math.rsqrt %8 : vector<32x128xf32>
    %10 = arith.mulf %0, %9 : vector<32x128xf32>
    %c0_6 = arith.constant 0 : index
    %c0_7 = arith.constant 0 : index
    %11 = vector.load %arg4[%c0_6, %c0_7] : memref<32x128xf32, #tpu.memory_space<vmem>>, vector<32x128xf32>
    tpu.vector_store %arg4[%c0_6, %c0_7], %10 {strides = array<i32>} : memref<32x128xf32, #tpu.memory_space<vmem>>, vector<32x128xf32>,
    return
  }
  func.func @transform_0(%arg0: i32) -> (i32, i32) {
    %c0_i32 = arith.constant 0 : i32
    %c0_i32_0 = arith.constant 0 : i32
    return %arg0, %c0_i32 : i32, i32
  }
  func.func @transform_1(%arg0: i32) -> (i32, i32) {
    %c0_i32 = arith.constant 0 : i32
    %c0_i32_0 = arith.constant 0 : i32
    %c0_i32_1 = arith.constant 0 : i32
    return %c0_i32, %c0_i32_0 : i32, i32
  }
  func.func @transform_2(%arg0: i32) -> (i32, i32) {
    %c0_i32 = arith.constant 0 : i32
    %c0_i32_0 = arith.constant 0 : i32
    %c0_i32_1 = arith.constant 0 : i32
    return %c0_i32, %c0_i32_0 : i32, i32
  }
  func.func @transform_3(%arg0: i32) -> (i32, i32) {
    %c0_i32 = arith.constant 0 : i32
    %c0_i32_0 = arith.constant 0 : i32
    return %arg0, %c0_i32 : i32, i32
  }
}

module attributes {stable_mosaic.version = 11 : i64} {
  func.func @_pool_kernel(%arg0: i32, %arg1: memref<1x4x16xf32, #tpu.memory_space<vmem>>, %arg2: memref<1x1x16xf32, #tpu.memory_space<vmem>>, %arg3: memref<1x1x16xf32, #tpu.memory_space<vmem>>) attributes {dimension_semantics = [#tpu.dimension_semantics<parallel>], iteration_bounds = array<i64: 2>, scalar_prefetch = 0 : i64, scratch_operands = 0 : i64, tpu.core_type = #tpu.core_type<tc>, window_params = [{transform_indices = @transform_0, window_bounds = array<i64: 1, 4, 16>}, {transform_indices = @transform_1, window_bounds = array<i64: 1, 1, 16>}, {transform_indices = @transform_2, window_bounds = array<i64: 1, 1, 16>}]} {
    %c0 = arith.constant 0 : index
    %c0_0 = arith.constant 0 : index
    %c0_1 = arith.constant 0 : index
    %0 = vector.load %arg1[%c0, %c0_0, %c0_1] : memref<1x4x16xf32, #tpu.memory_space<vmem>>, vector<1x4x16xf32>
    %cst = arith.constant dense<0.000000e+00> : vector<1x16xf32>
    %1 = vector.multi_reduction <add>, %0, %cst [1] : vector<1x4x16xf32> to vector<1x16xf32>
    %2 = vector.shape_cast %1 : vector<1x16xf32> to vector<1x1x16xf32>
    %cst_2 = arith.constant 4.000000e+00 : f32
    %3 = vector.broadcast %cst_2 : f32 to vector<1x1x16xf32>
    %4 = arith.divf %2, %3 : vector<1x1x16xf32>
    %c0_3 = arith.constant 0 : index
    %c0_4 = arith.constant 0 : index
    %c0_5 = arith.constant 0 : index
    %5 = vector.load %arg2[%c0_3, %c0_4, %c0_5] : memref<1x1x16xf32, #tpu.memory_space<vmem>>, vector<1x1x16xf32>
    tpu.vector_store %arg2[%c0_3, %c0_4, %c0_5], %4 {strides = array<i32>} : memref<1x1x16xf32, #tpu.memory_space<vmem>>, vector<1x1x16xf32>,
    %cst_6 = arith.constant dense<0xFF800000> : vector<1x16xf32>
    %6 = vector.multi_reduction <maximumf>, %0, %cst_6 [1] : vector<1x4x16xf32> to vector<1x16xf32>
    %7 = vector.shape_cast %6 : vector<1x16xf32> to vector<1x1x16xf32>
    %c0_7 = arith.constant 0 : index
    %c0_8 = arith.constant 0 : index
    %c0_9 = arith.constant 0 : index
    %8 = vector.load %arg3[%c0_7, %c0_8, %c0_9] : memref<1x1x16xf32, #tpu.memory_space<vmem>>, vector<1x1x16xf32>
    tpu.vector_store %arg3[%c0_7, %c0_8, %c0_9], %7 {strides = array<i32>} : memref<1x1x16xf32, #tpu.memory_space<vmem>>, vector<1x1x16xf32>,
    return
  }
  func.func @transform_0(%arg0: i32) -> (i32, i32, i32) {
    %c0_i32 = arith.constant 0 : i32
    %c0_i32_0 = arith.constant 0 : i32
    %c0_i32_1 = arith.constant 0 : i32
    return %arg0, %c0_i32, %c0_i32_0 : i32, i32, i32
  }
  func.func @transform_1(%arg0: i32) -> (i32, i32, i32) {
    %c0_i32 = arith.constant 0 : i32
    %c0_i32_0 = arith.constant 0 : i32
    %c0_i32_1 = arith.constant 0 : i32
    return %arg0, %c0_i32, %c0_i32_0 : i32, i32, i32
  }
  func.func @transform_2(%arg0: i32) -> (i32, i32, i32) {
    %c0_i32 = arith.constant 0 : i32
    %c0_i32_0 = arith.constant 0 : i32
    %c0_i32_1 = arith.constant 0 : i32
    return %arg0, %c0_i32, %c0_i32_0 : i32, i32, i32
  }
}

module attributes {stable_mosaic.version = 11 : i64} {
  func.func @_mm_kernel(%arg0: i32, %arg1: i32, %arg2: memref<16x128xbf16, #tpu.memory_space<vmem>>, %arg3: memref<128x128xbf16, #tpu.memory_space<vmem>>, %arg4: memref<1x128xf32, #tpu.memory_space<vmem>>, %arg5: memref<16x128xf32, #tpu.memory_space<vmem>>) attributes {dimension_semantics = [#tpu.dimension_semantics<parallel>, #tpu.dimension_semantics<parallel>], iteration_bounds = array<i64: 1, 1>, scalar_prefetch = 0 : i64, scratch_operands = 0 : i64, tpu.core_type = #tpu.core_type<tc>, window_params = [{transform_indices = @transform_0, window_bounds = array<i64: 16, 128>}, {transform_indices = @transform_1, window_bounds = array<i64: 128, 128>}, {transform_indices = @transform_2, window_bounds = array<i64: 1, 128>}, {transform_indices = @transform_3, window_bounds = array<i64: 16, 128>}]} {
    %c0 = arith.constant 0 : index
    %c0_0 = arith.constant 0 : index
    %0 = vector.load %arg2[%c0, %c0_0] : memref<16x128xbf16, #tpu.memory_space<vmem>>, vector<16x128xbf16>
    %c0_1 = arith.constant 0 : index
    %c0_2 = arith.constant 0 : index
    %1 = vector.load %arg3[%c0_1, %c0_2] : memref<128x128xbf16, #tpu.memory_space<vmem>>, vector<128x128xbf16>
    %cst = arith.constant dense<0.000000e+00> : vector<16x128xf32>
    %2 = tpu.matmul %0, %1, %cst {dimension_numbers = #tpu.dot_dimension_numbers<[1], [0], [0], [1], [0, 0, 1, 1], [], []>} : vector<16x128xbf16>, vector<128x128xbf16>, vector<16x128xf32> -> vector<16x128xf32>
    %c0_3 = arith.constant 0 : index
    %c0_4 = arith.constant 0 : index
    %3 = vector.load %arg4[%c0_3, %c0_4] : memref<1x128xf32, #tpu.memory_space<vmem>>, vector<1x128xf32>
    %4 = vector.broadcast %3 : vector<1x128xf32> to vector<16x128xf32>
    %5 = arith.addf %2, %4 : vector<16x128xf32>
    %c0_5 = arith.constant 0 : index
    %c0_6 = arith.constant 0 : index
    %6 = vector.load %arg5[%c0_5, %c0_6] : memref<16x128xf32, #tpu.memory_space<vmem>>, vector<16x128xf32>
    tpu.vector_store %arg5[%c0_5, %c0_6], %5 {strides = array<i32>} : memref<16x128xf32, #tpu.memory_space<vmem>>, vector<16x128xf32>,
    return
  }
  func.func @transform_0(%arg0: i32, %arg1: i32) -> (i32, i32) {
    %c0_i32 = arith.constant 0 : i32
    %c0_i32_0 = arith.constant 0 : i32
    return %arg0, %c0_i32 : i32, i32
  }
  func.func @transform_1(%arg0: i32, %arg1: i32) -> (i32, i32) {
    %c0_i32 = arith.constant 0 : i32
    %c0_i32_0 = arith.constant 0 : i32
    return %c0_i32, %arg1 : i32, i32
  }
  func.func @transform_2(%arg0: i32, %arg1: i32) -> (i32, i32) {
    %c0_i32 = arith.constant 0 : i32
    %c0_i32_0 = arith.constant 0 : i32
    return %c0_i32, %arg1 : i32, i32
  }
  func.func @transform_3(%arg0: i32, %arg1: i32) -> (i32, i32) {
    %c0_i32 = arith.constant 0 : i32
    return %arg0, %arg1 : i32, i32
  }
}

module attributes {stable_mosaic.version = 11 : i64} {
  func.func @_cbam_scale_kernel(%arg0: i32, %arg1: memref<1x4x16xf32, #tpu.memory_space<vmem>>, %arg2: memref<1x1x16xf32, #tpu.memory_space<vmem>>, %arg3: memref<1x4x16xf32, #tpu.memory_space<vmem>>) attributes {dimension_semantics = [#tpu.dimension_semantics<parallel>], iteration_bounds = array<i64: 2>, scalar_prefetch = 0 : i64, scratch_operands = 0 : i64, tpu.core_type = #tpu.core_type<tc>, window_params = [{transform_indices = @transform_0, window_bounds = array<i64: 1, 4, 16>}, {transform_indices = @transform_1, window_bounds = array<i64: 1, 1, 16>}, {transform_indices = @transform_2, window_bounds = array<i64: 1, 4, 16>}]} {
    %c0 = arith.constant 0 : index
    %c0_0 = arith.constant 0 : index
    %c0_1 = arith.constant 0 : index
    %0 = vector.load %arg1[%c0, %c0_0, %c0_1] : memref<1x4x16xf32, #tpu.memory_space<vmem>>, vector<1x4x16xf32>
    %c0_2 = arith.constant 0 : index
    %c0_3 = arith.constant 0 : index
    %c0_4 = arith.constant 0 : index
    %1 = vector.load %arg2[%c0_2, %c0_3, %c0_4] : memref<1x1x16xf32, #tpu.memory_space<vmem>>, vector<1x1x16xf32>
    %2 = arith.negf %1 : vector<1x1x16xf32>
    %3 = math.exp %2 : vector<1x1x16xf32>
    %cst = arith.constant 1.000000e+00 : f32
    %4 = vector.broadcast %cst : f32 to vector<1x1x16xf32>
    %5 = arith.addf %4, %3 : vector<1x1x16xf32>
    %6 = arith.divf %4, %5 : vector<1x1x16xf32>
    %7 = vector.broadcast %6 : vector<1x1x16xf32> to vector<1x4x16xf32>
    %8 = arith.mulf %0, %7 : vector<1x4x16xf32>
    %c0_5 = arith.constant 0 : index
    %c0_6 = arith.constant 0 : index
    %c0_7 = arith.constant 0 : index
    %9 = vector.load %arg3[%c0_5, %c0_6, %c0_7] : memref<1x4x16xf32, #tpu.memory_space<vmem>>, vector<1x4x16xf32>
    tpu.vector_store %arg3[%c0_5, %c0_6, %c0_7], %8 {strides = array<i32>} : memref<1x4x16xf32, #tpu.memory_space<vmem>>, vector<1x4x16xf32>,
    return
  }
  func.func @transform_0(%arg0: i32) -> (i32, i32, i32) {
    %c0_i32 = arith.constant 0 : i32
    %c0_i32_0 = arith.constant 0 : i32
    %c0_i32_1 = arith.constant 0 : i32
    return %arg0, %c0_i32, %c0_i32_0 : i32, i32, i32
  }
  func.func @transform_1(%arg0: i32) -> (i32, i32, i32) {
    %c0_i32 = arith.constant 0 : i32
    %c0_i32_0 = arith.constant 0 : i32
    %c0_i32_1 = arith.constant 0 : i32
    return %arg0, %c0_i32, %c0_i32_0 : i32, i32, i32
  }
  func.func @transform_2(%arg0: i32) -> (i32, i32, i32) {
    %c0_i32 = arith.constant 0 : i32
    %c0_i32_0 = arith.constant 0 : i32
    %c0_i32_1 = arith.constant 0 : i32
    return %arg0, %c0_i32, %c0_i32_0 : i32, i32, i32
  }
}

module attributes {stable_mosaic.version = 11 : i64} {
  func.func @_mm_kernel(%arg0: i32, %arg1: i32, %arg2: memref<16x128xbf16, #tpu.memory_space<vmem>>, %arg3: memref<128x128xbf16, #tpu.memory_space<vmem>>, %arg4: memref<1x128xf32, #tpu.memory_space<vmem>>, %arg5: memref<16x128xf32, #tpu.memory_space<vmem>>) attributes {dimension_semantics = [#tpu.dimension_semantics<parallel>, #tpu.dimension_semantics<parallel>], iteration_bounds = array<i64: 1, 1>, scalar_prefetch = 0 : i64, scratch_operands = 0 : i64, tpu.core_type = #tpu.core_type<tc>, window_params = [{transform_indices = @transform_0, window_bounds = array<i64: 16, 128>}, {transform_indices = @transform_1, window_bounds = array<i64: 128, 128>}, {transform_indices = @transform_2, window_bounds = array<i64: 1, 128>}, {transform_indices = @transform_3, window_bounds = array<i64: 16, 128>}]} {
    %c0 = arith.constant 0 : index
    %c0_0 = arith.constant 0 : index
    %0 = vector.load %arg2[%c0, %c0_0] : memref<16x128xbf16, #tpu.memory_space<vmem>>, vector<16x128xbf16>
    %c0_1 = arith.constant 0 : index
    %c0_2 = arith.constant 0 : index
    %1 = vector.load %arg3[%c0_1, %c0_2] : memref<128x128xbf16, #tpu.memory_space<vmem>>, vector<128x128xbf16>
    %cst = arith.constant dense<0.000000e+00> : vector<16x128xf32>
    %2 = tpu.matmul %0, %1, %cst {dimension_numbers = #tpu.dot_dimension_numbers<[1], [0], [0], [1], [0, 0, 1, 1], [], []>} : vector<16x128xbf16>, vector<128x128xbf16>, vector<16x128xf32> -> vector<16x128xf32>
    %c0_3 = arith.constant 0 : index
    %c0_4 = arith.constant 0 : index
    %3 = vector.load %arg4[%c0_3, %c0_4] : memref<1x128xf32, #tpu.memory_space<vmem>>, vector<1x128xf32>
    %4 = vector.broadcast %3 : vector<1x128xf32> to vector<16x128xf32>
    %5 = arith.addf %2, %4 : vector<16x128xf32>
    %cst_5 = arith.constant 0.000000e+00 : f32
    %6 = vector.broadcast %cst_5 : f32 to vector<16x128xf32>
    %7 = arith.maximumf %5, %6 : vector<16x128xf32>
    %c0_6 = arith.constant 0 : index
    %c0_7 = arith.constant 0 : index
    %8 = vector.load %arg5[%c0_6, %c0_7] : memref<16x128xf32, #tpu.memory_space<vmem>>, vector<16x128xf32>
    tpu.vector_store %arg5[%c0_6, %c0_7], %7 {strides = array<i32>} : memref<16x128xf32, #tpu.memory_space<vmem>>, vector<16x128xf32>,
    return
  }
  func.func @transform_0(%arg0: i32, %arg1: i32) -> (i32, i32) {
    %c0_i32 = arith.constant 0 : i32
    %c0_i32_0 = arith.constant 0 : i32
    return %arg0, %c0_i32 : i32, i32
  }
  func.func @transform_1(%arg0: i32, %arg1: i32) -> (i32, i32) {
    %c0_i32 = arith.constant 0 : i32
    %c0_i32_0 = arith.constant 0 : i32
    return %c0_i32, %arg1 : i32, i32
  }
  func.func @transform_2(%arg0: i32, %arg1: i32) -> (i32, i32) {
    %c0_i32 = arith.constant 0 : i32
    %c0_i32_0 = arith.constant 0 : i32
    return %c0_i32, %arg1 : i32, i32
  }
  func.func @transform_3(%arg0: i32, %arg1: i32) -> (i32, i32) {
    %c0_i32 = arith.constant 0 : i32
    return %arg0, %arg1 : i32, i32
  }
}

</mosaic_0001>

<llo_original>
// kernel: encoder_forward.84
$region0: #{encoder_forward.84}
  #allocation0 [shape = 'u32[]', space=smem, size = 0x4, offset = 0x4, fixed_abs, tag = 'smem constant byte address 0x4 - core index']
  #allocation1 [shape = 'u32[144,128]{1,0:T(1,128)}', space=vmem, size = 0x12000, scoped, tag = 'internal scratch']
  %s0 = inlined_call_operand.vmem [shape: bf16[512,128], index: 0, kind: input, shape index: {}]
  %s1 = inlined_call_operand.vmem [shape: bf16[128,128], index: 1, kind: input, shape index: {}]
  %s2 = inlined_call_operand.vmem [shape: f32[1,128], index: 2, kind: input, shape index: {}]
  %s3 = inlined_call_operand.vmem [shape: f32[512,128], index: 3, kind: output, shape index: {}]
  %s4 = sld [smem:[#allocation0]]
  $region45: #{encoder_forward.84} parent=0
    _
  %s6 = ssub.s32 1, %s4
  %s7 = scalar_select 0, %s6, %s4
  loop: start=0, step=1, limit=4
  $region2: #{encoder_forward.84} parent=0 // loop_pre_header
    _
  $region3: #{encoder_forward.84} parent=0 // loop_header
    %s9 = sphi 0, %s13
    %p10 = scmp.ge.s32.totalorder %s9, 4
    %s16 = sphi 0, %s28
    %s17 = sphi 0, %s24
    %s18 = sphi 0, %s16
    %s19 = sphi 0, %s17
    %s20 = sphi 0, %s18
    %s21 = sphi 0, %s19
    %s31 = sphi 0, %s33
    %s34 = sphi 0, %s31
    %s35 = sphi 0, %s34
    %s51 = sphi 0, %s35
    %s57 = sphi 0, %s59
    %s60 = sphi 0, %s57
    %s61 = sphi 0, %s60
    %s77 = sphi 0, %s61
    %s83 = sphi 0, %s85
    %s86 = sphi 0, %s83
    %s87 = sphi 0, %s86
    %s103 = sphi 0, %s87
    %s111 = sphi 0, %s113
    %s114 = sphi 0, %s111
    %s115 = sphi 0, %s114
    %s131 = sphi 0, %s115
  $region4: #{encoder_forward.84} parent=0 // loop_header_branch
    %12 = sbr.rel (%p10) target = $region8
  $region5: #{encoder_forward.84} parent=0 // loop_body
    %s14 = ssub.s32 %s9, 1
    %s15 = ssub.s32 %s9, 2
    %s22 = sadd.s32 1, %s17
    %p23 = scmp.ge.s32.totalorder %s22, 1
    %s24 = scalar_select %p23, 0, %s22
    %s25 = sadd.s32 1, %s16
    %s26 = scalar_select %p23, %s25, %s16
    %p27 = scmp.ge.s32.totalorder %s26, 2
    %s28 = scalar_select %p27, 0, %s26
    %s29 = ssub.s32 %s16, %s28
    %p30 = scmp.eq.s32.totalorder %s29, 0
    %s32 = sadd.s32 %s31, 1
    %s33 = scalar_select %p30, %s31, %s32
    %p36 = pneg %p30
    %p37 = scmp.eq.s32.totalorder %s9, 1
    %p38 = por %p36, %p37
    %p39 = scmp.ne.s32.totalorder %s31, %s34
    %p40 = scmp.eq.s32.totalorder %s9, 0
    %p41 = por %p39, %p40
    %p42 = scmp.ne.s32.totalorder %s31, %s34
    %p43 = scmp.eq.s32.totalorder %s14, 1
    %p44 = por %p42, %p43
    %p45 = scmp.ne.s32.totalorder %s34, %s35
    %p46 = scmp.eq.s32.totalorder %s14, 0
    %p47 = por %p45, %p46
    %p48 = scmp.ne.s32.totalorder %s34, %s35
    %p49 = scmp.eq.s32.totalorder %s15, 1
    %p50 = por %p48, %p49
    %p52 = scmp.ne.s32.totalorder %s35, %s51
    %p53 = scmp.eq.s32.totalorder %s15, 0
    %p54 = por %p52, %p53
    %s55 = ssub.s32 %s17, %s24
    %p56 = scmp.eq.s32.totalorder %s55, 0
    %s58 = sadd.s32 %s57, 1
    %s59 = scalar_select %p56, %s57, %s58
    %p62 = pneg %p56
    %p63 = scmp.eq.s32.totalorder %s9, 1
    %p64 = por %p62, %p63
    %p65 = scmp.ne.s32.totalorder %s57, %s60
    %p66 = scmp.eq.s32.totalorder %s9, 0
    %p67 = por %p65, %p66
    %p68 = scmp.ne.s32.totalorder %s57, %s60
    %p69 = scmp.eq.s32.totalorder %s14, 1
    %p70 = por %p68, %p69
    %p71 = scmp.ne.s32.totalorder %s60, %s61
    %p72 = scmp.eq.s32.totalorder %s14, 0
    %p73 = por %p71, %p72
    %p74 = scmp.ne.s32.totalorder %s60, %s61
    %p75 = scmp.eq.s32.totalorder %s15, 1
    %p76 = por %p74, %p75
    %p78 = scmp.ne.s32.totalorder %s61, %s77
    %p79 = scmp.eq.s32.totalorder %s15, 0
    %p80 = por %p78, %p79
    %s81 = ssub.s32 %s17, %s24
    %p82 = scmp.eq.s32.totalorder %s81, 0
    %s84 = sadd.s32 %s83, 1
    %s85 = scalar_select %p82, %s83, %s84
    %p88 = pneg %p82
    %p89 = scmp.eq.s32.totalorder %s9, 1
    %p90 = por %p88, %p89
    %p91 = scmp.ne.s32.totalorder %s83, %s86
    %p92 = scmp.eq.s32.totalorder %s9, 0
    %p93 = por %p91, %p92
    %p94 = scmp.ne.s32.totalorder %s83, %s86
    %p95 = scmp.eq.s32.totalorder %s14, 1
    %p96 = por %p94, %p95
    %p97 = scmp.ne.s32.totalorder %s86, %s87
    %p98 = scmp.eq.s32.totalorder %s14, 0
    %p99 = por %p97, %p98
    %p100 = scmp.ne.s32.totalorder %s86, %s87
    %p101 = scmp.eq.s32.totalorder %s15, 1
    %p102 = por %p100, %p101
    %p104 = scmp.ne.s32.totalorder %s87, %s103
    %p105 = scmp.eq.s32.totalorder %s15, 0
    %p106 = por %p104, %p105
    %s107 = ssub.s32 %s16, %s28
    %s108 = ssub.s32 %s17, %s24
    %s109 = sor.u32 %s107, %s108
    %p110 = scmp.eq.s32.totalorder %s109, 0
    %s112 = sadd.s32 %s111, 1
    %s113 = scalar_select %p110, %s111, %s112
    %p116 = pneg %p110
    %p117 = scmp.eq.s32.totalorder %s9, 1
    %p118 = por %p116, %p117
    %p119 = scmp.ne.s32.totalorder %s111, %s114
    %p120 = scmp.eq.s32.totalorder %s9, 0
    %p121 = por %p119, %p120
    %p122 = scmp.ne.s32.totalorder %s111, %s114
    %p123 = scmp.eq.s32.totalorder %s14, 1
    %p124 = por %p122, %p123
    %p125 = scmp.ne.s32.totalorder %s114, %s115
    %p126 = scmp.eq.s32.totalorder %s14, 0
    %p127 = por %p125, %p126
    %p128 = scmp.ne.s32.totalorder %s114, %s115
    %p129 = scmp.eq.s32.totalorder %s15, 1
    %p130 = por %p128, %p129
    %p132 = scmp.ne.s32.totalorder %s115, %s131
    %p133 = scmp.eq.s32.totalorder %s15, 0
    %p134 = por %p132, %p133
    %p135 = scmp.le.s32.totalorder 1, %s9
    %p136 = scmp.lt.s32.totalorder %s9, 3
    %p137 = pnand %p135, %p136
    %p138 = pneg %p137
    // Predicated region
    $region9: #{encoder_forward.84} parent=5 // pred_check
      _
    $region10: #{encoder_forward.84} parent=5 // pred_check_branch
      %140 = sbr.rel (%p137) target = $region12
    $region11: #{encoder_forward.84} parent=5 // pred_region
      %s141 = ssub.s32 %s9, 1
      // Predicated region
      $region13: #{encoder_forward.84} parent=11 // pred_check
        %p142 = pneg %p73
      $region14: #{encoder_forward.84} parent=11 // pred_check_branch
        %144 = sbr.rel (%p142) target = $region16
      $region15: #{encoder_forward.84} parent=11 // pred_region
        %p145 = scmp.lt.s32.totalorder %s19, 0
        %s146 = scalar_select %p145, %s19, 0
        %s147 = smul.addr %s146, 4
        %s148 = scalar_lea.vmem %s1, %s147
      $region16: #{encoder_forward.84} parent=11 // pred_fallthru
        _
      // Predicated region
      $region17: #{encoder_forward.84} parent=11 // pred_check
        %p149 = pneg %p99
      $region18: #{encoder_forward.84} parent=11 // pred_check_branch
        %151 = sbr.rel (%p149) target = $region20
      $region19: #{encoder_forward.84} parent=11 // pred_region
        %p152 = scmp.lt.s32.totalorder %s19, 0
        %s153 = scalar_select %p152, %s19, 0
        %s154 = scalar_lea.vmem %s2, %s153
      $region20: #{encoder_forward.84} parent=11 // pred_fallthru
        _
    $region12: #{encoder_forward.84} parent=5 // pred_fallthru
      _
    %p155 = scmp.lt.s32.totalorder %s9, 2
    // Predicated region
    $region21: #{encoder_forward.84} parent=5 // pred_check
      %p156 = pneg %p155
    $region22: #{encoder_forward.84} parent=5 // pred_check_branch
      %158 = sbr.rel (%p156) target = $region24
    $region23: #{encoder_forward.84} parent=5 // pred_region
      // Predicated region
      $region25: #{encoder_forward.84} parent=23 // pred_check
        %p159 = pneg %p41
      $region26: #{encoder_forward.84} parent=23 // pred_check_branch
        %161 = sbr.rel (%p159) target = $region28
      $region27: #{encoder_forward.84} parent=23 // pred_region
        %s162 = smul.u32 32, %s16
        %p163 = scmp.lt.s32.totalorder %s162, 63
        %s164 = scalar_select %p163, %s162, 63
        %s165 = smul.addr %s164, 4
        %s166 = scalar_lea.vmem %s0, %s165
        %s167 = smul.u32 32, %s16
      $region28: #{encoder_forward.84} parent=23 // pred_fallthru
        _
    $region24: #{encoder_forward.84} parent=5 // pred_fallthru
      _
    %p168 = scmp.le.s32.totalorder 1, %s9
    %p169 = scmp.lt.s32.totalorder %s9, 3
    %p170 = pnand %p168, %p169
    %p171 = pneg %p170
    // Predicated region
    $region29: #{encoder_forward.84} parent=5 // pred_check
      _
    $region30: #{encoder_forward.84} parent=5 // pred_check_branch
      %173 = sbr.rel (%p170) target = $region32
    $region31: #{encoder_forward.84} parent=5 // pred_region
      %s174 = ssub.s32 %s9, 1
      %s175 = smul.u32 32, %s18
      %p176 = scmp.lt.s32.totalorder %s175, 63
      %s177 = scalar_select %p176, %s175, 63
      %s178 = smul.addr %s177, 4
      %s179 = scalar_lea.vmem %s0, %s178
      %p180 = pneg %p47
      %p181 = pneg %p44
      %p182 = scmp.lt.s32.totalorder %s19, 0
      %s183 = scalar_select %p182, %s19, 0
      %s184 = smul.addr %s183, 4
      %s185 = scalar_lea.vmem %s1, %s184
      %p186 = pneg %p73
      %p187 = pneg %p70
      %p188 = scmp.lt.s32.totalorder %s19, 0
      %s189 = scalar_select %p188, %s19, 0
      %s190 = scalar_lea.vmem %s2, %s189
      %p191 = pneg %p99
      %p192 = pneg %p96
      %p193 = pneg %p127
      %p194 = pneg %p124
      %s195 = smul.u32 32, %s18
      %p196 = scmp.lt.s32.totalorder %s195, 63
      %s197 = scalar_select %p196, %s195, 63
      %p198 = scmp.lt.s32.totalorder %s19, 0
      %s199 = scalar_select %p198, %s19, 0
      %s200 = sadd.s32 %s199, %s197
      %s201 = smul.addr %s200, 8
      %s202 = scalar_lea.vmem %s3, %s201
      %s203 = smul.u32 32, %s18
      %p204 = scmp.lt.s32.totalorder %s203, 63
      %s205 = scalar_select %p204, %s203, 63
      %s206 = smul.addr %s205, 4
      %s207 = scalar_lea.vmem %s0, %s206
      %s208 = smul.u32 32, %s18
      %p209 = scmp.lt.s32.totalorder %s19, 0
      %s210 = scalar_select %p209, %s19, 0
      %s211 = smul.addr %s210, 4
      %s212 = scalar_lea.vmem %s1, %s211
      %p213 = scmp.lt.s32.totalorder %s19, 0
      %s214 = scalar_select %p213, %s19, 0
      %s215 = scalar_lea.vmem %s2, %s214
      %s216 = smul.u32 32, %s18
      %p217 = scmp.lt.s32.totalorder %s216, 63
      %s218 = scalar_select %p217, %s216, 63
      %p219 = scmp.lt.s32.totalorder %s19, 0
      %s220 = scalar_select %p219, %s19, 0
      %s221 = sadd.s32 %s220, %s218
      %s222 = smul.addr %s221, 8
      %s223 = scalar_lea.vmem %s3, %s222
      %s224 = smul.u32 32, %s18
      %v226 = vld [vmem:[%s207] sm:$0xf]
      %v227 = vld [vmem:[%s207 + $0x4] sm:$0xf]
      %v228 = vld [vmem:[%s207 + $0x8] sm:$0xf]
      %v229 = vld [vmem:[%s207 + $0xc] sm:$0xf]
      %v230 = vld [vmem:[%s207 + $0x10] sm:$0xf]
      %v231 = vld [vmem:[%s207 + $0x14] sm:$0xf]
      %v232 = vld [vmem:[%s207 + $0x18] sm:$0xf]
      %v233 = vld [vmem:[%s207 + $0x1c] sm:$0xf]
      %v234 = vld [vmem:[%s207 + $0x20] sm:$0xf]
      %v235 = vld [vmem:[%s207 + $0x24] sm:$0xf]
      %v236 = vld [vmem:[%s207 + $0x28] sm:$0xf]
      %v237 = vld [vmem:[%s207 + $0x2c] sm:$0xf]
      %v238 = vld [vmem:[%s207 + $0x30] sm:$0xf]
      %v239 = vld [vmem:[%s207 + $0x34] sm:$0xf]
      %v240 = vld [vmem:[%s207 + $0x38] sm:$0xf]
      %v241 = vld [vmem:[%s207 + $0x3c] sm:$0xf]
      %v242 = vld [vmem:[%s207 + $0x40] sm:$0xf]
      %v243 = vld [vmem:[%s207 + $0x44] sm:$0xf]
      %v244 = vld [vmem:[%s207 + $0x48] sm:$0xf]
      %v245 = vld [vmem:[%s207 + $0x4c] sm:$0xf]
      %v246 = vld [vmem:[%s207 + $0x50] sm:$0xf]
      %v247 = vld [vmem:[%s207 + $0x54] sm:$0xf]
      %v248 = vld [vmem:[%s207 + $0x58] sm:$0xf]
      %v249 = vld [vmem:[%s207 + $0x5c] sm:$0xf]
      %v250 = vld [vmem:[%s207 + $0x60] sm:$0xf]
      %v251 = vld [vmem:[%s207 + $0x64] sm:$0xf]
      %v252 = vld [vmem:[%s207 + $0x68] sm:$0xf]
      %v253 = vld [vmem:[%s207 + $0x6c] sm:$0xf]
      %v254 = vld [vmem:[%s207 + $0x70] sm:$0xf]
      %v255 = vld [vmem:[%s207 + $0x74] sm:$0xf]
      %v256 = vld [vmem:[%s207 + $0x78] sm:$0xf]
      %v257 = vld [vmem:[%s207 + $0x7c] sm:$0xf]
      %v258 = vld [vmem:[%s212] sm:$0xf]
      %v259 = vld [vmem:[%s212 + $0x4] sm:$0xf]
      %v260 = vld [vmem:[%s212 + $0x8] sm:$0xf]
      %v261 = vld [vmem:[%s212 + $0xc] sm:$0xf]
      %v262 = vld [vmem:[%s212 + $0x10] sm:$0xf]
      %v263 = vld [vmem:[%s212 + $0x14] sm:$0xf]
      %v264 = vld [vmem:[%s212 + $0x18] sm:$0xf]
      %v265 = vld [vmem:[%s212 + $0x1c] sm:$0xf]
      %v266 = vld [vmem:[%s212 + $0x20] sm:$0xf]
      %v267 = vld [vmem:[%s212 + $0x24] sm:$0xf]
      %v268 = vld [vmem:[%s212 + $0x28] sm:$0xf]
      %v269 = vld [vmem:[%s212 + $0x2c] sm:$0xf]
      %v270 = vld [vmem:[%s212 + $0x30] sm:$0xf]
      %v271 = vld [vmem:[%s212 + $0x34] sm:$0xf]
      %v272 = vld [vmem:[%s212 + $0x38] sm:$0xf]
      %v273 = vld [vmem:[%s212 + $0x3c] sm:$0xf]
      %v274 = vld [vmem:[%s215] sm:$0x1]
      %v276 = vlaneseq
      %v277 = vshrl.u32 %v276, 7
      %v278 = vsub.s32 0, %v277
      %v279 = vrot.slane %v274, %v278
      %v313 = vunpack.c.l.b16 %v226
      %v314 = vunpack.c.l.b16 %v227
      %v315 = vunpack.c.l.b16 %v228
      %v316 = vunpack.c.l.b16 %v229
      %v317 = vunpack.c.l.b16 %v230
      %v318 = vunpack.c.l.b16 %v231
      %v319 = vunpack.c.l.b16 %v232
      %v320 = vunpack.c.l.b16 %v233
      %v321 = vunpack.c.l.b16 %v234
      %v322 = vunpack.c.l.b16 %v235
      %v323 = vunpack.c.l.b16 %v236
      %v324 = vunpack.c.l.b16 %v237
      %v325 = vunpack.c.l.b16 %v238
      %v326 = vunpack.c.l.b16 %v239
      %v327 = vunpack.c.l.b16 %v240
      %v328 = vunpack.c.l.b16 %v241
      %v329 = vunpack.c.l.b16 %v242
      %v330 = vunpack.c.l.b16 %v243
      %v331 = vunpack.c.l.b16 %v244
      %v332 = vunpack.c.l.b16 %v245
      %v333 = vunpack.c.l.b16 %v246
      %v334 = vunpack.c.l.b16 %v247
      %v335 = vunpack.c.l.b16 %v248
      %v336 = vunpack.c.l.b16 %v249
      %v337 = vunpack.c.l.b16 %v250
      %v338 = vunpack.c.l.b16 %v251
      %v339 = vunpack.c.l.b16 %v252
      %v340 = vunpack.c.l.b16 %v253
      %v341 = vunpack.c.l.b16 %v254
      %v342 = vunpack.c.l.b16 %v255
      %v343 = vunpack.c.l.b16 %v256
      %v344 = vunpack.c.l.b16 %v257
      %v345 = vpack.c.b16 %v314, %v313
      %v346 = vpack.c.b16 %v316, %v315
      %v347 = vpack.c.b16 %v318, %v317
      %v348 = vpack.c.b16 %v320, %v319
      %v349 = vpack.c.b16 %v322, %v321
      %v350 = vpack.c.b16 %v324, %v323
      %v351 = vpack.c.b16 %v326, %v325
      %v352 = vpack.c.b16 %v328, %v327
      %v353 = vpack.c.b16 %v330, %v329
      %v354 = vpack.c.b16 %v332, %v331
      %v355 = vpack.c.b16 %v334, %v333
      %v356 = vpack.c.b16 %v336, %v335
      %v357 = vpack.c.b16 %v338, %v337
      %v358 = vpack.c.b16 %v340, %v339
      %v359 = vpack.c.b16 %v342, %v341
      %v360 = vpack.c.b16 %v344, %v343
      %v393 = vunpack.c.l.b16 %v258
      %v394 = vunpack.c.l.b16 %v259
      %v395 = vunpack.c.l.b16 %v260
      %v396 = vunpack.c.l.b16 %v261
      %v397 = vunpack.c.l.b16 %v262
      %v398 = vunpack.c.l.b16 %v263
      %v399 = vunpack.c.l.b16 %v264
      %v400 = vunpack.c.l.b16 %v265
      %v401 = vunpack.c.l.b16 %v266
      %v402 = vunpack.c.l.b16 %v267
      %v403 = vunpack.c.l.b16 %v268
      %v404 = vunpack.c.l.b16 %v269
      %v405 = vunpack.c.l.b16 %v270
      %v406 = vunpack.c.l.b16 %v271
      %v407 = vunpack.c.l.b16 %v272
      %v408 = vunpack.c.l.b16 %v273
      %v409 = vpack.c.b16 %v394, %v393
      %v410 = vpack.c.b16 %v396, %v395
      %v411 = vpack.c.b16 %v398, %v397
      %v412 = vpack.c.b16 %v400, %v399
      %v413 = vpack.c.b16 %v402, %v401
      %v414 = vpack.c.b16 %v404, %v403
      %v415 = vpack.c.b16 %v406, %v405
      %v416 = vpack.c.b16 %v408, %v407
      %425 = vmatprep.subr.bf16.mxu0 0
      %426 = vmatpush1.bf16.msra.mxu0 %v409
      %427 = vmatprep.subr.bf16.mxu0 0
      %428 = vmatpush1.bf16.msra.mxu0 %v410
      %429 = vmatprep.subr.bf16.mxu0 0
      %430 = vmatpush1.bf16.msra.mxu0 %v411
      %431 = vmatprep.subr.bf16.mxu0 0
      %432 = vmatpush1.bf16.msra.mxu0 %v412
      %433 = vmatprep.subr.bf16.mxu0 0
      %434 = vmatpush1.bf16.msra.mxu0 %v413
      %435 = vmatprep.subr.bf16.mxu0 0
      %436 = vmatpush1.bf16.msra.mxu0 %v414
      %437 = vmatprep.subr.bf16.mxu0 0
      %438 = vmatpush1.bf16.msra.mxu0 %v415
      %439 = vmatprep.subr.bf16.mxu0 0
      %440 = vmatpush1.bf16.msra.mxu0 %v416
      %441 = vmatprep.subr.bf16.mxu0 0
      %442 = vmatpush1.bf16.msra.mxu0 0
      %443 = vmatprep.subr.bf16.mxu0 0
      %444 = vmatpush1.bf16.msra.mxu0 0
      %445 = vmatprep.subr.bf16.mxu0 0
      %446 = vmatpush1.bf16.msra.mxu0 0
      %447 = vmatprep.subr.bf16.mxu0 0
      %448 = vmatpush1.bf16.msra.mxu0 0
      %449 = vmatprep.subr.bf16.mxu0 0
      %450 = vmatpush1.bf16.msra.mxu0 0
      %451 = vmatprep.subr.bf16.mxu0 0
      %452 = vmatpush1.bf16.msra.mxu0 0
      %453 = vmatprep.subr.bf16.mxu0 0
      %454 = vmatpush1.bf16.msra.mxu0 0
      %455 = vmatprep.subr.bf16.mxu0 0
      %456 = vmatpush1.bf16.msra.mxu0 0
      %457 = vmatprep.mubr.bf16.mxu0 0
      %458 = vmatmul.mubr.bf16.gmra.mrb[0].mxu0 %v345
      %v459 = vpop.f32.mrb[0].mxu0
      %v460 = vadd.f32 %v279, %v459
      %v461 = vpop.f32.mrb[0].mxu0
      %v462 = vpop.f32.mrb[0].mxu0
      %v463 = vadd.f32 %v279, %v462
      %v464 = vpop.f32.mrb[0].mxu0
      %465 = vmatprep.mubr.bf16.mxu0 0
      %466 = vmatmul.mubr.bf16.gmra.mrb[0].mxu0 %v346
      %v467 = vpop.f32.mrb[0].mxu0
      %v468 = vadd.f32 %v279, %v467
      %v469 = vpop.f32.mrb[0].mxu0
      %v470 = vpop.f32.mrb[0].mxu0
      %v471 = vadd.f32 %v279, %v470
      %v472 = vpop.f32.mrb[0].mxu0
      %473 = vmatprep.mubr.bf16.mxu0 0
      %474 = vmatmul.mubr.bf16.gmra.mrb[0].mxu0 %v347
      %v475 = vpop.f32.mrb[0].mxu0
      %v476 = vadd.f32 %v279, %v475
      %v477 = vpop.f32.mrb[0].mxu0
      %v478 = vpop.f32.mrb[0].mxu0
      %v479 = vadd.f32 %v279, %v478
      %v480 = vpop.f32.mrb[0].mxu0
      %481 = vmatprep.mubr.bf16.mxu0 0
      %482 = vmatmul.mubr.bf16.gmra.mrb[0].mxu0 %v348
      %v483 = vpop.f32.mrb[0].mxu0
      %v484 = vadd.f32 %v279, %v483
      %v485 = vpop.f32.mrb[0].mxu0
      %v486 = vpop.f32.mrb[0].mxu0
      %v487 = vadd.f32 %v279, %v486
      %v488 = vpop.f32.mrb[0].mxu0
      %489 = vmatprep.mubr.bf16.mxu0 0
      %490 = vmatmul.mubr.bf16.gmra.mrb[0].mxu0 %v349
      %v491 = vpop.f32.mrb[0].mxu0
      %v492 = vadd.f32 %v279, %v491
      %v493 = vpop.f32.mrb[0].mxu0
      %v494 = vpop.f32.mrb[0].mxu0
      %v495 = vadd.f32 %v279, %v494
      %v496 = vpop.f32.mrb[0].mxu0
      %497 = vmatprep.mubr.bf16.mxu0 0
      %498 = vmatmul.mubr.bf16.gmra.mrb[0].mxu0 %v350
      %v499 = vpop.f32.mrb[0].mxu0
      %v500 = vadd.f32 %v279, %v499
      %v501 = vpop.f32.mrb[0].mxu0
      %v502 = vpop.f32.mrb[0].mxu0
      %v503 = vadd.f32 %v279, %v502
      %v504 = vpop.f32.mrb[0].mxu0
      %505 = vmatprep.mubr.bf16.mxu0 0
      %506 = vmatmul.mubr.bf16.gmra.mrb[0].mxu0 %v351
      %v507 = vpop.f32.mrb[0].mxu0
      %v508 = vadd.f32 %v279, %v507
      %v509 = vpop.f32.mrb[0].mxu0
      %v510 = vpop.f32.mrb[0].mxu0
      %v511 = vadd.f32 %v279, %v510
      %v512 = vpop.f32.mrb[0].mxu0
      %513 = vmatprep.mubr.bf16.mxu0 0
      %514 = vmatmul.mubr.bf16.gmra.mrb[0].mxu0 %v352
      %v515 = vpop.f32.mrb[0].mxu0
      %v516 = vadd.f32 %v279, %v515
      %v517 = vpop.f32.mrb[0].mxu0
      %v518 = vpop.f32.mrb[0].mxu0
      %v519 = vadd.f32 %v279, %v518
      %v520 = vpop.f32.mrb[0].mxu0
      %521 = vmatprep.mubr.bf16.mxu0 0
      %522 = vmatmul.mubr.bf16.gmra.mrb[0].mxu0 %v353
      %v523 = vpop.f32.mrb[0].mxu0
      %v524 = vadd.f32 %v279, %v523
      %v525 = vpop.f32.mrb[0].mxu0
      %v526 = vpop.f32.mrb[0].mxu0
      %v527 = vadd.f32 %v279, %v526
      %v528 = vpop.f32.mrb[0].mxu0
      %529 = vmatprep.mubr.bf16.mxu0 0
      %530 = vmatmul.mubr.bf16.gmra.mrb[0].mxu0 %v354
      %v531 = vpop.f32.mrb[0].mxu0
      %v532 = vadd.f32 %v279, %v531
      %v533 = vpop.f32.mrb[0].mxu0
      %v534 = vpop.f32.mrb[0].mxu0
      %v535 = vadd.f32 %v279, %v534
      %v536 = vpop.f32.mrb[0].mxu0
      %537 = vmatprep.mubr.bf16.mxu0 0
      %538 = vmatmul.mubr.bf16.gmra.mrb[0].mxu0 %v355
      %v539 = vpop.f32.mrb[0].mxu0
      %v540 = vadd.f32 %v279, %v539
      %v541 = vpop.f32.mrb[0].mxu0
      %v542 = vpop.f32.mrb[0].mxu0
      %v543 = vadd.f32 %v279, %v542
      %v544 = vpop.f32.mrb[0].mxu0
      %545 = vmatprep.mubr.bf16.mxu0 0
      %546 = vmatmul.mubr.bf16.gmra.mrb[0].mxu0 %v356
      %v547 = vpop.f32.mrb[0].mxu0
      %v548 = vadd.f32 %v279, %v547
      %v549 = vpop.f32.mrb[0].mxu0
      %v550 = vpop.f32.mrb[0].mxu0
      %v551 = vadd.f32 %v279, %v550
      %v552 = vpop.f32.mrb[0].mxu0
      %553 = vmatprep.mubr.bf16.mxu0 0
      %554 = vmatmul.mubr.bf16.gmra.mrb[0].mxu0 %v357
      %v555 = vpop.f32.mrb[0].mxu0
      %v556 = vadd.f32 %v279, %v555
      %v557 = vpop.f32.mrb[0].mxu0
      %v558 = vpop.f32.mrb[0].mxu0
      %v559 = vadd.f32 %v279, %v558
      %v560 = vpop.f32.mrb[0].mxu0
      %561 = vmatprep.mubr.bf16.mxu0 0
      %562 = vmatmul.mubr.bf16.gmra.mrb[0].mxu0 %v358
      %v563 = vpop.f32.mrb[0].mxu0
      %v564 = vadd.f32 %v279, %v563
      %v565 = vpop.f32.mrb[0].mxu0
      %v566 = vpop.f32.mrb[0].mxu0
      %v567 = vadd.f32 %v279, %v566
      %v568 = vpop.f32.mrb[0].mxu0
      %569 = vmatprep.mubr.bf16.mxu0 0
      %570 = vmatmul.mubr.bf16.gmra.mrb[0].mxu0 %v359
      %v571 = vpop.f32.mrb[0].mxu0
      %v572 = vadd.f32 %v279, %v571
      %v573 = vpop.f32.mrb[0].mxu0
      %v574 = vpop.f32.mrb[0].mxu0
      %v575 = vadd.f32 %v279, %v574
      %v576 = vpop.f32.mrb[0].mxu0
      %577 = vmatprep.mubr.bf16.mxu0 0
      %578 = vmatmul.mubr.bf16.gmra.mrb[0].mxu0 %v360
      %v579 = vpop.f32.mrb[0].mxu0
      %v580 = vadd.f32 %v279, %v579
      %v581 = vpop.f32.mrb[0].mxu0
      %v582 = vpop.f32.mrb[0].mxu0
      %v583 = vadd.f32 %v279, %v582
      %v584 = vpop.f32.mrb[0].mxu0
      %585 = vdwg.mxu0
      %586 = vst [vmem:[%s223] sm:$0xff] %v460
      %587 = vst [vmem:[%s223 + $0x8] sm:$0xff] %v463
      %588 = vst [vmem:[%s223 + $0x10] sm:$0xff] %v468
      %589 = vst [vmem:[%s223 + $0x18] sm:$0xff] %v471
      %590 = vst [vmem:[%s223 + $0x20] sm:$0xff] %v476
      %591 = vst [vmem:[%s223 + $0x28] sm:$0xff] %v479
      %592 = vst [vmem:[%s223 + $0x30] sm:$0xff] %v484
      %593 = vst [vmem:[%s223 + $0x38] sm:$0xff] %v487
      %594 = vst [vmem:[%s223 + $0x40] sm:$0xff] %v492
      %595 = vst [vmem:[%s223 + $0x48] sm:$0xff] %v495
      %596 = vst [vmem:[%s223 + $0x50] sm:$0xff] %v500
      %597 = vst [vmem:[%s223 + $0x58] sm:$0xff] %v503
      %598 = vst [vmem:[%s223 + $0x60] sm:$0xff] %v508
      %599 = vst [vmem:[%s223 + $0x68] sm:$0xff] %v511
      %600 = vst [vmem:[%s223 + $0x70] sm:$0xff] %v516
      %601 = vst [vmem:[%s223 + $0x78] sm:$0xff] %v519
      %602 = vst [vmem:[%s223 + $0x80] sm:$0xff] %v524
      %603 = vst [vmem:[%s223 + $0x88] sm:$0xff] %v527
      %604 = vst [vmem:[%s223 + $0x90] sm:$0xff] %v532
      %605 = vst [vmem:[%s223 + $0x98] sm:$0xff] %v535
      %606 = vst [vmem:[%s223 + $0xa0] sm:$0xff] %v540
      %607 = vst [vmem:[%s223 + $0xa8] sm:$0xff] %v543
      %608 = vst [vmem:[%s223 + $0xb0] sm:$0xff] %v548
      %609 = vst [vmem:[%s223 + $0xb8] sm:$0xff] %v551
      %610 = vst [vmem:[%s223 + $0xc0] sm:$0xff] %v556
      %611 = vst [vmem:[%s223 + $0xc8] sm:$0xff] %v559
      %612 = vst [vmem:[%s223 + $0xd0] sm:$0xff] %v564
      %613 = vst [vmem:[%s223 + $0xd8] sm:$0xff] %v567
      %614 = vst [vmem:[%s223 + $0xe0] sm:$0xff] %v572
      %615 = vst [vmem:[%s223 + $0xe8] sm:$0xff] %v575
      %616 = vst [vmem:[%s223 + $0xf0] sm:$0xff] %v580
      %617 = vst [vmem:[%s223 + $0xf8] sm:$0xff] %v583
      %s618 = smul.u32 32, %s18
      %p619 = scmp.lt.s32.totalorder %s618, 63
      %s620 = scalar_select %p619, %s618, 63
      %p621 = scmp.lt.s32.totalorder %s19, 0
      %s622 = scalar_select %p621, %s19, 0
      %s623 = sadd.s32 %s622, %s620
      %s624 = smul.addr %s623, 8
      %s625 = scalar_lea.vmem %s3, %s624
      // Predicated region
      $region33: #{encoder_forward.84} parent=31 // pred_check
        %p626 = pneg %p124
      $region34: #{encoder_forward.84} parent=31 // pred_check_branch
        %628 = sbr.rel (%p626) target = $region36
      $region35: #{encoder_forward.84} parent=31 // pred_region
        %s629 = smul.u32 32, %s18
      $region36: #{encoder_forward.84} parent=31 // pred_fallthru
        _
    $region32: #{encoder_forward.84} parent=5 // pred_fallthru
      _
    %p630 = scmp.le.s32.totalorder 2, %s9
    // Predicated region
    $region37: #{encoder_forward.84} parent=5 // pred_check
      %p631 = pneg %p630
    $region38: #{encoder_forward.84} parent=5 // pred_check_branch
      %633 = sbr.rel (%p631) target = $region40
    $region39: #{encoder_forward.84} parent=5 // pred_region
      %s634 = ssub.s32 %s9, 2
      // Predicated region
      $region41: #{encoder_forward.84} parent=39 // pred_check
        %p635 = pneg %p130
      $region42: #{encoder_forward.84} parent=39 // pred_check_branch
        %637 = sbr.rel (%p635) target = $region44
      $region43: #{encoder_forward.84} parent=39 // pred_region
        %s638 = smul.u32 32, %s20
        %p639 = scmp.lt.s32.totalorder %s638, 63
        %s640 = scalar_select %p639, %s638, 63
        %p641 = scmp.lt.s32.totalorder %s21, 0
        %s642 = scalar_select %p641, %s21, 0
        %s643 = sadd.s32 %s642, %s640
        %s644 = smul.addr %s643, 8
        %s645 = scalar_lea.vmem %s3, %s644
      $region44: #{encoder_forward.84} parent=39 // pred_fallthru
        _
    $region40: #{encoder_forward.84} parent=5 // pred_fallthru
      _
  $region6: #{encoder_forward.84} parent=0 // loop_footer
    %s13 = sadd.s32 1, %s9
  $region7: #{encoder_forward.84} parent=0 // loop_footer_branch
    %8 = sbr.rel target = $region3
  $region8: #{encoder_forward.84} parent=0 // loop_exit
    _

// kernel: encoder_forward.81
$region0: #{encoder_forward.81}
  #allocation0 [shape = 'u32[]', space=smem, size = 0x4, offset = 0x4, fixed_abs, tag = 'smem constant byte address 0x4 - core index']
  #allocation1 [shape = 'u32[144,128]{1,0:T(1,128)}', space=vmem, size = 0x12000, scoped, tag = 'internal scratch']
  %s0 = inlined_call_operand.vmem [shape: bf16[512,128], index: 0, kind: input, shape index: {}]
  %s1 = inlined_call_operand.vmem [shape: bf16[128,128], index: 1, kind: input, shape index: {}]
  %s2 = inlined_call_operand.vmem [shape: f32[1,128], index: 2, kind: input, shape index: {}]
  %s3 = inlined_call_operand.vmem [shape: f32[512,128], index: 3, kind: output, shape index: {}]
  %s4 = sld [smem:[#allocation0]]
  $region45: #{encoder_forward.81} parent=0
    _
  %s6 = ssub.s32 1, %s4
  %s7 = scalar_select 0, %s6, %s4
  loop: start=0, step=1, limit=4
  $region2: #{encoder_forward.81} parent=0 // loop_pre_header
    _
  $region3: #{encoder_forward.81} parent=0 // loop_header
    %s9 = sphi 0, %s13
    %p10 = scmp.ge.s32.totalorder %s9, 4
    %s16 = sphi 0, %s28
    %s17 = sphi 0, %s24
    %s18 = sphi 0, %s16
    %s19 = sphi 0, %s17
    %s20 = sphi 0, %s18
    %s21 = sphi 0, %s19
    %s31 = sphi 0, %s33
    %s34 = sphi 0, %s31
    %s35 = sphi 0, %s34
    %s51 = sphi 0, %s35
    %s57 = sphi 0, %s59
    %s60 = sphi 0, %s57
    %s61 = sphi 0, %s60
    %s77 = sphi 0, %s61
    %s83 = sphi 0, %s85
    %s86 = sphi 0, %s83
    %s87 = sphi 0, %s86
    %s103 = sphi 0, %s87
    %s111 = sphi 0, %s113
    %s114 = sphi 0, %s111
    %s115 = sphi 0, %s114
    %s131 = sphi 0, %s115
  $region4: #{encoder_forward.81} parent=0 // loop_header_branch
    %12 = sbr.rel (%p10) target = $region8
  $region5: #{encoder_forward.81} parent=0 // loop_body
    %s14 = ssub.s32 %s9, 1
    %s15 = ssub.s32 %s9, 2
    %s22 = sadd.s32 1, %s17
    %p23 = scmp.ge.s32.totalorder %s22, 1
    %s24 = scalar_select %p23, 0, %s22
    %s25 = sadd.s32 1, %s16
    %s26 = scalar_select %p23, %s25, %s16
    %p27 = scmp.ge.s32.totalorder %s26, 2
    %s28 = scalar_select %p27, 0, %s26
    %s29 = ssub.s32 %s16, %s28
    %p30 = scmp.eq.s32.totalorder %s29, 0
    %s32 = sadd.s32 %s31, 1
    %s33 = scalar_select %p30, %s31, %s32
    %p36 = pneg %p30
    %p37 = scmp.eq.s32.totalorder %s9, 1
    %p38 = por %p36, %p37
    %p39 = scmp.ne.s32.totalorder %s31, %s34
    %p40 = scmp.eq.s32.totalorder %s9, 0
    %p41 = por %p39, %p40
    %p42 = scmp.ne.s32.totalorder %s31, %s34
    %p43 = scmp.eq.s32.totalorder %s14, 1
    %p44 = por %p42, %p43
    %p45 = scmp.ne.s32.totalorder %s34, %s35
    %p46 = scmp.eq.s32.totalorder %s14, 0
    %p47 = por %p45, %p46
    %p48 = scmp.ne.s32.totalorder %s34, %s35
    %p49 = scmp.eq.s32.totalorder %s15, 1
    %p50 = por %p48, %p49
    %p52 = scmp.ne.s32.totalorder %s35, %s51
    %p53 = scmp.eq.s32.totalorder %s15, 0
    %p54 = por %p52, %p53
    %s55 = ssub.s32 %s17, %s24
    %p56 = scmp.eq.s32.totalorder %s55, 0
    %s58 = sadd.s32 %s57, 1
    %s59 = scalar_select %p56, %s57, %s58
    %p62 = pneg %p56
    %p63 = scmp.eq.s32.totalorder %s9, 1
    %p64 = por %p62, %p63
    %p65 = scmp.ne.s32.totalorder %s57, %s60
    %p66 = scmp.eq.s32.totalorder %s9, 0
    %p67 = por %p65, %p66
    %p68 = scmp.ne.s32.totalorder %s57, %s60
    %p69 = scmp.eq.s32.totalorder %s14, 1
    %p70 = por %p68, %p69
    %p71 = scmp.ne.s32.totalorder %s60, %s61
    %p72 = scmp.eq.s32.totalorder %s14, 0
    %p73 = por %p71, %p72
    %p74 = scmp.ne.s32.totalorder %s60, %s61
    %p75 = scmp.eq.s32.totalorder %s15, 1
    %p76 = por %p74, %p75
    %p78 = scmp.ne.s32.totalorder %s61, %s77
    %p79 = scmp.eq.s32.totalorder %s15, 0
    %p80 = por %p78, %p79
    %s81 = ssub.s32 %s17, %s24
    %p82 = scmp.eq.s32.totalorder %s81, 0
    %s84 = sadd.s32 %s83, 1
    %s85 = scalar_select %p82, %s83, %s84
    %p88 = pneg %p82
    %p89 = scmp.eq.s32.totalorder %s9, 1
    %p90 = por %p88, %p89
    %p91 = scmp.ne.s32.totalorder %s83, %s86
    %p92 = scmp.eq.s32.totalorder %s9, 0
    %p93 = por %p91, %p92
    %p94 = scmp.ne.s32.totalorder %s83, %s86
    %p95 = scmp.eq.s32.totalorder %s14, 1
    %p96 = por %p94, %p95
    %p97 = scmp.ne.s32.totalorder %s86, %s87
    %p98 = scmp.eq.s32.totalorder %s14, 0
    %p99 = por %p97, %p98
    %p100 = scmp.ne.s32.totalorder %s86, %s87
    %p101 = scmp.eq.s32.totalorder %s15, 1
    %p102 = por %p100, %p101
    %p104 = scmp.ne.s32.totalorder %s87, %s103
    %p105 = scmp.eq.s32.totalorder %s15, 0
    %p106 = por %p104, %p105
    %s107 = ssub.s32 %s16, %s28
    %s108 = ssub.s32 %s17, %s24
    %s109 = sor.u32 %s107, %s108
    %p110 = scmp.eq.s32.totalorder %s109, 0
    %s112 = sadd.s32 %s111, 1
    %s113 = scalar_select %p110, %s111, %s112
    %p116 = pneg %p110
    %p117 = scmp.eq.s32.totalorder %s9, 1
    %p118 = por %p116, %p117
    %p119 = scmp.ne.s32.totalorder %s111, %s114
    %p120 = scmp.eq.s32.totalorder %s9, 0
    %p121 = por %p119, %p120
    %p122 = scmp.ne.s32.totalorder %s111, %s114
    %p123 = scmp.eq.s32.totalorder %s14, 1
    %p124 = por %p122, %p123
    %p125 = scmp.ne.s32.totalorder %s114, %s115
    %p126 = scmp.eq.s32.totalorder %s14, 0
    %p127 = por %p125, %p126
    %p128 = scmp.ne.s32.totalorder %s114, %s115
    %p129 = scmp.eq.s32.totalorder %s15, 1
    %p130 = por %p128, %p129
    %p132 = scmp.ne.s32.totalorder %s115, %s131
    %p133 = scmp.eq.s32.totalorder %s15, 0
    %p134 = por %p132, %p133
    %p135 = scmp.le.s32.totalorder 1, %s9
    %p136 = scmp.lt.s32.totalorder %s9, 3
    %p137 = pnand %p135, %p136
    %p138 = pneg %p137
    // Predicated region
    $region9: #{encoder_forward.81} parent=5 // pred_check
      _
    $region10: #{encoder_forward.81} parent=5 // pred_check_branch
      %140 = sbr.rel (%p137) target = $region12
    $region11: #{encoder_forward.81} parent=5 // pred_region
      %s141 = ssub.s32 %s9, 1
      // Predicated region
      $region13: #{encoder_forward.81} parent=11 // pred_check
        %p142 = pneg %p73
      $region14: #{encoder_forward.81} parent=11 // pred_check_branch
        %144 = sbr.rel (%p142) target = $region16
      $region15: #{encoder_forward.81} parent=11 // pred_region
        %p145 = scmp.lt.s32.totalorder %s19, 0
        %s146 = scalar_select %p145, %s19, 0
        %s147 = smul.addr %s146, 4
        %s148 = scalar_lea.vmem %s1, %s147
      $region16: #{encoder_forward.81} parent=11 // pred_fallthru
        _
      // Predicated region
      $region17: #{encoder_forward.81} parent=11 // pred_check
        %p149 = pneg %p99
      $region18: #{encoder_forward.81} parent=11 // pred_check_branch
        %151 = sbr.rel (%p149) target = $region20
      $region19: #{encoder_forward.81} parent=11 // pred_region
        %p152 = scmp.lt.s32.totalorder %s19, 0
        %s153 = scalar_select %p152, %s19, 0
        %s154 = scalar_lea.vmem %s2, %s153
      $region20: #{encoder_forward.81} parent=11 // pred_fallthru
        _
    $region12: #{encoder_forward.81} parent=5 // pred_fallthru
      _
    %p155 = scmp.lt.s32.totalorder %s9, 2
    // Predicated region
    $region21: #{encoder_forward.81} parent=5 // pred_check
      %p156 = pneg %p155
    $region22: #{encoder_forward.81} parent=5 // pred_check_branch
      %158 = sbr.rel (%p156) target = $region24
    $region23: #{encoder_forward.81} parent=5 // pred_region
      // Predicated region
      $region25: #{encoder_forward.81} parent=23 // pred_check
        %p159 = pneg %p41
      $region26: #{encoder_forward.81} parent=23 // pred_check_branch
        %161 = sbr.rel (%p159) target = $region28
      $region27: #{encoder_forward.81} parent=23 // pred_region
        %s162 = smul.u32 32, %s16
        %p163 = scmp.lt.s32.totalorder %s162, 63
        %s164 = scalar_select %p163, %s162, 63
        %s165 = smul.addr %s164, 4
        %s166 = scalar_lea.vmem %s0, %s165
        %s167 = smul.u32 32, %s16
      $region28: #{encoder_forward.81} parent=23 // pred_fallthru
        _
    $region24: #{encoder_forward.81} parent=5 // pred_fallthru
      _
    %p168 = scmp.le.s32.totalorder 1, %s9
    %p169 = scmp.lt.s32.totalorder %s9, 3
    %p170 = pnand %p168, %p169
    %p171 = pneg %p170
    // Predicated region
    $region29: #{encoder_forward.81} parent=5 // pred_check
      _
    $region30: #{encoder_forward.81} parent=5 // pred_check_branch
      %173 = sbr.rel (%p170) target = $region32
    $region31: #{encoder_forward.81} parent=5 // pred_region
      %s174 = ssub.s32 %s9, 1
      %s175 = smul.u32 32, %s18
      %p176 = scmp.lt.s32.totalorder %s175, 63
      %s177 = scalar_select %p176, %s175, 63
      %s178 = smul.addr %s177, 4
      %s179 = scalar_lea.vmem %s0, %s178
      %p180 = pneg %p47
      %p181 = pneg %p44
      %p182 = scmp.lt.s32.totalorder %s19, 0
      %s183 = scalar_select %p182, %s19, 0
      %s184 = smul.addr %s183, 4
      %s185 = scalar_lea.vmem %s1, %s184
      %p186 = pneg %p73
      %p187 = pneg %p70
      %p188 = scmp.lt.s32.totalorder %s19, 0
      %s189 = scalar_select %p188, %s19, 0
      %s190 = scalar_lea.vmem %s2, %s189
      %p191 = pneg %p99
      %p192 = pneg %p96
      %p193 = pneg %p127
      %p194 = pneg %p124
      %s195 = smul.u32 32, %s18
      %p196 = scmp.lt.s32.totalorder %s195, 63
      %s197 = scalar_select %p196, %s195, 63
      %p198 = scmp.lt.s32.totalorder %s19, 0
      %s199 = scalar_select %p198, %s19, 0
      %s200 = sadd.s32 %s199, %s197
      %s201 = smul.addr %s200, 8
      %s202 = scalar_lea.vmem %s3, %s201
      %s203 = smul.u32 32, %s18
      %p204 = scmp.lt.s32.totalorder %s203, 63
      %s205 = scalar_select %p204, %s203, 63
      %s206 = smul.addr %s205, 4
      %s207 = scalar_lea.vmem %s0, %s206
      %s208 = smul.u32 32, %s18
      %p209 = scmp.lt.s32.totalorder %s19, 0
      %s210 = scalar_select %p209, %s19, 0
      %s211 = smul.addr %s210, 4
      %s212 = scalar_lea.vmem %s1, %s211
      %p213 = scmp.lt.s32.totalorder %s19, 0
      %s214 = scalar_select %p213, %s19, 0
      %s215 = scalar_lea.vmem %s2, %s214
      %s216 = smul.u32 32, %s18
      %p217 = scmp.lt.s32.totalorder %s216, 63
      %s218 = scalar_select %p217, %s216, 63
      %p219 = scmp.lt.s32.totalorder %s19, 0
      %s220 = scalar_select %p219, %s19, 0
      %s221 = sadd.s32 %s220, %s218
      %s222 = smul.addr %s221, 8
      %s223 = scalar_lea.vmem %s3, %s222
      %s224 = smul.u32 32, %s18
      %v226 = vld [vmem:[%s207] sm:$0xf]
      %v227 = vld [vmem:[%s207 + $0x4] sm:$0xf]
      %v228 = vld [vmem:[%s207 + $0x8] sm:$0xf]
      %v229 = vld [vmem:[%s207 + $0xc] sm:$0xf]
      %v230 = vld [vmem:[%s207 + $0x10] sm:$0xf]
      %v231 = vld [vmem:[%s207 + $0x14] sm:$0xf]
      %v232 = vld [vmem:[%s207 + $0x18] sm:$0xf]
      %v233 = vld [vmem:[%s207 + $0x1c] sm:$0xf]
      %v234 = vld [vmem:[%s207 + $0x20] sm:$0xf]
      %v235 = vld [vmem:[%s207 + $0x24] sm:$0xf]
      %v236 = vld [vmem:[%s207 + $0x28] sm:$0xf]
      %v237 = vld [vmem:[%s207 + $0x2c] sm:$0xf]
      %v238 = vld [vmem:[%s207 + $0x30] sm:$0xf]
      %v239 = vld [vmem:[%s207 + $0x34] sm:$0xf]
      %v240 = vld [vmem:[%s207 + $0x38] sm:$0xf]
      %v241 = vld [vmem:[%s207 + $0x3c] sm:$0xf]
      %v242 = vld [vmem:[%s207 + $0x40] sm:$0xf]
      %v243 = vld [vmem:[%s207 + $0x44] sm:$0xf]
      %v244 = vld [vmem:[%s207 + $0x48] sm:$0xf]
      %v245 = vld [vmem:[%s207 + $0x4c] sm:$0xf]
      %v246 = vld [vmem:[%s207 + $0x50] sm:$0xf]
      %v247 = vld [vmem:[%s207 + $0x54] sm:$0xf]
      %v248 = vld [vmem:[%s207 + $0x58] sm:$0xf]
      %v249 = vld [vmem:[%s207 + $0x5c] sm:$0xf]
      %v250 = vld [vmem:[%s207 + $0x60] sm:$0xf]
      %v251 = vld [vmem:[%s207 + $0x64] sm:$0xf]
      %v252 = vld [vmem:[%s207 + $0x68] sm:$0xf]
      %v253 = vld [vmem:[%s207 + $0x6c] sm:$0xf]
      %v254 = vld [vmem:[%s207 + $0x70] sm:$0xf]
      %v255 = vld [vmem:[%s207 + $0x74] sm:$0xf]
      %v256 = vld [vmem:[%s207 + $0x78] sm:$0xf]
      %v257 = vld [vmem:[%s207 + $0x7c] sm:$0xf]
      %v258 = vld [vmem:[%s212] sm:$0xf]
      %v259 = vld [vmem:[%s212 + $0x4] sm:$0xf]
      %v260 = vld [vmem:[%s212 + $0x8] sm:$0xf]
      %v261 = vld [vmem:[%s212 + $0xc] sm:$0xf]
      %v262 = vld [vmem:[%s212 + $0x10] sm:$0xf]
      %v263 = vld [vmem:[%s212 + $0x14] sm:$0xf]
      %v264 = vld [vmem:[%s212 + $0x18] sm:$0xf]
      %v265 = vld [vmem:[%s212 + $0x1c] sm:$0xf]
      %v266 = vld [vmem:[%s212 + $0x20] sm:$0xf]
      %v267 = vld [vmem:[%s212 + $0x24] sm:$0xf]
      %v268 = vld [vmem:[%s212 + $0x28] sm:$0xf]
      %v269 = vld [vmem:[%s212 + $0x2c] sm:$0xf]
      %v270 = vld [vmem:[%s212 + $0x30] sm:$0xf]
      %v271 = vld [vmem:[%s212 + $0x34] sm:$0xf]
      %v272 = vld [vmem:[%s212 + $0x38] sm:$0xf]
      %v273 = vld [vmem:[%s212 + $0x3c] sm:$0xf]
      %v274 = vld [vmem:[%s215] sm:$0x1]
      %v276 = vlaneseq
      %v277 = vshrl.u32 %v276, 7
      %v278 = vsub.s32 0, %v277
      %v279 = vrot.slane %v274, %v278
      %v313 = vunpack.c.l.b16 %v226
      %v314 = vunpack.c.l.b16 %v227
      %v315 = vunpack.c.l.b16 %v228
      %v316 = vunpack.c.l.b16 %v229
      %v317 = vunpack.c.l.b16 %v230
      %v318 = vunpack.c.l.b16 %v231
      %v319 = vunpack.c.l.b16 %v232
      %v320 = vunpack.c.l.b16 %v233
      %v321 = vunpack.c.l.b16 %v234
      %v322 = vunpack.c.l.b16 %v235
      %v323 = vunpack.c.l.b16 %v236
      %v324 = vunpack.c.l.b16 %v237
      %v325 = vunpack.c.l.b16 %v238
      %v326 = vunpack.c.l.b16 %v239
      %v327 = vunpack.c.l.b16 %v240
      %v328 = vunpack.c.l.b16 %v241
      %v329 = vunpack.c.l.b16 %v242
      %v330 = vunpack.c.l.b16 %v243
      %v331 = vunpack.c.l.b16 %v244
      %v332 = vunpack.c.l.b16 %v245
      %v333 = vunpack.c.l.b16 %v246
      %v334 = vunpack.c.l.b16 %v247
      %v335 = vunpack.c.l.b16 %v248
      %v336 = vunpack.c.l.b16 %v249
      %v337 = vunpack.c.l.b16 %v250
      %v338 = vunpack.c.l.b16 %v251
      %v339 = vunpack.c.l.b16 %v252
      %v340 = vunpack.c.l.b16 %v253
      %v341 = vunpack.c.l.b16 %v254
      %v342 = vunpack.c.l.b16 %v255
      %v343 = vunpack.c.l.b16 %v256
      %v344 = vunpack.c.l.b16 %v257
      %v345 = vpack.c.b16 %v314, %v313
      %v346 = vpack.c.b16 %v316, %v315
      %v347 = vpack.c.b16 %v318, %v317
      %v348 = vpack.c.b16 %v320, %v319
      %v349 = vpack.c.b16 %v322, %v321
      %v350 = vpack.c.b16 %v324, %v323
      %v351 = vpack.c.b16 %v326, %v325
      %v352 = vpack.c.b16 %v328, %v327
      %v353 = vpack.c.b16 %v330, %v329
      %v354 = vpack.c.b16 %v332, %v331
      %v355 = vpack.c.b16 %v334, %v333
      %v356 = vpack.c.b16 %v336, %v335
      %v357 = vpack.c.b16 %v338, %v337
      %v358 = vpack.c.b16 %v340, %v339
      %v359 = vpack.c.b16 %v342, %v341
      %v360 = vpack.c.b16 %v344, %v343
      %v393 = vunpack.c.l.b16 %v258
      %v394 = vunpack.c.l.b16 %v259
      %v395 = vunpack.c.l.b16 %v260
      %v396 = vunpack.c.l.b16 %v261
      %v397 = vunpack.c.l.b16 %v262
      %v398 = vunpack.c.l.b16 %v263
      %v399 = vunpack.c.l.b16 %v264
      %v400 = vunpack.c.l.b16 %v265
      %v401 = vunpack.c.l.b16 %v266
      %v402 = vunpack.c.l.b16 %v267
      %v403 = vunpack.c.l.b16 %v268
      %v404 = vunpack.c.l.b16 %v269
      %v405 = vunpack.c.l.b16 %v270
      %v406 = vunpack.c.l.b16 %v271
      %v407 = vunpack.c.l.b16 %v272
      %v408 = vunpack.c.l.b16 %v273
      %v409 = vpack.c.b16 %v394, %v393
      %v410 = vpack.c.b16 %v396, %v395
      %v411 = vpack.c.b16 %v398, %v397
      %v412 = vpack.c.b16 %v400, %v399
      %v413 = vpack.c.b16 %v402, %v401
      %v414 = vpack.c.b16 %v404, %v403
      %v415 = vpack.c.b16 %v406, %v405
      %v416 = vpack.c.b16 %v408, %v407
      %425 = vmatprep.subr.bf16.mxu0 0
      %426 = vmatpush1.bf16.msra.mxu0 %v409
      %427 = vmatprep.subr.bf16.mxu0 0
      %428 = vmatpush1.bf16.msra.mxu0 %v410
      %429 = vmatprep.subr.bf16.mxu0 0
      %430 = vmatpush1.bf16.msra.mxu0 %v411
      %431 = vmatprep.subr.bf16.mxu0 0
      %432 = vmatpush1.bf16.msra.mxu0 %v412
      %433 = vmatprep.subr.bf16.mxu0 0
      %434 = vmatpush1.bf16.msra.mxu0 %v413
      %435 = vmatprep.subr.bf16.mxu0 0
      %436 = vmatpush1.bf16.msra.mxu0 %v414
      %437 = vmatprep.subr.bf16.mxu0 0
      %438 = vmatpush1.bf16.msra.mxu0 %v415
      %439 = vmatprep.subr.bf16.mxu0 0
      %440 = vmatpush1.bf16.msra.mxu0 %v416
      %441 = vmatprep.subr.bf16.mxu0 0
      %442 = vmatpush1.bf16.msra.mxu0 0
      %443 = vmatprep.subr.bf16.mxu0 0
      %444 = vmatpush1.bf16.msra.mxu0 0
      %445 = vmatprep.subr.bf16.mxu0 0
      %446 = vmatpush1.bf16.msra.mxu0 0
      %447 = vmatprep.subr.bf16.mxu0 0
      %448 = vmatpush1.bf16.msra.mxu0 0
      %449 = vmatprep.subr.bf16.mxu0 0
      %450 = vmatpush1.bf16.msra.mxu0 0
      %451 = vmatprep.subr.bf16.mxu0 0
      %452 = vmatpush1.bf16.msra.mxu0 0
      %453 = vmatprep.subr.bf16.mxu0 0
      %454 = vmatpush1.bf16.msra.mxu0 0
      %455 = vmatprep.subr.bf16.mxu0 0
      %456 = vmatpush1.bf16.msra.mxu0 0
      %457 = vmatprep.mubr.bf16.mxu0 0
      %458 = vmatmul.mubr.bf16.gmra.mrb[0].mxu0 %v345
      %v459 = vpop.f32.mrb[0].mxu0
      %v460 = vadd.f32 %v279, %v459
      %v461 = vpop.f32.mrb[0].mxu0
      %v462 = vpop.f32.mrb[0].mxu0
      %v463 = vadd.f32 %v279, %v462
      %v464 = vpop.f32.mrb[0].mxu0
      %465 = vmatprep.mubr.bf16.mxu0 0
      %466 = vmatmul.mubr.bf16.gmra.mrb[0].mxu0 %v346
      %v467 = vpop.f32.mrb[0].mxu0
      %v468 = vadd.f32 %v279, %v467
      %v469 = vpop.f32.mrb[0].mxu0
      %v470 = vpop.f32.mrb[0].mxu0
      %v471 = vadd.f32 %v279, %v470
      %v472 = vpop.f32.mrb[0].mxu0
      %473 = vmatprep.mubr.bf16.mxu0 0
      %474 = vmatmul.mubr.bf16.gmra.mrb[0].mxu0 %v347
      %v475 = vpop.f32.mrb[0].mxu0
      %v476 = vadd.f32 %v279, %v475
      %v477 = vpop.f32.mrb[0].mxu0
      %v478 = vpop.f32.mrb[0].mxu0
      %v479 = vadd.f32 %v279, %v478
      %v480 = vpop.f32.mrb[0].mxu0
      %481 = vmatprep.mubr.bf16.mxu0 0
      %482 = vmatmul.mubr.bf16.gmra.mrb[0].mxu0 %v348
      %v483 = vpop.f32.mrb[0].mxu0
      %v484 = vadd.f32 %v279, %v483
      %v485 = vpop.f32.mrb[0].mxu0
      %v486 = vpop.f32.mrb[0].mxu0
      %v487 = vadd.f32 %v279, %v486
      %v488 = vpop.f32.mrb[0].mxu0
      %489 = vmatprep.mubr.bf16.mxu0 0
      %490 = vmatmul.mubr.bf16.gmra.mrb[0].mxu0 %v349
      %v491 = vpop.f32.mrb[0].mxu0
      %v492 = vadd.f32 %v279, %v491
      %v493 = vpop.f32.mrb[0].mxu0
      %v494 = vpop.f32.mrb[0].mxu0
      %v495 = vadd.f32 %v279, %v494
      %v496 = vpop.f32.mrb[0].mxu0
      %497 = vmatprep.mubr.bf16.mxu0 0
      %498 = vmatmul.mubr.bf16.gmra.mrb[0].mxu0 %v350
      %v499 = vpop.f32.mrb[0].mxu0
      %v500 = vadd.f32 %v279, %v499
      %v501 = vpop.f32.mrb[0].mxu0
      %v502 = vpop.f32.mrb[0].mxu0
      %v503 = vadd.f32 %v279, %v502
      %v504 = vpop.f32.mrb[0].mxu0
      %505 = vmatprep.mubr.bf16.mxu0 0
      %506 = vmatmul.mubr.bf16.gmra.mrb[0].mxu0 %v351
      %v507 = vpop.f32.mrb[0].mxu0
      %v508 = vadd.f32 %v279, %v507
      %v509 = vpop.f32.mrb[0].mxu0
      %v510 = vpop.f32.mrb[0].mxu0
      %v511 = vadd.f32 %v279, %v510
      %v512 = vpop.f32.mrb[0].mxu0
      %513 = vmatprep.mubr.bf16.mxu0 0
      %514 = vmatmul.mubr.bf16.gmra.mrb[0].mxu0 %v352
      %v515 = vpop.f32.mrb[0].mxu0
      %v516 = vadd.f32 %v279, %v515
      %v517 = vpop.f32.mrb[0].mxu0
      %v518 = vpop.f32.mrb[0].mxu0
      %v519 = vadd.f32 %v279, %v518
      %v520 = vpop.f32.mrb[0].mxu0
      %521 = vmatprep.mubr.bf16.mxu0 0
      %522 = vmatmul.mubr.bf16.gmra.mrb[0].mxu0 %v353
      %v523 = vpop.f32.mrb[0].mxu0
      %v524 = vadd.f32 %v279, %v523
      %v525 = vpop.f32.mrb[0].mxu0
      %v526 = vpop.f32.mrb[0].mxu0
      %v527 = vadd.f32 %v279, %v526
      %v528 = vpop.f32.mrb[0].mxu0
      %529 = vmatprep.mubr.bf16.mxu0 0
      %530 = vmatmul.mubr.bf16.gmra.mrb[0].mxu0 %v354
      %v531 = vpop.f32.mrb[0].mxu0
      %v532 = vadd.f32 %v279, %v531
      %v533 = vpop.f32.mrb[0].mxu0
      %v534 = vpop.f32.mrb[0].mxu0
      %v535 = vadd.f32 %v279, %v534
      %v536 = vpop.f32.mrb[0].mxu0
      %537 = vmatprep.mubr.bf16.mxu0 0
      %538 = vmatmul.mubr.bf16.gmra.mrb[0].mxu0 %v355
      %v539 = vpop.f32.mrb[0].mxu0
      %v540 = vadd.f32 %v279, %v539
      %v541 = vpop.f32.mrb[0].mxu0
      %v542 = vpop.f32.mrb[0].mxu0
      %v543 = vadd.f32 %v279, %v542
      %v544 = vpop.f32.mrb[0].mxu0
      %545 = vmatprep.mubr.bf16.mxu0 0
      %546 = vmatmul.mubr.bf16.gmra.mrb[0].mxu0 %v356
      %v547 = vpop.f32.mrb[0].mxu0
      %v548 = vadd.f32 %v279, %v547
      %v549 = vpop.f32.mrb[0].mxu0
      %v550 = vpop.f32.mrb[0].mxu0
      %v551 = vadd.f32 %v279, %v550
      %v552 = vpop.f32.mrb[0].mxu0
      %553 = vmatprep.mubr.bf16.mxu0 0
      %554 = vmatmul.mubr.bf16.gmra.mrb[0].mxu0 %v357
      %v555 = vpop.f32.mrb[0].mxu0
      %v556 = vadd.f32 %v279, %v555
      %v557 = vpop.f32.mrb[0].mxu0
      %v558 = vpop.f32.mrb[0].mxu0
      %v559 = vadd.f32 %v279, %v558
      %v560 = vpop.f32.mrb[0].mxu0
      %561 = vmatprep.mubr.bf16.mxu0 0
      %562 = vmatmul.mubr.bf16.gmra.mrb[0].mxu0 %v358
      %v563 = vpop.f32.mrb[0].mxu0
      %v564 = vadd.f32 %v279, %v563
      %v565 = vpop.f32.mrb[0].mxu0
      %v566 = vpop.f32.mrb[0].mxu0
      %v567 = vadd.f32 %v279, %v566
      %v568 = vpop.f32.mrb[0].mxu0
      %569 = vmatprep.mubr.bf16.mxu0 0
      %570 = vmatmul.mubr.bf16.gmra.mrb[0].mxu0 %v359
      %v571 = vpop.f32.mrb[0].mxu0
      %v572 = vadd.f32 %v279, %v571
      %v573 = vpop.f32.mrb[0].mxu0
      %v574 = vpop.f32.mrb[0].mxu0
      %v575 = vadd.f32 %v279, %v574
      %v576 = vpop.f32.mrb[0].mxu0
      %577 = vmatprep.mubr.bf16.mxu0 0
      %578 = vmatmul.mubr.bf16.gmra.mrb[0].mxu0 %v360
      %v579 = vpop.f32.mrb[0].mxu0
      %v580 = vadd.f32 %v279, %v579
      %v581 = vpop.f32.mrb[0].mxu0
      %v582 = vpop.f32.mrb[0].mxu0
      %v583 = vadd.f32 %v279, %v582
      %v584 = vpop.f32.mrb[0].mxu0
      %585 = vdwg.mxu0
      %vm586 = vcmp.ge.f32.partialorder %v460, 0.0
      %vm587 = vcmp.ge.f32.partialorder %v463, 0.0
      %vm588 = vcmp.ge.f32.partialorder %v468, 0.0
      %vm589 = vcmp.ge.f32.partialorder %v471, 0.0
      %vm590 = vcmp.ge.f32.partialorder %v476, 0.0
      %vm591 = vcmp.ge.f32.partialorder %v479, 0.0
      %vm592 = vcmp.ge.f32.partialorder %v484, 0.0
      %vm593 = vcmp.ge.f32.partialorder %v487, 0.0
      %vm594 = vcmp.ge.f32.partialorder %v492, 0.0
      %vm595 = vcmp.ge.f32.partialorder %v495, 0.0
      %vm596 = vcmp.ge.f32.partialorder %v500, 0.0
      %vm597 = vcmp.ge.f32.partialorder %v503, 0.0
      %vm598 = vcmp.ge.f32.partialorder %v508, 0.0
      %vm599 = vcmp.ge.f32.partialorder %v511, 0.0
      %vm600 = vcmp.ge.f32.partialorder %v516, 0.0
      %vm601 = vcmp.ge.f32.partialorder %v519, 0.0
      %vm602 = vcmp.ge.f32.partialorder %v524, 0.0
      %vm603 = vcmp.ge.f32.partialorder %v527, 0.0
      %vm604 = vcmp.ge.f32.partialorder %v532, 0.0
      %vm605 = vcmp.ge.f32.partialorder %v535, 0.0
      %vm606 = vcmp.ge.f32.partialorder %v540, 0.0
      %vm607 = vcmp.ge.f32.partialorder %v543, 0.0
      %vm608 = vcmp.ge.f32.partialorder %v548, 0.0
      %vm609 = vcmp.ge.f32.partialorder %v551, 0.0
      %vm610 = vcmp.ge.f32.partialorder %v556, 0.0
      %vm611 = vcmp.ge.f32.partialorder %v559, 0.0
      %vm612 = vcmp.ge.f32.partialorder %v564, 0.0
      %vm613 = vcmp.ge.f32.partialorder %v567, 0.0
      %vm614 = vcmp.ge.f32.partialorder %v572, 0.0
      %vm615 = vcmp.ge.f32.partialorder %v575, 0.0
      %vm616 = vcmp.ge.f32.partialorder %v580, 0.0
      %vm617 = vcmp.ge.f32.partialorder %v583, 0.0
      %v618 = vmul.f32 %v460, 0.01
      %v619 = vmul.f32 %v463, 0.01
      %v620 = vmul.f32 %v468, 0.01
      %v621 = vmul.f32 %v471, 0.01
      %v622 = vmul.f32 %v476, 0.01
      %v623 = vmul.f32 %v479, 0.01
      %v624 = vmul.f32 %v484, 0.01
      %v625 = vmul.f32 %v487, 0.01
      %v626 = vmul.f32 %v492, 0.01
      %v627 = vmul.f32 %v495, 0.01
      %v628 = vmul.f32 %v500, 0.01
      %v629 = vmul.f32 %v503, 0.01
      %v630 = vmul.f32 %v508, 0.01
      %v631 = vmul.f32 %v511, 0.01
      %v632 = vmul.f32 %v516, 0.01
      %v633 = vmul.f32 %v519, 0.01
      %v634 = vmul.f32 %v524, 0.01
      %v635 = vmul.f32 %v527, 0.01
      %v636 = vmul.f32 %v532, 0.01
      %v637 = vmul.f32 %v535, 0.01
      %v638 = vmul.f32 %v540, 0.01
      %v639 = vmul.f32 %v543, 0.01
      %v640 = vmul.f32 %v548, 0.01
      %v641 = vmul.f32 %v551, 0.01
      %v642 = vmul.f32 %v556, 0.01
      %v643 = vmul.f32 %v559, 0.01
      %v644 = vmul.f32 %v564, 0.01
      %v645 = vmul.f32 %v567, 0.01
      %v646 = vmul.f32 %v572, 0.01
      %v647 = vmul.f32 %v575, 0.01
      %v648 = vmul.f32 %v580, 0.01
      %v649 = vmul.f32 %v583, 0.01
      %v650 = vsel %vm586, %v460, %v618
      %v651 = vsel %vm587, %v463, %v619
      %v652 = vsel %vm588, %v468, %v620
      %v653 = vsel %vm589, %v471, %v621
      %v654 = vsel %vm590, %v476, %v622
      %v655 = vsel %vm591, %v479, %v623
      %v656 = vsel %vm592, %v484, %v624
      %v657 = vsel %vm593, %v487, %v625
      %v658 = vsel %vm594, %v492, %v626
      %v659 = vsel %vm595, %v495, %v627
      %v660 = vsel %vm596, %v500, %v628
      %v661 = vsel %vm597, %v503, %v629
      %v662 = vsel %vm598, %v508, %v630
      %v663 = vsel %vm599, %v511, %v631
      %v664 = vsel %vm600, %v516, %v632
      %v665 = vsel %vm601, %v519, %v633
      %v666 = vsel %vm602, %v524, %v634
      %v667 = vsel %vm603, %v527, %v635
      %v668 = vsel %vm604, %v532, %v636
      %v669 = vsel %vm605, %v535, %v637
      %v670 = vsel %vm606, %v540, %v638
      %v671 = vsel %vm607, %v543, %v639
      %v672 = vsel %vm608, %v548, %v640
      %v673 = vsel %vm609, %v551, %v641
      %v674 = vsel %vm610, %v556, %v642
      %v675 = vsel %vm611, %v559, %v643
      %v676 = vsel %vm612, %v564, %v644
      %v677 = vsel %vm613, %v567, %v645
      %v678 = vsel %vm614, %v572, %v646
      %v679 = vsel %vm615, %v575, %v647
      %v680 = vsel %vm616, %v580, %v648
      %v681 = vsel %vm617, %v583, %v649
      %682 = vst [vmem:[%s223] sm:$0xff] %v650
      %683 = vst [vmem:[%s223 + $0x8] sm:$0xff] %v651
      %684 = vst [vmem:[%s223 + $0x10] sm:$0xff] %v652
      %685 = vst [vmem:[%s223 + $0x18] sm:$0xff] %v653
      %686 = vst [vmem:[%s223 + $0x20] sm:$0xff] %v654
      %687 = vst [vmem:[%s223 + $0x28] sm:$0xff] %v655
      %688 = vst [vmem:[%s223 + $0x30] sm:$0xff] %v656
      %689 = vst [vmem:[%s223 + $0x38] sm:$0xff] %v657
      %690 = vst [vmem:[%s223 + $0x40] sm:$0xff] %v658
      %691 = vst [vmem:[%s223 + $0x48] sm:$0xff] %v659
      %692 = vst [vmem:[%s223 + $0x50] sm:$0xff] %v660
      %693 = vst [vmem:[%s223 + $0x58] sm:$0xff] %v661
      %694 = vst [vmem:[%s223 + $0x60] sm:$0xff] %v662
      %695 = vst [vmem:[%s223 + $0x68] sm:$0xff] %v663
      %696 = vst [vmem:[%s223 + $0x70] sm:$0xff] %v664
      %697 = vst [vmem:[%s223 + $0x78] sm:$0xff] %v665
      %698 = vst [vmem:[%s223 + $0x80] sm:$0xff] %v666
      %699 = vst [vmem:[%s223 + $0x88] sm:$0xff] %v667
      %700 = vst [vmem:[%s223 + $0x90] sm:$0xff] %v668
      %701 = vst [vmem:[%s223 + $0x98] sm:$0xff] %v669
      %702 = vst [vmem:[%s223 + $0xa0] sm:$0xff] %v670
      %703 = vst [vmem:[%s223 + $0xa8] sm:$0xff] %v671
      %704 = vst [vmem:[%s223 + $0xb0] sm:$0xff] %v672
      %705 = vst [vmem:[%s223 + $0xb8] sm:$0xff] %v673
      %706 = vst [vmem:[%s223 + $0xc0] sm:$0xff] %v674
      %707 = vst [vmem:[%s223 + $0xc8] sm:$0xff] %v675
      %708 = vst [vmem:[%s223 + $0xd0] sm:$0xff] %v676
      %709 = vst [vmem:[%s223 + $0xd8] sm:$0xff] %v677
      %710 = vst [vmem:[%s223 + $0xe0] sm:$0xff] %v678
      %711 = vst [vmem:[%s223 + $0xe8] sm:$0xff] %v679
      %712 = vst [vmem:[%s223 + $0xf0] sm:$0xff] %v680
      %713 = vst [vmem:[%s223 + $0xf8] sm:$0xff] %v681
      %s714 = smul.u32 32, %s18
      %p715 = scmp.lt.s32.totalorder %s714, 63
      %s716 = scalar_select %p715, %s714, 63
      %p717 = scmp.lt.s32.totalorder %s19, 0
      %s718 = scalar_select %p717, %s19, 0
      %s719 = sadd.s32 %s718, %s716
      %s720 = smul.addr %s719, 8
      %s721 = scalar_lea.vmem %s3, %s720
      // Predicated region
      $region33: #{encoder_forward.81} parent=31 // pred_check
        %p722 = pneg %p124
      $region34: #{encoder_forward.81} parent=31 // pred_check_branch
        %724 = sbr.rel (%p722) target = $region36
      $region35: #{encoder_forward.81} parent=31 // pred_region
        %s725 = smul.u32 32, %s18
      $region36: #{encoder_forward.81} parent=31 // pred_fallthru
        _
    $region32: #{encoder_forward.81} parent=5 // pred_fallthru
      _
    %p726 = scmp.le.s32.totalorder 2, %s9
    // Predicated region
    $region37: #{encoder_forward.81} parent=5 // pred_check
      %p727 = pneg %p726
    $region38: #{encoder_forward.81} parent=5 // pred_check_branch
      %729 = sbr.rel (%p727) target = $region40
    $region39: #{encoder_forward.81} parent=5 // pred_region
      %s730 = ssub.s32 %s9, 2
      // Predicated region
      $region41: #{encoder_forward.81} parent=39 // pred_check
        %p731 = pneg %p130
      $region42: #{encoder_forward.81} parent=39 // pred_check_branch
        %733 = sbr.rel (%p731) target = $region44
      $region43: #{encoder_forward.81} parent=39 // pred_region
        %s734 = smul.u32 32, %s20
        %p735 = scmp.lt.s32.totalorder %s734, 63
        %s736 = scalar_select %p735, %s734, 63
        %p737 = scmp.lt.s32.totalorder %s21, 0
        %s738 = scalar_select %p737, %s21, 0
        %s739 = sadd.s32 %s738, %s736
        %s740 = smul.addr %s739, 8
        %s741 = scalar_lea.vmem %s3, %s740
      $region44: #{encoder_forward.81} parent=39 // pred_fallthru
        _
    $region40: #{encoder_forward.81} parent=5 // pred_fallthru
      _
  $region6: #{encoder_forward.81} parent=0 // loop_footer
    %s13 = sadd.s32 1, %s9
  $region7: #{encoder_forward.81} parent=0 // loop_footer_branch
    %8 = sbr.rel target = $region3
  $region8: #{encoder_forward.81} parent=0 // loop_exit
    _

// kernel: encoder_forward.85
$region0: #{encoder_forward.85}
  #allocation0 [shape = 'u32[]', space=smem, size = 0x4, offset = 0x4, fixed_abs, tag = 'smem constant byte address 0x4 - core index']
  #allocation1 [shape = 'u32[144,128]{1,0:T(1,128)}', space=vmem, size = 0x12000, scoped, tag = 'internal scratch']
  %s0 = inlined_call_operand.vmem [shape: f32[8,512], index: 0, kind: input, shape index: {}]
  %s1 = inlined_call_operand.vmem [shape: f32[8,512], index: 1, kind: input, shape index: {}]
  %s2 = inlined_call_operand.vmem [shape: f32[8,512], index: 2, kind: output, shape index: {}]
  %s3 = sld [smem:[#allocation0]]
  $region18: #{encoder_forward.85} parent=0
    _
  %s5 = ssub.s32 1, %s3
  %s6 = scalar_select 0, %s5, %s3
  // Predicated region
  $region2: #{encoder_forward.85} parent=0 // pred_check
    _
  $region3: #{encoder_forward.85} parent=0 // pred_check_branch
    %8 = sbr.rel (0) target = $region5
  $region4: #{encoder_forward.85} parent=0 // pred_region
    _
  $region5: #{encoder_forward.85} parent=0 // pred_fallthru
    _
  // Predicated region
  $region6: #{encoder_forward.85} parent=0 // pred_check
    _
  $region7: #{encoder_forward.85} parent=0 // pred_check_branch
    %10 = sbr.rel (0) target = $region9
  $region8: #{encoder_forward.85} parent=0 // pred_region
    _
  $region9: #{encoder_forward.85} parent=0 // pred_fallthru
    _
  %v11 = vld [vmem:[%s0] sm:$0xff]
  %v12 = vld [vmem:[%s0 + $0x8] sm:$0xff]
  %v13 = vld [vmem:[%s0 + $0x10] sm:$0xff]
  %v14 = vld [vmem:[%s0 + $0x18] sm:$0xff]
  %v15 = vld [vmem:[%s1] sm:$0xff]
  %v16 = vld [vmem:[%s1 + $0x8] sm:$0xff]
  %v17 = vld [vmem:[%s1 + $0x10] sm:$0xff]
  %v18 = vld [vmem:[%s1 + $0x18] sm:$0xff]
  %v19 = vadd.f32 %v11, %v15
  %v20 = vadd.f32 %v12, %v16
  %v21 = vadd.f32 %v13, %v17
  %v22 = vadd.f32 %v14, %v18
  %23 = vst [vmem:[%s2] sm:$0xff] %v19
  %24 = vst [vmem:[%s2 + $0x8] sm:$0xff] %v20
  %25 = vst [vmem:[%s2 + $0x10] sm:$0xff] %v21
  %26 = vst [vmem:[%s2 + $0x18] sm:$0xff] %v22
  // Predicated region
  $region10: #{encoder_forward.85} parent=0 // pred_check
    _
  $region11: #{encoder_forward.85} parent=0 // pred_check_branch
    %28 = sbr.rel (0) target = $region13
  $region12: #{encoder_forward.85} parent=0 // pred_region
    _
  $region13: #{encoder_forward.85} parent=0 // pred_fallthru
    _
  // Predicated region
  $region14: #{encoder_forward.85} parent=0 // pred_check
    _
  $region15: #{encoder_forward.85} parent=0 // pred_check_branch
    %30 = sbr.rel (0) target = $region17
  $region16: #{encoder_forward.85} parent=0 // pred_region
    _
  $region17: #{encoder_forward.85} parent=0 // pred_fallthru
    _

// kernel: encoder_forward.83
$region0: #{encoder_forward.83}
  #allocation0 [shape = 'u32[]', space=smem, size = 0x4, offset = 0x4, fixed_abs, tag = 'smem constant byte address 0x4 - core index']
  #allocation1 [shape = 'u32[144,128]{1,0:T(1,128)}', space=vmem, size = 0x12000, scoped, tag = 'internal scratch']
  %s0 = inlined_call_operand.vmem [shape: f32[512,128], index: 0, kind: input, shape index: {}]
  %s1 = inlined_call_operand.vmem [shape: f32[128,128], index: 1, kind: input, shape index: {}]
  %s2 = inlined_call_operand.vmem [shape: f32[1,128], index: 2, kind: input, shape index: {}]
  %s3 = inlined_call_operand.vmem [shape: f32[512,128], index: 3, kind: output, shape index: {}]
  %s4 = sld [smem:[#allocation0]]
  $region45: #{encoder_forward.83} parent=0
    _
  %s6 = ssub.s32 1, %s4
  %s7 = scalar_select 0, %s6, %s4
  loop: start=0, step=1, limit=4
  $region2: #{encoder_forward.83} parent=0 // loop_pre_header
    _
  $region3: #{encoder_forward.83} parent=0 // loop_header
    %s9 = sphi 0, %s13
    %p10 = scmp.ge.s32.totalorder %s9, 4
    %s19 = sphi 0, %s21
    %s22 = sphi 0, %s19
    %s23 = sphi 0, %s22
    %s39 = sphi 0, %s23
    %s43 = sphi 0, %s43
    %s45 = sphi 0, %s43
    %s46 = sphi 0, %s45
    %s60 = sphi 0, %s46
    %s64 = sphi 0, %s64
    %s66 = sphi 0, %s64
    %s67 = sphi 0, %s66
    %s81 = sphi 0, %s67
    %s87 = sphi 0, %s89
    %s90 = sphi 0, %s87
    %s91 = sphi 0, %s90
    %s107 = sphi 0, %s91
  $region4: #{encoder_forward.83} parent=0 // loop_header_branch
    %12 = sbr.rel (%p10) target = $region8
  $region5: #{encoder_forward.83} parent=0 // loop_body
    %s14 = ssub.s32 %s9, 1
    %s15 = ssub.s32 %s9, 2
    %s16 = sadd.s32 %s9, 1
    %s17 = ssub.s32 %s9, %s16
    %p18 = scmp.eq.s32.totalorder %s17, 0
    %s20 = sadd.s32 %s19, 1
    %s21 = scalar_select %p18, %s19, %s20
    %p24 = pneg %p18
    %p25 = scmp.eq.s32.totalorder %s9, 1
    %p26 = por %p24, %p25
    %p27 = scmp.ne.s32.totalorder %s19, %s22
    %p28 = scmp.eq.s32.totalorder %s9, 0
    %p29 = por %p27, %p28
    %p30 = scmp.ne.s32.totalorder %s19, %s22
    %p31 = scmp.eq.s32.totalorder %s14, 1
    %p32 = por %p30, %p31
    %p33 = scmp.ne.s32.totalorder %s22, %s23
    %p34 = scmp.eq.s32.totalorder %s14, 0
    %p35 = por %p33, %p34
    %p36 = scmp.ne.s32.totalorder %s22, %s23
    %p37 = scmp.eq.s32.totalorder %s15, 1
    %p38 = por %p36, %p37
    %p40 = scmp.ne.s32.totalorder %s23, %s39
    %p41 = scmp.eq.s32.totalorder %s15, 0
    %p42 = por %p40, %p41
    %s44 = sadd.s32 %s43, 1
    %p47 = scmp.eq.s32.totalorder %s9, 1
    %p48 = scmp.ne.s32.totalorder %s43, %s45
    %p49 = scmp.eq.s32.totalorder %s9, 0
    %p50 = por %p48, %p49
    %p51 = scmp.ne.s32.totalorder %s43, %s45
    %p52 = scmp.eq.s32.totalorder %s14, 1
    %p53 = por %p51, %p52
    %p54 = scmp.ne.s32.totalorder %s45, %s46
    %p55 = scmp.eq.s32.totalorder %s14, 0
    %p56 = por %p54, %p55
    %p57 = scmp.ne.s32.totalorder %s45, %s46
    %p58 = scmp.eq.s32.totalorder %s15, 1
    %p59 = por %p57, %p58
    %p61 = scmp.ne.s32.totalorder %s46, %s60
    %p62 = scmp.eq.s32.totalorder %s15, 0
    %p63 = por %p61, %p62
    %s65 = sadd.s32 %s64, 1
    %p68 = scmp.eq.s32.totalorder %s9, 1
    %p69 = scmp.ne.s32.totalorder %s64, %s66
    %p70 = scmp.eq.s32.totalorder %s9, 0
    %p71 = por %p69, %p70
    %p72 = scmp.ne.s32.totalorder %s64, %s66
    %p73 = scmp.eq.s32.totalorder %s14, 1
    %p74 = por %p72, %p73
    %p75 = scmp.ne.s32.totalorder %s66, %s67
    %p76 = scmp.eq.s32.totalorder %s14, 0
    %p77 = por %p75, %p76
    %p78 = scmp.ne.s32.totalorder %s66, %s67
    %p79 = scmp.eq.s32.totalorder %s15, 1
    %p80 = por %p78, %p79
    %p82 = scmp.ne.s32.totalorder %s67, %s81
    %p83 = scmp.eq.s32.totalorder %s15, 0
    %p84 = por %p82, %p83
    %s85 = ssub.s32 %s9, %s16
    %p86 = scmp.eq.s32.totalorder %s85, 0
    %s88 = sadd.s32 %s87, 1
    %s89 = scalar_select %p86, %s87, %s88
    %p92 = pneg %p86
    %p93 = scmp.eq.s32.totalorder %s9, 1
    %p94 = por %p92, %p93
    %p95 = scmp.ne.s32.totalorder %s87, %s90
    %p96 = scmp.eq.s32.totalorder %s9, 0
    %p97 = por %p95, %p96
    %p98 = scmp.ne.s32.totalorder %s87, %s90
    %p99 = scmp.eq.s32.totalorder %s14, 1
    %p100 = por %p98, %p99
    %p101 = scmp.ne.s32.totalorder %s90, %s91
    %p102 = scmp.eq.s32.totalorder %s14, 0
    %p103 = por %p101, %p102
    %p104 = scmp.ne.s32.totalorder %s90, %s91
    %p105 = scmp.eq.s32.totalorder %s15, 1
    %p106 = por %p104, %p105
    %p108 = scmp.ne.s32.totalorder %s91, %s107
    %p109 = scmp.eq.s32.totalorder %s15, 0
    %p110 = por %p108, %p109
    %p111 = scmp.le.s32.totalorder 1, %s9
    %p112 = scmp.lt.s32.totalorder %s9, 3
    %p113 = pnand %p111, %p112
    %p114 = pneg %p113
    // Predicated region
    $region9: #{encoder_forward.83} parent=5 // pred_check
      _
    $region10: #{encoder_forward.83} parent=5 // pred_check_branch
      %116 = sbr.rel (%p113) target = $region12
    $region11: #{encoder_forward.83} parent=5 // pred_region
      %s117 = ssub.s32 %s9, 1
      // Predicated region
      $region13: #{encoder_forward.83} parent=11 // pred_check
        %p118 = pneg %p56
      $region14: #{encoder_forward.83} parent=11 // pred_check_branch
        %120 = sbr.rel (%p118) target = $region16
      $region15: #{encoder_forward.83} parent=11 // pred_region
        _
      $region16: #{encoder_forward.83} parent=11 // pred_fallthru
        _
      // Predicated region
      $region17: #{encoder_forward.83} parent=11 // pred_check
        %p121 = pneg %p77
      $region18: #{encoder_forward.83} parent=11 // pred_check_branch
        %123 = sbr.rel (%p121) target = $region20
      $region19: #{encoder_forward.83} parent=11 // pred_region
        _
      $region20: #{encoder_forward.83} parent=11 // pred_fallthru
        _
    $region12: #{encoder_forward.83} parent=5 // pred_fallthru
      _
    %p124 = scmp.lt.s32.totalorder %s9, 2
    // Predicated region
    $region21: #{encoder_forward.83} parent=5 // pred_check
      %p125 = pneg %p124
    $region22: #{encoder_forward.83} parent=5 // pred_check_branch
      %127 = sbr.rel (%p125) target = $region24
    $region23: #{encoder_forward.83} parent=5 // pred_region
      // Predicated region
      $region25: #{encoder_forward.83} parent=23 // pred_check
        %p128 = pneg %p29
      $region26: #{encoder_forward.83} parent=23 // pred_check_branch
        %130 = sbr.rel (%p128) target = $region28
      $region27: #{encoder_forward.83} parent=23 // pred_region
        %s131 = smul.u32 32, %s9
        %p132 = scmp.lt.s32.totalorder %s131, 63
        %s133 = scalar_select %p132, %s131, 63
        %s134 = smul.addr %s133, 8
        %s135 = scalar_lea.vmem %s0, %s134
        %s136 = smul.u32 32, %s9
      $region28: #{encoder_forward.83} parent=23 // pred_fallthru
        _
    $region24: #{encoder_forward.83} parent=5 // pred_fallthru
      _
    %p137 = scmp.le.s32.totalorder 1, %s9
    %p138 = scmp.lt.s32.totalorder %s9, 3
    %p139 = pnand %p137, %p138
    %p140 = pneg %p139
    // Predicated region
    $region29: #{encoder_forward.83} parent=5 // pred_check
      _
    $region30: #{encoder_forward.83} parent=5 // pred_check_branch
      %142 = sbr.rel (%p139) target = $region32
    $region31: #{encoder_forward.83} parent=5 // pred_region
      %s143 = ssub.s32 %s9, 1
      %s144 = smul.u32 32, %s14
      %p145 = scmp.lt.s32.totalorder %s144, 63
      %s146 = scalar_select %p145, %s144, 63
      %s147 = smul.addr %s146, 8
      %s148 = scalar_lea.vmem %s0, %s147
      %p149 = pneg %p35
      %p150 = pneg %p32
      %p151 = pneg %p56
      %p152 = pneg %p53
      %p153 = pneg %p77
      %p154 = pneg %p74
      %p155 = pneg %p103
      %p156 = pneg %p100
      %s157 = smul.u32 32, %s14
      %p158 = scmp.lt.s32.totalorder %s157, 63
      %s159 = scalar_select %p158, %s157, 63
      %s160 = smul.addr %s159, 8
      %s161 = scalar_lea.vmem %s3, %s160
      %s162 = smul.u32 32, %s14
      %p163 = scmp.lt.s32.totalorder %s162, 63
      %s164 = scalar_select %p163, %s162, 63
      %s165 = smul.addr %s164, 8
      %s166 = scalar_lea.vmem %s0, %s165
      %s167 = smul.u32 32, %s14
      %s168 = smul.u32 32, %s14
      %p169 = scmp.lt.s32.totalorder %s168, 63
      %s170 = scalar_select %p169, %s168, 63
      %s171 = smul.addr %s170, 8
      %s172 = scalar_lea.vmem %s3, %s171
      %s173 = smul.u32 32, %s14
      %v174 = vld [vmem:[%s166] sm:$0xff]
      %v175 = vld [vmem:[%s166 + $0x8] sm:$0xff]
      %v176 = vld [vmem:[%s166 + $0x10] sm:$0xff]
      %v177 = vld [vmem:[%s166 + $0x18] sm:$0xff]
      %v178 = vld [vmem:[%s166 + $0x20] sm:$0xff]
      %v179 = vld [vmem:[%s166 + $0x28] sm:$0xff]
      %v180 = vld [vmem:[%s166 + $0x30] sm:$0xff]
      %v181 = vld [vmem:[%s166 + $0x38] sm:$0xff]
      %v182 = vld [vmem:[%s166 + $0x40] sm:$0xff]
      %v183 = vld [vmem:[%s166 + $0x48] sm:$0xff]
      %v184 = vld [vmem:[%s166 + $0x50] sm:$0xff]
      %v185 = vld [vmem:[%s166 + $0x58] sm:$0xff]
      %v186 = vld [vmem:[%s166 + $0x60] sm:$0xff]
      %v187 = vld [vmem:[%s166 + $0x68] sm:$0xff]
      %v188 = vld [vmem:[%s166 + $0x70] sm:$0xff]
      %v189 = vld [vmem:[%s166 + $0x78] sm:$0xff]
      %v190 = vld [vmem:[%s166 + $0x80] sm:$0xff]
      %v191 = vld [vmem:[%s166 + $0x88] sm:$0xff]
      %v192 = vld [vmem:[%s166 + $0x90] sm:$0xff]
      %v193 = vld [vmem:[%s166 + $0x98] sm:$0xff]
      %v194 = vld [vmem:[%s166 + $0xa0] sm:$0xff]
      %v195 = vld [vmem:[%s166 + $0xa8] sm:$0xff]
      %v196 = vld [vmem:[%s166 + $0xb0] sm:$0xff]
      %v197 = vld [vmem:[%s166 + $0xb8] sm:$0xff]
      %v198 = vld [vmem:[%s166 + $0xc0] sm:$0xff]
      %v199 = vld [vmem:[%s166 + $0xc8] sm:$0xff]
      %v200 = vld [vmem:[%s166 + $0xd0] sm:$0xff]
      %v201 = vld [vmem:[%s166 + $0xd8] sm:$0xff]
      %v202 = vld [vmem:[%s166 + $0xe0] sm:$0xff]
      %v203 = vld [vmem:[%s166 + $0xe8] sm:$0xff]
      %v204 = vld [vmem:[%s166 + $0xf0] sm:$0xff]
      %v205 = vld [vmem:[%s166 + $0xf8] sm:$0xff]
      %v206 = vmul.f32 %v174, %v174
      %v207 = vmul.f32 %v175, %v175
      %v208 = vmul.f32 %v176, %v176
      %v209 = vmul.f32 %v177, %v177
      %v210 = vmul.f32 %v178, %v178
      %v211 = vmul.f32 %v179, %v179
      %v212 = vmul.f32 %v180, %v180
      %v213 = vmul.f32 %v181, %v181
      %v214 = vmul.f32 %v182, %v182
      %v215 = vmul.f32 %v183, %v183
      %v216 = vmul.f32 %v184, %v184
      %v217 = vmul.f32 %v185, %v185
      %v218 = vmul.f32 %v186, %v186
      %v219 = vmul.f32 %v187, %v187
      %v220 = vmul.f32 %v188, %v188
      %v221 = vmul.f32 %v189, %v189
      %v222 = vmul.f32 %v190, %v190
      %v223 = vmul.f32 %v191, %v191
      %v224 = vmul.f32 %v192, %v192
      %v225 = vmul.f32 %v193, %v193
      %v226 = vmul.f32 %v194, %v194
      %v227 = vmul.f32 %v195, %v195
      %v228 = vmul.f32 %v196, %v196
      %v229 = vmul.f32 %v197, %v197
      %v230 = vmul.f32 %v198, %v198
      %v231 = vmul.f32 %v199, %v199
      %v232 = vmul.f32 %v200, %v200
      %v233 = vmul.f32 %v201, %v201
      %v234 = vmul.f32 %v202, %v202
      %v235 = vmul.f32 %v203, %v203
      %v236 = vmul.f32 %v204, %v204
      %v237 = vmul.f32 %v205, %v205
      %v238 = vld [vmem:[%s1] sm:$0xff]
      %v239 = vld [vmem:[%s1 + $0x8] sm:$0xff]
      %v240 = vld [vmem:[%s1 + $0x10] sm:$0xff]
      %v241 = vld [vmem:[%s1 + $0x18] sm:$0xff]
      %v242 = vld [vmem:[%s1 + $0x20] sm:$0xff]
      %v243 = vld [vmem:[%s1 + $0x28] sm:$0xff]
      %v244 = vld [vmem:[%s1 + $0x30] sm:$0xff]
      %v245 = vld [vmem:[%s1 + $0x38] sm:$0xff]
      %v246 = vld [vmem:[%s1 + $0x40] sm:$0xff]
      %v247 = vld [vmem:[%s1 + $0x48] sm:$0xff]
      %v248 = vld [vmem:[%s1 + $0x50] sm:$0xff]
      %v249 = vld [vmem:[%s1 + $0x58] sm:$0xff]
      %v250 = vld [vmem:[%s1 + $0x60] sm:$0xff]
      %v251 = vld [vmem:[%s1 + $0x68] sm:$0xff]
      %v252 = vld [vmem:[%s1 + $0x70] sm:$0xff]
      %v253 = vld [vmem:[%s1 + $0x78] sm:$0xff]
      %v254 = vld [vmem:[%s2] sm:$0x1]
      %v256 = vlaneseq
      %v257 = vshrl.u32 %v256, 7
      %v258 = vsub.s32 0, %v257
      %v259 = vrot.slane %v254, %v258
      %261 = vmatprep.subr.mxu0 0.0
      %262 = vmatpush1.msra.mxu0 %v238
      %263 = vmatprep.subr.mxu0 0.0
      %264 = vmatpush1.msra.mxu0 %v239
      %265 = vmatprep.subr.mxu0 0.0
      %266 = vmatpush1.msra.mxu0 %v240
      %267 = vmatprep.subr.mxu0 0.0
      %268 = vmatpush1.msra.mxu0 %v241
      %269 = vmatprep.subr.mxu0 0.0
      %270 = vmatpush1.msra.mxu0 %v242
      %271 = vmatprep.subr.mxu0 0.0
      %272 = vmatpush1.msra.mxu0 %v243
      %273 = vmatprep.subr.mxu0 0.0
      %274 = vmatpush1.msra.mxu0 %v244
      %275 = vmatprep.subr.mxu0 0.0
      %276 = vmatpush1.msra.mxu0 %v245
      %277 = vmatprep.subr.mxu0 0.0
      %278 = vmatpush1.msra.mxu0 %v246
      %279 = vmatprep.subr.mxu0 0.0
      %280 = vmatpush1.msra.mxu0 %v247
      %281 = vmatprep.subr.mxu0 0.0
      %282 = vmatpush1.msra.mxu0 %v248
      %283 = vmatprep.subr.mxu0 0.0
      %284 = vmatpush1.msra.mxu0 %v249
      %285 = vmatprep.subr.mxu0 0.0
      %286 = vmatpush1.msra.mxu0 %v250
      %287 = vmatprep.subr.mxu0 0.0
      %288 = vmatpush1.msra.mxu0 %v251
      %289 = vmatprep.subr.mxu0 0.0
      %290 = vmatpush1.msra.mxu0 %v252
      %291 = vmatprep.subr.mxu0 0.0
      %292 = vmatpush1.msra.mxu0 %v253
      %293 = vmatprep.subr.mxu0 0.0
      %294 = vmatpush1.msra.mxu0 0.0
      %295 = vmatprep.subr.mxu0 0.0
      %296 = vmatpush1.msra.mxu0 0.0
      %297 = vmatprep.subr.mxu0 0.0
      %298 = vmatpush1.msra.mxu0 0.0
      %299 = vmatprep.subr.mxu0 0.0
      %300 = vmatpush1.msra.mxu0 0.0
      %301 = vmatprep.subr.mxu0 0.0
      %302 = vmatpush1.msra.mxu0 0.0
      %303 = vmatprep.subr.mxu0 0.0
      %304 = vmatpush1.msra.mxu0 0.0
      %305 = vmatprep.subr.mxu0 0.0
      %306 = vmatpush1.msra.mxu0 0.0
      %307 = vmatprep.subr.mxu0 0.0
      %308 = vmatpush1.msra.mxu0 0.0
      %309 = vmatprep.subr.mxu0 0.0
      %310 = vmatpush1.msra.mxu0 0.0
      %311 = vmatprep.subr.mxu0 0.0
      %312 = vmatpush1.msra.mxu0 0.0
      %313 = vmatprep.subr.mxu0 0.0
      %314 = vmatpush1.msra.mxu0 0.0
      %315 = vmatprep.subr.mxu0 0.0
      %316 = vmatpush1.msra.mxu0 0.0
      %317 = vmatprep.subr.mxu0 0.0
      %318 = vmatpush1.msra.mxu0 0.0
      %319 = vmatprep.subr.mxu0 0.0
      %320 = vmatpush1.msra.mxu0 0.0
      %321 = vmatprep.subr.mxu0 0.0
      %322 = vmatpush1.msra.mxu0 0.0
      %323 = vmatprep.subr.mxu0 0.0
      %324 = vmatpush1.msra.mxu0 0.0
      %325 = vmatprep.mubr.f32.mxu0 0.0
      %326 = vmatmul.mubr.f32.gmra.mrb[0].mxu0 %v206
      %v327 = vpop.f32.mrb[0].mxu0
      %v328 = vadd.f32 %v259, %v327
      %v329 = vpop.f32.mrb[0].mxu0
      %330 = vmatprep.mubr.f32.mxu0 0.0
      %331 = vmatmul.mubr.f32.gmra.mrb[0].mxu0 %v207
      %v332 = vpop.f32.mrb[0].mxu0
      %v333 = vadd.f32 %v259, %v332
      %v334 = vpop.f32.mrb[0].mxu0
      %335 = vmatprep.mubr.f32.mxu0 0.0
      %336 = vmatmul.mubr.f32.gmra.mrb[0].mxu0 %v208
      %v337 = vpop.f32.mrb[0].mxu0
      %v338 = vadd.f32 %v259, %v337
      %v339 = vpop.f32.mrb[0].mxu0
      %340 = vmatprep.mubr.f32.mxu0 0.0
      %341 = vmatmul.mubr.f32.gmra.mrb[0].mxu0 %v209
      %v342 = vpop.f32.mrb[0].mxu0
      %v343 = vadd.f32 %v259, %v342
      %v344 = vpop.f32.mrb[0].mxu0
      %345 = vmatprep.mubr.f32.mxu0 0.0
      %346 = vmatmul.mubr.f32.gmra.mrb[0].mxu0 %v210
      %v347 = vpop.f32.mrb[0].mxu0
      %v348 = vadd.f32 %v259, %v347
      %v349 = vpop.f32.mrb[0].mxu0
      %350 = vmatprep.mubr.f32.mxu0 0.0
      %351 = vmatmul.mubr.f32.gmra.mrb[0].mxu0 %v211
      %v352 = vpop.f32.mrb[0].mxu0
      %v353 = vadd.f32 %v259, %v352
      %v354 = vpop.f32.mrb[0].mxu0
      %355 = vmatprep.mubr.f32.mxu0 0.0
      %356 = vmatmul.mubr.f32.gmra.mrb[0].mxu0 %v212
      %v357 = vpop.f32.mrb[0].mxu0
      %v358 = vadd.f32 %v259, %v357
      %v359 = vpop.f32.mrb[0].mxu0
      %360 = vmatprep.mubr.f32.mxu0 0.0
      %361 = vmatmul.mubr.f32.gmra.mrb[0].mxu0 %v213
      %v362 = vpop.f32.mrb[0].mxu0
      %v363 = vadd.f32 %v259, %v362
      %v364 = vpop.f32.mrb[0].mxu0
      %365 = vmatprep.mubr.f32.mxu0 0.0
      %366 = vmatmul.mubr.f32.gmra.mrb[0].mxu0 %v214
      %v367 = vpop.f32.mrb[0].mxu0
      %v368 = vadd.f32 %v259, %v367
      %v369 = vpop.f32.mrb[0].mxu0
      %370 = vmatprep.mubr.f32.mxu0 0.0
      %371 = vmatmul.mubr.f32.gmra.mrb[0].mxu0 %v215
      %v372 = vpop.f32.mrb[0].mxu0
      %v373 = vadd.f32 %v259, %v372
      %v374 = vpop.f32.mrb[0].mxu0
      %375 = vmatprep.mubr.f32.mxu0 0.0
      %376 = vmatmul.mubr.f32.gmra.mrb[0].mxu0 %v216
      %v377 = vpop.f32.mrb[0].mxu0
      %v378 = vadd.f32 %v259, %v377
      %v379 = vpop.f32.mrb[0].mxu0
      %380 = vmatprep.mubr.f32.mxu0 0.0
      %381 = vmatmul.mubr.f32.gmra.mrb[0].mxu0 %v217
      %v382 = vpop.f32.mrb[0].mxu0
      %v383 = vadd.f32 %v259, %v382
      %v384 = vpop.f32.mrb[0].mxu0
      %385 = vmatprep.mubr.f32.mxu0 0.0
      %386 = vmatmul.mubr.f32.gmra.mrb[0].mxu0 %v218
      %v387 = vpop.f32.mrb[0].mxu0
      %v388 = vadd.f32 %v259, %v387
      %v389 = vpop.f32.mrb[0].mxu0
      %390 = vmatprep.mubr.f32.mxu0 0.0
      %391 = vmatmul.mubr.f32.gmra.mrb[0].mxu0 %v219
      %v392 = vpop.f32.mrb[0].mxu0
      %v393 = vadd.f32 %v259, %v392
      %v394 = vpop.f32.mrb[0].mxu0
      %395 = vmatprep.mubr.f32.mxu0 0.0
      %396 = vmatmul.mubr.f32.gmra.mrb[0].mxu0 %v220
      %v397 = vpop.f32.mrb[0].mxu0
      %v398 = vadd.f32 %v259, %v397
      %v399 = vpop.f32.mrb[0].mxu0
      %400 = vmatprep.mubr.f32.mxu0 0.0
      %401 = vmatmul.mubr.f32.gmra.mrb[0].mxu0 %v221
      %v402 = vpop.f32.mrb[0].mxu0
      %v403 = vadd.f32 %v259, %v402
      %v404 = vpop.f32.mrb[0].mxu0
      %405 = vmatprep.mubr.f32.mxu0 0.0
      %406 = vmatmul.mubr.f32.gmra.mrb[0].mxu0 %v222
      %v407 = vpop.f32.mrb[0].mxu0
      %v408 = vadd.f32 %v259, %v407
      %v409 = vpop.f32.mrb[0].mxu0
      %410 = vmatprep.mubr.f32.mxu0 0.0
      %411 = vmatmul.mubr.f32.gmra.mrb[0].mxu0 %v223
      %v412 = vpop.f32.mrb[0].mxu0
      %v413 = vadd.f32 %v259, %v412
      %v414 = vpop.f32.mrb[0].mxu0
      %415 = vmatprep.mubr.f32.mxu0 0.0
      %416 = vmatmul.mubr.f32.gmra.mrb[0].mxu0 %v224
      %v417 = vpop.f32.mrb[0].mxu0
      %v418 = vadd.f32 %v259, %v417
      %v419 = vpop.f32.mrb[0].mxu0
      %420 = vmatprep.mubr.f32.mxu0 0.0
      %421 = vmatmul.mubr.f32.gmra.mrb[0].mxu0 %v225
      %v422 = vpop.f32.mrb[0].mxu0
      %v423 = vadd.f32 %v259, %v422
      %v424 = vpop.f32.mrb[0].mxu0
      %425 = vmatprep.mubr.f32.mxu0 0.0
      %426 = vmatmul.mubr.f32.gmra.mrb[0].mxu0 %v226
      %v427 = vpop.f32.mrb[0].mxu0
      %v428 = vadd.f32 %v259, %v427
      %v429 = vpop.f32.mrb[0].mxu0
      %430 = vmatprep.mubr.f32.mxu0 0.0
      %431 = vmatmul.mubr.f32.gmra.mrb[0].mxu0 %v227
      %v432 = vpop.f32.mrb[0].mxu0
      %v433 = vadd.f32 %v259, %v432
      %v434 = vpop.f32.mrb[0].mxu0
      %435 = vmatprep.mubr.f32.mxu0 0.0
      %436 = vmatmul.mubr.f32.gmra.mrb[0].mxu0 %v228
      %v437 = vpop.f32.mrb[0].mxu0
      %v438 = vadd.f32 %v259, %v437
      %v439 = vpop.f32.mrb[0].mxu0
      %440 = vmatprep.mubr.f32.mxu0 0.0
      %441 = vmatmul.mubr.f32.gmra.mrb[0].mxu0 %v229
      %v442 = vpop.f32.mrb[0].mxu0
      %v443 = vadd.f32 %v259, %v442
      %v444 = vpop.f32.mrb[0].mxu0
      %445 = vmatprep.mubr.f32.mxu0 0.0
      %446 = vmatmul.mubr.f32.gmra.mrb[0].mxu0 %v230
      %v447 = vpop.f32.mrb[0].mxu0
      %v448 = vadd.f32 %v259, %v447
      %v449 = vpop.f32.mrb[0].mxu0
      %450 = vmatprep.mubr.f32.mxu0 0.0
      %451 = vmatmul.mubr.f32.gmra.mrb[0].mxu0 %v231
      %v452 = vpop.f32.mrb[0].mxu0
      %v453 = vadd.f32 %v259, %v452
      %v454 = vpop.f32.mrb[0].mxu0
      %455 = vmatprep.mubr.f32.mxu0 0.0
      %456 = vmatmul.mubr.f32.gmra.mrb[0].mxu0 %v232
      %v457 = vpop.f32.mrb[0].mxu0
      %v458 = vadd.f32 %v259, %v457
      %v459 = vpop.f32.mrb[0].mxu0
      %460 = vmatprep.mubr.f32.mxu0 0.0
      %461 = vmatmul.mubr.f32.gmra.mrb[0].mxu0 %v233
      %v462 = vpop.f32.mrb[0].mxu0
      %v463 = vadd.f32 %v259, %v462
      %v464 = vpop.f32.mrb[0].mxu0
      %465 = vmatprep.mubr.f32.mxu0 0.0
      %466 = vmatmul.mubr.f32.gmra.mrb[0].mxu0 %v234
      %v467 = vpop.f32.mrb[0].mxu0
      %v468 = vadd.f32 %v259, %v467
      %v469 = vpop.f32.mrb[0].mxu0
      %470 = vmatprep.mubr.f32.mxu0 0.0
      %471 = vmatmul.mubr.f32.gmra.mrb[0].mxu0 %v235
      %v472 = vpop.f32.mrb[0].mxu0
      %v473 = vadd.f32 %v259, %v472
      %v474 = vpop.f32.mrb[0].mxu0
      %475 = vmatprep.mubr.f32.mxu0 0.0
      %476 = vmatmul.mubr.f32.gmra.mrb[0].mxu0 %v236
      %v477 = vpop.f32.mrb[0].mxu0
      %v478 = vadd.f32 %v259, %v477
      %v479 = vpop.f32.mrb[0].mxu0
      %480 = vmatprep.mubr.f32.mxu0 0.0
      %481 = vmatmul.mubr.f32.gmra.mrb[0].mxu0 %v237
      %v482 = vpop.f32.mrb[0].mxu0
      %v483 = vadd.f32 %v259, %v482
      %v484 = vpop.f32.mrb[0].mxu0
      %485 = vdwg.mxu0
      %v486 = vmax.f32 %v328, 1e-06
      %v487 = vmax.f32 %v333, 1e-06
      %v488 = vmax.f32 %v338, 1e-06
      %v489 = vmax.f32 %v343, 1e-06
      %v490 = vmax.f32 %v348, 1e-06
      %v491 = vmax.f32 %v353, 1e-06
      %v492 = vmax.f32 %v358, 1e-06
      %v493 = vmax.f32 %v363, 1e-06
      %v494 = vmax.f32 %v368, 1e-06
      %v495 = vmax.f32 %v373, 1e-06
      %v496 = vmax.f32 %v378, 1e-06
      %v497 = vmax.f32 %v383, 1e-06
      %v498 = vmax.f32 %v388, 1e-06
      %v499 = vmax.f32 %v393, 1e-06
      %v500 = vmax.f32 %v398, 1e-06
      %v501 = vmax.f32 %v403, 1e-06
      %v502 = vmax.f32 %v408, 1e-06
      %v503 = vmax.f32 %v413, 1e-06
      %v504 = vmax.f32 %v418, 1e-06
      %v505 = vmax.f32 %v423, 1e-06
      %v506 = vmax.f32 %v428, 1e-06
      %v507 = vmax.f32 %v433, 1e-06
      %v508 = vmax.f32 %v438, 1e-06
      %v509 = vmax.f32 %v443, 1e-06
      %v510 = vmax.f32 %v448, 1e-06
      %v511 = vmax.f32 %v453, 1e-06
      %v512 = vmax.f32 %v458, 1e-06
      %v513 = vmax.f32 %v463, 1e-06
      %v514 = vmax.f32 %v468, 1e-06
      %v515 = vmax.f32 %v473, 1e-06
      %v516 = vmax.f32 %v478, 1e-06
      %v517 = vmax.f32 %v483, 1e-06
      %v518 = vrsqrt.pop %v486
      %v519 = vrsqrt.pop %v487
      %v520 = vrsqrt.pop %v488
      %v521 = vrsqrt.pop %v489
      %v522 = vrsqrt.pop %v490
      %v523 = vrsqrt.pop %v491
      %v524 = vrsqrt.pop %v492
      %v525 = vrsqrt.pop %v493
      %v526 = vrsqrt.pop %v494
      %v527 = vrsqrt.pop %v495
      %v528 = vrsqrt.pop %v496
      %v529 = vrsqrt.pop %v497
      %v530 = vrsqrt.pop %v498
      %v531 = vrsqrt.pop %v499
      %v532 = vrsqrt.pop %v500
      %v533 = vrsqrt.pop %v501
      %v534 = vrsqrt.pop %v502
      %v535 = vrsqrt.pop %v503
      %v536 = vrsqrt.pop %v504
      %v537 = vrsqrt.pop %v505
      %v538 = vrsqrt.pop %v506
      %v539 = vrsqrt.pop %v507
      %v540 = vrsqrt.pop %v508
      %v541 = vrsqrt.pop %v509
      %v542 = vrsqrt.pop %v510
      %v543 = vrsqrt.pop %v511
      %v544 = vrsqrt.pop %v512
      %v545 = vrsqrt.pop %v513
      %v546 = vrsqrt.pop %v514
      %v547 = vrsqrt.pop %v515
      %v548 = vrsqrt.pop %v516
      %v549 = vrsqrt.pop %v517
      %v550 = vmul.f32 %v174, %v518
      %v551 = vmul.f32 %v175, %v519
      %v552 = vmul.f32 %v176, %v520
      %v553 = vmul.f32 %v177, %v521
      %v554 = vmul.f32 %v178, %v522
      %v555 = vmul.f32 %v179, %v523
      %v556 = vmul.f32 %v180, %v524
      %v557 = vmul.f32 %v181, %v525
      %v558 = vmul.f32 %v182, %v526
      %v559 = vmul.f32 %v183, %v527
      %v560 = vmul.f32 %v184, %v528
      %v561 = vmul.f32 %v185, %v529
      %v562 = vmul.f32 %v186, %v530
      %v563 = vmul.f32 %v187, %v531
      %v564 = vmul.f32 %v188, %v532
      %v565 = vmul.f32 %v189, %v533
      %v566 = vmul.f32 %v190, %v534
      %v567 = vmul.f32 %v191, %v535
      %v568 = vmul.f32 %v192, %v536
      %v569 = vmul.f32 %v193, %v537
      %v570 = vmul.f32 %v194, %v538
      %v571 = vmul.f32 %v195, %v539
      %v572 = vmul.f32 %v196, %v540
      %v573 = vmul.f32 %v197, %v541
      %v574 = vmul.f32 %v198, %v542
      %v575 = vmul.f32 %v199, %v543
      %v576 = vmul.f32 %v200, %v544
      %v577 = vmul.f32 %v201, %v545
      %v578 = vmul.f32 %v202, %v546
      %v579 = vmul.f32 %v203, %v547
      %v580 = vmul.f32 %v204, %v548
      %v581 = vmul.f32 %v205, %v549
      %582 = vst [vmem:[%s172] sm:$0xff] %v550
      %583 = vst [vmem:[%s172 + $0x8] sm:$0xff] %v551
      %584 = vst [vmem:[%s172 + $0x10] sm:$0xff] %v552
      %585 = vst [vmem:[%s172 + $0x18] sm:$0xff] %v553
      %586 = vst [vmem:[%s172 + $0x20] sm:$0xff] %v554
      %587 = vst [vmem:[%s172 + $0x28] sm:$0xff] %v555
      %588 = vst [vmem:[%s172 + $0x30] sm:$0xff] %v556
      %589 = vst [vmem:[%s172 + $0x38] sm:$0xff] %v557
      %590 = vst [vmem:[%s172 + $0x40] sm:$0xff] %v558
      %591 = vst [vmem:[%s172 + $0x48] sm:$0xff] %v559
      %592 = vst [vmem:[%s172 + $0x50] sm:$0xff] %v560
      %593 = vst [vmem:[%s172 + $0x58] sm:$0xff] %v561
      %594 = vst [vmem:[%s172 + $0x60] sm:$0xff] %v562
      %595 = vst [vmem:[%s172 + $0x68] sm:$0xff] %v563
      %596 = vst [vmem:[%s172 + $0x70] sm:$0xff] %v564
      %597 = vst [vmem:[%s172 + $0x78] sm:$0xff] %v565
      %598 = vst [vmem:[%s172 + $0x80] sm:$0xff] %v566
      %599 = vst [vmem:[%s172 + $0x88] sm:$0xff] %v567
      %600 = vst [vmem:[%s172 + $0x90] sm:$0xff] %v568
      %601 = vst [vmem:[%s172 + $0x98] sm:$0xff] %v569
      %602 = vst [vmem:[%s172 + $0xa0] sm:$0xff] %v570
      %603 = vst [vmem:[%s172 + $0xa8] sm:$0xff] %v571
      %604 = vst [vmem:[%s172 + $0xb0] sm:$0xff] %v572
      %605 = vst [vmem:[%s172 + $0xb8] sm:$0xff] %v573
      %606 = vst [vmem:[%s172 + $0xc0] sm:$0xff] %v574
      %607 = vst [vmem:[%s172 + $0xc8] sm:$0xff] %v575
      %608 = vst [vmem:[%s172 + $0xd0] sm:$0xff] %v576
      %609 = vst [vmem:[%s172 + $0xd8] sm:$0xff] %v577
      %610 = vst [vmem:[%s172 + $0xe0] sm:$0xff] %v578
      %611 = vst [vmem:[%s172 + $0xe8] sm:$0xff] %v579
      %612 = vst [vmem:[%s172 + $0xf0] sm:$0xff] %v580
      %613 = vst [vmem:[%s172 + $0xf8] sm:$0xff] %v581
      %s614 = smul.u32 32, %s14
      %p615 = scmp.lt.s32.totalorder %s614, 63
      %s616 = scalar_select %p615, %s614, 63
      %s617 = smul.addr %s616, 8
      %s618 = scalar_lea.vmem %s3, %s617
      // Predicated region
      $region33: #{encoder_forward.83} parent=31 // pred_check
        %p619 = pneg %p100
      $region34: #{encoder_forward.83} parent=31 // pred_check_branch
        %621 = sbr.rel (%p619) target = $region36
      $region35: #{encoder_forward.83} parent=31 // pred_region
        %s622 = smul.u32 32, %s14
      $region36: #{encoder_forward.83} parent=31 // pred_fallthru
        _
    $region32: #{encoder_forward.83} parent=5 // pred_fallthru
      _
    %p623 = scmp.le.s32.totalorder 2, %s9
    // Predicated region
    $region37: #{encoder_forward.83} parent=5 // pred_check
      %p624 = pneg %p623
    $region38: #{encoder_forward.83} parent=5 // pred_check_branch
      %626 = sbr.rel (%p624) target = $region40
    $region39: #{encoder_forward.83} parent=5 // pred_region
      %s627 = ssub.s32 %s9, 2
      // Predicated region
      $region41: #{encoder_forward.83} parent=39 // pred_check
        %p628 = pneg %p106
      $region42: #{encoder_forward.83} parent=39 // pred_check_branch
        %630 = sbr.rel (%p628) target = $region44
      $region43: #{encoder_forward.83} parent=39 // pred_region
        %s631 = smul.u32 32, %s15
        %p632 = scmp.lt.s32.totalorder %s631, 63
        %s633 = scalar_select %p632, %s631, 63
        %s634 = smul.addr %s633, 8
        %s635 = scalar_lea.vmem %s3, %s634
      $region44: #{encoder_forward.83} parent=39 // pred_fallthru
        _
    $region40: #{encoder_forward.83} parent=5 // pred_fallthru
      _
  $region6: #{encoder_forward.83} parent=0 // loop_footer
    %s13 = sadd.s32 1, %s9
  $region7: #{encoder_forward.83} parent=0 // loop_footer_branch
    %8 = sbr.rel target = $region3
  $region8: #{encoder_forward.83} parent=0 // loop_exit
    _

// kernel: encoder_forward.92
$region0: #{encoder_forward.92}
  #allocation0 [shape = 'u32[]', space=smem, size = 0x4, offset = 0x4, fixed_abs, tag = 'smem constant byte address 0x4 - core index']
  #allocation1 [shape = 'u32[144,128]{1,0:T(1,128)}', space=vmem, size = 0x12000, scoped, tag = 'internal scratch']
  %s0 = inlined_call_operand.vmem [shape: bf16[128,128], index: 0, kind: input, shape index: {}]
  %s1 = inlined_call_operand.vmem [shape: bf16[128,128], index: 1, kind: input, shape index: {}]
  %s2 = inlined_call_operand.vmem [shape: f32[1,128], index: 2, kind: input, shape index: {}]
  %s3 = inlined_call_operand.vmem [shape: f32[128,128], index: 3, kind: output, shape index: {}]
  %s4 = sld [smem:[#allocation0]]
  $region22: #{encoder_forward.92} parent=0
    _
  %s6 = ssub.s32 1, %s4
  %s7 = scalar_select 0, %s6, %s4
  // Predicated region
  $region2: #{encoder_forward.92} parent=0 // pred_check
    _
  $region3: #{encoder_forward.92} parent=0 // pred_check_branch
    %9 = sbr.rel (0) target = $region5
  $region4: #{encoder_forward.92} parent=0 // pred_region
    _
  $region5: #{encoder_forward.92} parent=0 // pred_fallthru
    _
  // Predicated region
  $region6: #{encoder_forward.92} parent=0 // pred_check
    _
  $region7: #{encoder_forward.92} parent=0 // pred_check_branch
    %11 = sbr.rel (0) target = $region9
  $region8: #{encoder_forward.92} parent=0 // pred_region
    _
  $region9: #{encoder_forward.92} parent=0 // pred_fallthru
    _
  // Predicated region
  $region10: #{encoder_forward.92} parent=0 // pred_check
    _
  $region11: #{encoder_forward.92} parent=0 // pred_check_branch
    %13 = sbr.rel (0) target = $region13
  $region12: #{encoder_forward.92} parent=0 // pred_region
    _
  $region13: #{encoder_forward.92} parent=0 // pred_fallthru
    _
  %v15 = vld [vmem:[%s0] sm:$0xf]
  %v16 = vld [vmem:[%s0 + $0x4] sm:$0xf]
  %v17 = vld [vmem:[%s0 + $0x8] sm:$0xf]
  %v18 = vld [vmem:[%s0 + $0xc] sm:$0xf]
  %v19 = vld [vmem:[%s0 + $0x10] sm:$0xf]
  %v20 = vld [vmem:[%s0 + $0x14] sm:$0xf]
  %v21 = vld [vmem:[%s0 + $0x18] sm:$0xf]
  %v22 = vld [vmem:[%s0 + $0x1c] sm:$0xf]
  %v23 = vld [vmem:[%s0 + $0x20] sm:$0xf]
  %v24 = vld [vmem:[%s0 + $0x24] sm:$0xf]
  %v25 = vld [vmem:[%s0 + $0x28] sm:$0xf]
  %v26 = vld [vmem:[%s0 + $0x2c] sm:$0xf]
  %v27 = vld [vmem:[%s0 + $0x30] sm:$0xf]
  %v28 = vld [vmem:[%s0 + $0x34] sm:$0xf]
  %v29 = vld [vmem:[%s0 + $0x38] sm:$0xf]
  %v30 = vld [vmem:[%s0 + $0x3c] sm:$0xf]
  %v31 = vld [vmem:[%s1] sm:$0xf]
  %v32 = vld [vmem:[%s1 + $0x4] sm:$0xf]
  %v33 = vld [vmem:[%s1 + $0x8] sm:$0xf]
  %v34 = vld [vmem:[%s1 + $0xc] sm:$0xf]
  %v35 = vld [vmem:[%s1 + $0x10] sm:$0xf]
  %v36 = vld [vmem:[%s1 + $0x14] sm:$0xf]
  %v37 = vld [vmem:[%s1 + $0x18] sm:$0xf]
  %v38 = vld [vmem:[%s1 + $0x1c] sm:$0xf]
  %v39 = vld [vmem:[%s1 + $0x20] sm:$0xf]
  %v40 = vld [vmem:[%s1 + $0x24] sm:$0xf]
  %v41 = vld [vmem:[%s1 + $0x28] sm:$0xf]
  %v42 = vld [vmem:[%s1 + $0x2c] sm:$0xf]
  %v43 = vld [vmem:[%s1 + $0x30] sm:$0xf]
  %v44 = vld [vmem:[%s1 + $0x34] sm:$0xf]
  %v45 = vld [vmem:[%s1 + $0x38] sm:$0xf]
  %v46 = vld [vmem:[%s1 + $0x3c] sm:$0xf]
  %v47 = vld [vmem:[%s2] sm:$0x1]
  %v49 = vlaneseq
  %v50 = vshrl.u32 %v49, 7
  %v51 = vsub.s32 0, %v50
  %v52 = vrot.slane %v47, %v51
  %v70 = vunpack.c.l.b16 %v15
  %v71 = vunpack.c.l.b16 %v16
  %v72 = vunpack.c.l.b16 %v17
  %v73 = vunpack.c.l.b16 %v18
  %v74 = vunpack.c.l.b16 %v19
  %v75 = vunpack.c.l.b16 %v20
  %v76 = vunpack.c.l.b16 %v21
  %v77 = vunpack.c.l.b16 %v22
  %v78 = vunpack.c.l.b16 %v23
  %v79 = vunpack.c.l.b16 %v24
  %v80 = vunpack.c.l.b16 %v25
  %v81 = vunpack.c.l.b16 %v26
  %v82 = vunpack.c.l.b16 %v27
  %v83 = vunpack.c.l.b16 %v28
  %v84 = vunpack.c.l.b16 %v29
  %v85 = vunpack.c.l.b16 %v30
  %v86 = vpack.c.b16 %v71, %v70
  %v87 = vpack.c.b16 %v73, %v72
  %v88 = vpack.c.b16 %v75, %v74
  %v89 = vpack.c.b16 %v77, %v76
  %v90 = vpack.c.b16 %v79, %v78
  %v91 = vpack.c.b16 %v81, %v80
  %v92 = vpack.c.b16 %v83, %v82
  %v93 = vpack.c.b16 %v85, %v84
  %v118 = vunpack.c.l.b16 %v31
  %v119 = vunpack.c.l.b16 %v32
  %v120 = vunpack.c.l.b16 %v33
  %v121 = vunpack.c.l.b16 %v34
  %v122 = vunpack.c.l.b16 %v35
  %v123 = vunpack.c.l.b16 %v36
  %v124 = vunpack.c.l.b16 %v37
  %v125 = vunpack.c.l.b16 %v38
  %v126 = vunpack.c.l.b16 %v39
  %v127 = vunpack.c.l.b16 %v40
  %v128 = vunpack.c.l.b16 %v41
  %v129 = vunpack.c.l.b16 %v42
  %v130 = vunpack.c.l.b16 %v43
  %v131 = vunpack.c.l.b16 %v44
  %v132 = vunpack.c.l.b16 %v45
  %v133 = vunpack.c.l.b16 %v46
  %v134 = vpack.c.b16 %v119, %v118
  %v135 = vpack.c.b16 %v121, %v120
  %v136 = vpack.c.b16 %v123, %v122
  %v137 = vpack.c.b16 %v125, %v124
  %v138 = vpack.c.b16 %v127, %v126
  %v139 = vpack.c.b16 %v129, %v128
  %v140 = vpack.c.b16 %v131, %v130
  %v141 = vpack.c.b16 %v133, %v132
  %150 = vmatprep.subr.bf16.mxu0 0
  %151 = vmatpush1.bf16.msra.mxu0 %v134
  %152 = vmatprep.subr.bf16.mxu0 0
  %153 = vmatpush1.bf16.msra.mxu0 %v135
  %154 = vmatprep.subr.bf16.mxu0 0
  %155 = vmatpush1.bf16.msra.mxu0 %v136
  %156 = vmatprep.subr.bf16.mxu0 0
  %157 = vmatpush1.bf16.msra.mxu0 %v137
  %158 = vmatprep.subr.bf16.mxu0 0
  %159 = vmatpush1.bf16.msra.mxu0 %v138
  %160 = vmatprep.subr.bf16.mxu0 0
  %161 = vmatpush1.bf16.msra.mxu0 %v139
  %162 = vmatprep.subr.bf16.mxu0 0
  %163 = vmatpush1.bf16.msra.mxu0 %v140
  %164 = vmatprep.subr.bf16.mxu0 0
  %165 = vmatpush1.bf16.msra.mxu0 %v141
  %166 = vmatprep.subr.bf16.mxu0 0
  %167 = vmatpush1.bf16.msra.mxu0 0
  %168 = vmatprep.subr.bf16.mxu0 0
  %169 = vmatpush1.bf16.msra.mxu0 0
  %170 = vmatprep.subr.bf16.mxu0 0
  %171 = vmatpush1.bf16.msra.mxu0 0
  %172 = vmatprep.subr.bf16.mxu0 0
  %173 = vmatpush1.bf16.msra.mxu0 0
  %174 = vmatprep.subr.bf16.mxu0 0
  %175 = vmatpush1.bf16.msra.mxu0 0
  %176 = vmatprep.subr.bf16.mxu0 0
  %177 = vmatpush1.bf16.msra.mxu0 0
  %178 = vmatprep.subr.bf16.mxu0 0
  %179 = vmatpush1.bf16.msra.mxu0 0
  %180 = vmatprep.subr.bf16.mxu0 0
  %181 = vmatpush1.bf16.msra.mxu0 0
  %182 = vmatprep.mubr.bf16.mxu0 0
  %183 = vmatmul.mubr.bf16.gmra.mrb[0].mxu0 %v86
  %v184 = vpop.f32.mrb[0].mxu0
  %v185 = vadd.f32 %v52, %v184
  %v186 = vpop.f32.mrb[0].mxu0
  %v187 = vpop.f32.mrb[0].mxu0
  %v188 = vadd.f32 %v52, %v187
  %v189 = vpop.f32.mrb[0].mxu0
  %190 = vmatprep.mubr.bf16.mxu0 0
  %191 = vmatmul.mubr.bf16.gmra.mrb[0].mxu0 %v87
  %v192 = vpop.f32.mrb[0].mxu0
  %v193 = vadd.f32 %v52, %v192
  %v194 = vpop.f32.mrb[0].mxu0
  %v195 = vpop.f32.mrb[0].mxu0
  %v196 = vadd.f32 %v52, %v195
  %v197 = vpop.f32.mrb[0].mxu0
  %198 = vmatprep.mubr.bf16.mxu0 0
  %199 = vmatmul.mubr.bf16.gmra.mrb[0].mxu0 %v88
  %v200 = vpop.f32.mrb[0].mxu0
  %v201 = vadd.f32 %v52, %v200
  %v202 = vpop.f32.mrb[0].mxu0
  %v203 = vpop.f32.mrb[0].mxu0
  %v204 = vadd.f32 %v52, %v203
  %v205 = vpop.f32.mrb[0].mxu0
  %206 = vmatprep.mubr.bf16.mxu0 0
  %207 = vmatmul.mubr.bf16.gmra.mrb[0].mxu0 %v89
  %v208 = vpop.f32.mrb[0].mxu0
  %v209 = vadd.f32 %v52, %v208
  %v210 = vpop.f32.mrb[0].mxu0
  %v211 = vpop.f32.mrb[0].mxu0
  %v212 = vadd.f32 %v52, %v211
  %v213 = vpop.f32.mrb[0].mxu0
  %214 = vmatprep.mubr.bf16.mxu0 0
  %215 = vmatmul.mubr.bf16.gmra.mrb[0].mxu0 %v90
  %v216 = vpop.f32.mrb[0].mxu0
  %v217 = vadd.f32 %v52, %v216
  %v218 = vpop.f32.mrb[0].mxu0
  %v219 = vpop.f32.mrb[0].mxu0
  %v220 = vadd.f32 %v52, %v219
  %v221 = vpop.f32.mrb[0].mxu0
  %222 = vmatprep.mubr.bf16.mxu0 0
  %223 = vmatmul.mubr.bf16.gmra.mrb[0].mxu0 %v91
  %v224 = vpop.f32.mrb[0].mxu0
  %v225 = vadd.f32 %v52, %v224
  %v226 = vpop.f32.mrb[0].mxu0
  %v227 = vpop.f32.mrb[0].mxu0
  %v228 = vadd.f32 %v52, %v227
  %v229 = vpop.f32.mrb[0].mxu0
  %230 = vmatprep.mubr.bf16.mxu0 0
  %231 = vmatmul.mubr.bf16.gmra.mrb[0].mxu0 %v92
  %v232 = vpop.f32.mrb[0].mxu0
  %v233 = vadd.f32 %v52, %v232
  %v234 = vpop.f32.mrb[0].mxu0
  %v235 = vpop.f32.mrb[0].mxu0
  %v236 = vadd.f32 %v52, %v235
  %v237 = vpop.f32.mrb[0].mxu0
  %238 = vmatprep.mubr.bf16.mxu0 0
  %239 = vmatmul.mubr.bf16.gmra.mrb[0].mxu0 %v93
  %v240 = vpop.f32.mrb[0].mxu0
  %v241 = vadd.f32 %v52, %v240
  %v242 = vpop.f32.mrb[0].mxu0
  %v243 = vpop.f32.mrb[0].mxu0
  %v244 = vadd.f32 %v52, %v243
  %v245 = vpop.f32.mrb[0].mxu0
  %246 = vdwg.mxu0
  %247 = vst [vmem:[%s3] sm:$0xff] %v185
  %248 = vst [vmem:[%s3 + $0x8] sm:$0xff] %v188
  %249 = vst [vmem:[%s3 + $0x10] sm:$0xff] %v193
  %250 = vst [vmem:[%s3 + $0x18] sm:$0xff] %v196
  %251 = vst [vmem:[%s3 + $0x20] sm:$0xff] %v201
  %252 = vst [vmem:[%s3 + $0x28] sm:$0xff] %v204
  %253 = vst [vmem:[%s3 + $0x30] sm:$0xff] %v209
  %254 = vst [vmem:[%s3 + $0x38] sm:$0xff] %v212
  %255 = vst [vmem:[%s3 + $0x40] sm:$0xff] %v217
  %256 = vst [vmem:[%s3 + $0x48] sm:$0xff] %v220
  %257 = vst [vmem:[%s3 + $0x50] sm:$0xff] %v225
  %258 = vst [vmem:[%s3 + $0x58] sm:$0xff] %v228
  %259 = vst [vmem:[%s3 + $0x60] sm:$0xff] %v233
  %260 = vst [vmem:[%s3 + $0x68] sm:$0xff] %v236
  %261 = vst [vmem:[%s3 + $0x70] sm:$0xff] %v241
  %262 = vst [vmem:[%s3 + $0x78] sm:$0xff] %v244
  // Predicated region
  $region14: #{encoder_forward.92} parent=0 // pred_check
    _
  $region15: #{encoder_forward.92} parent=0 // pred_check_branch
    %264 = sbr.rel (0) target = $region17
  $region16: #{encoder_forward.92} parent=0 // pred_region
    _
  $region17: #{encoder_forward.92} parent=0 // pred_fallthru
    _
  // Predicated region
  $region18: #{encoder_forward.92} parent=0 // pred_check
    _
  $region19: #{encoder_forward.92} parent=0 // pred_check_branch
    %266 = sbr.rel (0) target = $region21
  $region20: #{encoder_forward.92} parent=0 // pred_region
    _
  $region21: #{encoder_forward.92} parent=0 // pred_fallthru
    _

// kernel: encoder_forward.89
$region0: #{encoder_forward.89}
  #allocation0 [shape = 'u32[]', space=smem, size = 0x4, offset = 0x4, fixed_abs, tag = 'smem constant byte address 0x4 - core index']
  #allocation1 [shape = 'u32[144,128]{1,0:T(1,128)}', space=vmem, size = 0x12000, scoped, tag = 'internal scratch']
  %s0 = inlined_call_operand.vmem [shape: bf16[128,128], index: 0, kind: input, shape index: {}]
  %s1 = inlined_call_operand.vmem [shape: bf16[128,128], index: 1, kind: input, shape index: {}]
  %s2 = inlined_call_operand.vmem [shape: f32[1,128], index: 2, kind: input, shape index: {}]
  %s3 = inlined_call_operand.vmem [shape: f32[128,128], index: 3, kind: output, shape index: {}]
  %s4 = sld [smem:[#allocation0]]
  $region22: #{encoder_forward.89} parent=0
    _
  %s6 = ssub.s32 1, %s4
  %s7 = scalar_select 0, %s6, %s4
  // Predicated region
  $region2: #{encoder_forward.89} parent=0 // pred_check
    _
  $region3: #{encoder_forward.89} parent=0 // pred_check_branch
    %9 = sbr.rel (0) target = $region5
  $region4: #{encoder_forward.89} parent=0 // pred_region
    _
  $region5: #{encoder_forward.89} parent=0 // pred_fallthru
    _
  // Predicated region
  $region6: #{encoder_forward.89} parent=0 // pred_check
    _
  $region7: #{encoder_forward.89} parent=0 // pred_check_branch
    %11 = sbr.rel (0) target = $region9
  $region8: #{encoder_forward.89} parent=0 // pred_region
    _
  $region9: #{encoder_forward.89} parent=0 // pred_fallthru
    _
  // Predicated region
  $region10: #{encoder_forward.89} parent=0 // pred_check
    _
  $region11: #{encoder_forward.89} parent=0 // pred_check_branch
    %13 = sbr.rel (0) target = $region13
  $region12: #{encoder_forward.89} parent=0 // pred_region
    _
  $region13: #{encoder_forward.89} parent=0 // pred_fallthru
    _
  %v15 = vld [vmem:[%s0] sm:$0xf]
  %v16 = vld [vmem:[%s0 + $0x4] sm:$0xf]
  %v17 = vld [vmem:[%s0 + $0x8] sm:$0xf]
  %v18 = vld [vmem:[%s0 + $0xc] sm:$0xf]
  %v19 = vld [vmem:[%s0 + $0x10] sm:$0xf]
  %v20 = vld [vmem:[%s0 + $0x14] sm:$0xf]
  %v21 = vld [vmem:[%s0 + $0x18] sm:$0xf]
  %v22 = vld [vmem:[%s0 + $0x1c] sm:$0xf]
  %v23 = vld [vmem:[%s0 + $0x20] sm:$0xf]
  %v24 = vld [vmem:[%s0 + $0x24] sm:$0xf]
  %v25 = vld [vmem:[%s0 + $0x28] sm:$0xf]
  %v26 = vld [vmem:[%s0 + $0x2c] sm:$0xf]
  %v27 = vld [vmem:[%s0 + $0x30] sm:$0xf]
  %v28 = vld [vmem:[%s0 + $0x34] sm:$0xf]
  %v29 = vld [vmem:[%s0 + $0x38] sm:$0xf]
  %v30 = vld [vmem:[%s0 + $0x3c] sm:$0xf]
  %v31 = vld [vmem:[%s1] sm:$0xf]
  %v32 = vld [vmem:[%s1 + $0x4] sm:$0xf]
  %v33 = vld [vmem:[%s1 + $0x8] sm:$0xf]
  %v34 = vld [vmem:[%s1 + $0xc] sm:$0xf]
  %v35 = vld [vmem:[%s1 + $0x10] sm:$0xf]
  %v36 = vld [vmem:[%s1 + $0x14] sm:$0xf]
  %v37 = vld [vmem:[%s1 + $0x18] sm:$0xf]
  %v38 = vld [vmem:[%s1 + $0x1c] sm:$0xf]
  %v39 = vld [vmem:[%s1 + $0x20] sm:$0xf]
  %v40 = vld [vmem:[%s1 + $0x24] sm:$0xf]
  %v41 = vld [vmem:[%s1 + $0x28] sm:$0xf]
  %v42 = vld [vmem:[%s1 + $0x2c] sm:$0xf]
  %v43 = vld [vmem:[%s1 + $0x30] sm:$0xf]
  %v44 = vld [vmem:[%s1 + $0x34] sm:$0xf]
  %v45 = vld [vmem:[%s1 + $0x38] sm:$0xf]
  %v46 = vld [vmem:[%s1 + $0x3c] sm:$0xf]
  %v47 = vld [vmem:[%s2] sm:$0x1]
  %v49 = vlaneseq
  %v50 = vshrl.u32 %v49, 7
  %v51 = vsub.s32 0, %v50
  %v52 = vrot.slane %v47, %v51
  %v70 = vunpack.c.l.b16 %v15
  %v71 = vunpack.c.l.b16 %v16
  %v72 = vunpack.c.l.b16 %v17
  %v73 = vunpack.c.l.b16 %v18
  %v74 = vunpack.c.l.b16 %v19
  %v75 = vunpack.c.l.b16 %v20
  %v76 = vunpack.c.l.b16 %v21
  %v77 = vunpack.c.l.b16 %v22
  %v78 = vunpack.c.l.b16 %v23
  %v79 = vunpack.c.l.b16 %v24
  %v80 = vunpack.c.l.b16 %v25
  %v81 = vunpack.c.l.b16 %v26
  %v82 = vunpack.c.l.b16 %v27
  %v83 = vunpack.c.l.b16 %v28
  %v84 = vunpack.c.l.b16 %v29
  %v85 = vunpack.c.l.b16 %v30
  %v86 = vpack.c.b16 %v71, %v70
  %v87 = vpack.c.b16 %v73, %v72
  %v88 = vpack.c.b16 %v75, %v74
  %v89 = vpack.c.b16 %v77, %v76
  %v90 = vpack.c.b16 %v79, %v78
  %v91 = vpack.c.b16 %v81, %v80
  %v92 = vpack.c.b16 %v83, %v82
  %v93 = vpack.c.b16 %v85, %v84
  %v118 = vunpack.c.l.b16 %v31
  %v119 = vunpack.c.l.b16 %v32
  %v120 = vunpack.c.l.b16 %v33
  %v121 = vunpack.c.l.b16 %v34
  %v122 = vunpack.c.l.b16 %v35
  %v123 = vunpack.c.l.b16 %v36
  %v124 = vunpack.c.l.b16 %v37
  %v125 = vunpack.c.l.b16 %v38
  %v126 = vunpack.c.l.b16 %v39
  %v127 = vunpack.c.l.b16 %v40
  %v128 = vunpack.c.l.b16 %v41
  %v129 = vunpack.c.l.b16 %v42
  %v130 = vunpack.c.l.b16 %v43
  %v131 = vunpack.c.l.b16 %v44
  %v132 = vunpack.c.l.b16 %v45
  %v133 = vunpack.c.l.b16 %v46
  %v134 = vpack.c.b16 %v119, %v118
  %v135 = vpack.c.b16 %v121, %v120
  %v136 = vpack.c.b16 %v123, %v122
  %v137 = vpack.c.b16 %v125, %v124
  %v138 = vpack.c.b16 %v127, %v126
  %v139 = vpack.c.b16 %v129, %v128
  %v140 = vpack.c.b16 %v131, %v130
  %v141 = vpack.c.b16 %v133, %v132
  %150 = vmatprep.subr.bf16.mxu0 0
  %151 = vmatpush1.bf16.msra.mxu0 %v134
  %152 = vmatprep.subr.bf16.mxu0 0
  %153 = vmatpush1.bf16.msra.mxu0 %v135
  %154 = vmatprep.subr.bf16.mxu0 0
  %155 = vmatpush1.bf16.msra.mxu0 %v136
  %156 = vmatprep.subr.bf16.mxu0 0
  %157 = vmatpush1.bf16.msra.mxu0 %v137
  %158 = vmatprep.subr.bf16.mxu0 0
  %159 = vmatpush1.bf16.msra.mxu0 %v138
  %160 = vmatprep.subr.bf16.mxu0 0
  %161 = vmatpush1.bf16.msra.mxu0 %v139
  %162 = vmatprep.subr.bf16.mxu0 0
  %163 = vmatpush1.bf16.msra.mxu0 %v140
  %164 = vmatprep.subr.bf16.mxu0 0
  %165 = vmatpush1.bf16.msra.mxu0 %v141
  %166 = vmatprep.subr.bf16.mxu0 0
  %167 = vmatpush1.bf16.msra.mxu0 0
  %168 = vmatprep.subr.bf16.mxu0 0
  %169 = vmatpush1.bf16.msra.mxu0 0
  %170 = vmatprep.subr.bf16.mxu0 0
  %171 = vmatpush1.bf16.msra.mxu0 0
  %172 = vmatprep.subr.bf16.mxu0 0
  %173 = vmatpush1.bf16.msra.mxu0 0
  %174 = vmatprep.subr.bf16.mxu0 0
  %175 = vmatpush1.bf16.msra.mxu0 0
  %176 = vmatprep.subr.bf16.mxu0 0
  %177 = vmatpush1.bf16.msra.mxu0 0
  %178 = vmatprep.subr.bf16.mxu0 0
  %179 = vmatpush1.bf16.msra.mxu0 0
  %180 = vmatprep.subr.bf16.mxu0 0
  %181 = vmatpush1.bf16.msra.mxu0 0
  %182 = vmatprep.mubr.bf16.mxu0 0
  %183 = vmatmul.mubr.bf16.gmra.mrb[0].mxu0 %v86
  %v184 = vpop.f32.mrb[0].mxu0
  %v185 = vadd.f32 %v52, %v184
  %v186 = vpop.f32.mrb[0].mxu0
  %v187 = vpop.f32.mrb[0].mxu0
  %v188 = vadd.f32 %v52, %v187
  %v189 = vpop.f32.mrb[0].mxu0
  %190 = vmatprep.mubr.bf16.mxu0 0
  %191 = vmatmul.mubr.bf16.gmra.mrb[0].mxu0 %v87
  %v192 = vpop.f32.mrb[0].mxu0
  %v193 = vadd.f32 %v52, %v192
  %v194 = vpop.f32.mrb[0].mxu0
  %v195 = vpop.f32.mrb[0].mxu0
  %v196 = vadd.f32 %v52, %v195
  %v197 = vpop.f32.mrb[0].mxu0
  %198 = vmatprep.mubr.bf16.mxu0 0
  %199 = vmatmul.mubr.bf16.gmra.mrb[0].mxu0 %v88
  %v200 = vpop.f32.mrb[0].mxu0
  %v201 = vadd.f32 %v52, %v200
  %v202 = vpop.f32.mrb[0].mxu0
  %v203 = vpop.f32.mrb[0].mxu0
  %v204 = vadd.f32 %v52, %v203
  %v205 = vpop.f32.mrb[0].mxu0
  %206 = vmatprep.mubr.bf16.mxu0 0
  %207 = vmatmul.mubr.bf16.gmra.mrb[0].mxu0 %v89
  %v208 = vpop.f32.mrb[0].mxu0
  %v209 = vadd.f32 %v52, %v208
  %v210 = vpop.f32.mrb[0].mxu0
  %v211 = vpop.f32.mrb[0].mxu0
  %v212 = vadd.f32 %v52, %v211
  %v213 = vpop.f32.mrb[0].mxu0
  %214 = vmatprep.mubr.bf16.mxu0 0
  %215 = vmatmul.mubr.bf16.gmra.mrb[0].mxu0 %v90
  %v216 = vpop.f32.mrb[0].mxu0
  %v217 = vadd.f32 %v52, %v216
  %v218 = vpop.f32.mrb[0].mxu0
  %v219 = vpop.f32.mrb[0].mxu0
  %v220 = vadd.f32 %v52, %v219
  %v221 = vpop.f32.mrb[0].mxu0
  %222 = vmatprep.mubr.bf16.mxu0 0
  %223 = vmatmul.mubr.bf16.gmra.mrb[0].mxu0 %v91
  %v224 = vpop.f32.mrb[0].mxu0
  %v225 = vadd.f32 %v52, %v224
  %v226 = vpop.f32.mrb[0].mxu0
  %v227 = vpop.f32.mrb[0].mxu0
  %v228 = vadd.f32 %v52, %v227
  %v229 = vpop.f32.mrb[0].mxu0
  %230 = vmatprep.mubr.bf16.mxu0 0
  %231 = vmatmul.mubr.bf16.gmra.mrb[0].mxu0 %v92
  %v232 = vpop.f32.mrb[0].mxu0
  %v233 = vadd.f32 %v52, %v232
  %v234 = vpop.f32.mrb[0].mxu0
  %v235 = vpop.f32.mrb[0].mxu0
  %v236 = vadd.f32 %v52, %v235
  %v237 = vpop.f32.mrb[0].mxu0
  %238 = vmatprep.mubr.bf16.mxu0 0
  %239 = vmatmul.mubr.bf16.gmra.mrb[0].mxu0 %v93
  %v240 = vpop.f32.mrb[0].mxu0
  %v241 = vadd.f32 %v52, %v240
  %v242 = vpop.f32.mrb[0].mxu0
  %v243 = vpop.f32.mrb[0].mxu0
  %v244 = vadd.f32 %v52, %v243
  %v245 = vpop.f32.mrb[0].mxu0
  %246 = vdwg.mxu0
  %vm247 = vcmp.ge.f32.partialorder %v185, 0.0
  %vm248 = vcmp.ge.f32.partialorder %v188, 0.0
  %vm249 = vcmp.ge.f32.partialorder %v193, 0.0
  %vm250 = vcmp.ge.f32.partialorder %v196, 0.0
  %vm251 = vcmp.ge.f32.partialorder %v201, 0.0
  %vm252 = vcmp.ge.f32.partialorder %v204, 0.0
  %vm253 = vcmp.ge.f32.partialorder %v209, 0.0
  %vm254 = vcmp.ge.f32.partialorder %v212, 0.0
  %vm255 = vcmp.ge.f32.partialorder %v217, 0.0
  %vm256 = vcmp.ge.f32.partialorder %v220, 0.0
  %vm257 = vcmp.ge.f32.partialorder %v225, 0.0
  %vm258 = vcmp.ge.f32.partialorder %v228, 0.0
  %vm259 = vcmp.ge.f32.partialorder %v233, 0.0
  %vm260 = vcmp.ge.f32.partialorder %v236, 0.0
  %vm261 = vcmp.ge.f32.partialorder %v241, 0.0
  %vm262 = vcmp.ge.f32.partialorder %v244, 0.0
  %v263 = vmul.f32 %v185, 0.01
  %v264 = vmul.f32 %v188, 0.01
  %v265 = vmul.f32 %v193, 0.01
  %v266 = vmul.f32 %v196, 0.01
  %v267 = vmul.f32 %v201, 0.01
  %v268 = vmul.f32 %v204, 0.01
  %v269 = vmul.f32 %v209, 0.01
  %v270 = vmul.f32 %v212, 0.01
  %v271 = vmul.f32 %v217, 0.01
  %v272 = vmul.f32 %v220, 0.01
  %v273 = vmul.f32 %v225, 0.01
  %v274 = vmul.f32 %v228, 0.01
  %v275 = vmul.f32 %v233, 0.01
  %v276 = vmul.f32 %v236, 0.01
  %v277 = vmul.f32 %v241, 0.01
  %v278 = vmul.f32 %v244, 0.01
  %v279 = vsel %vm247, %v185, %v263
  %v280 = vsel %vm248, %v188, %v264
  %v281 = vsel %vm249, %v193, %v265
  %v282 = vsel %vm250, %v196, %v266
  %v283 = vsel %vm251, %v201, %v267
  %v284 = vsel %vm252, %v204, %v268
  %v285 = vsel %vm253, %v209, %v269
  %v286 = vsel %vm254, %v212, %v270
  %v287 = vsel %vm255, %v217, %v271
  %v288 = vsel %vm256, %v220, %v272
  %v289 = vsel %vm257, %v225, %v273
  %v290 = vsel %vm258, %v228, %v274
  %v291 = vsel %vm259, %v233, %v275
  %v292 = vsel %vm260, %v236, %v276
  %v293 = vsel %vm261, %v241, %v277
  %v294 = vsel %vm262, %v244, %v278
  %295 = vst [vmem:[%s3] sm:$0xff] %v279
  %296 = vst [vmem:[%s3 + $0x8] sm:$0xff] %v280
  %297 = vst [vmem:[%s3 + $0x10] sm:$0xff] %v281
  %298 = vst [vmem:[%s3 + $0x18] sm:$0xff] %v282
  %299 = vst [vmem:[%s3 + $0x20] sm:$0xff] %v283
  %300 = vst [vmem:[%s3 + $0x28] sm:$0xff] %v284
  %301 = vst [vmem:[%s3 + $0x30] sm:$0xff] %v285
  %302 = vst [vmem:[%s3 + $0x38] sm:$0xff] %v286
  %303 = vst [vmem:[%s3 + $0x40] sm:$0xff] %v287
  %304 = vst [vmem:[%s3 + $0x48] sm:$0xff] %v288
  %305 = vst [vmem:[%s3 + $0x50] sm:$0xff] %v289
  %306 = vst [vmem:[%s3 + $0x58] sm:$0xff] %v290
  %307 = vst [vmem:[%s3 + $0x60] sm:$0xff] %v291
  %308 = vst [vmem:[%s3 + $0x68] sm:$0xff] %v292
  %309 = vst [vmem:[%s3 + $0x70] sm:$0xff] %v293
  %310 = vst [vmem:[%s3 + $0x78] sm:$0xff] %v294
  // Predicated region
  $region14: #{encoder_forward.89} parent=0 // pred_check
    _
  $region15: #{encoder_forward.89} parent=0 // pred_check_branch
    %312 = sbr.rel (0) target = $region17
  $region16: #{encoder_forward.89} parent=0 // pred_region
    _
  $region17: #{encoder_forward.89} parent=0 // pred_fallthru
    _
  // Predicated region
  $region18: #{encoder_forward.89} parent=0 // pred_check
    _
  $region19: #{encoder_forward.89} parent=0 // pred_check_branch
    %314 = sbr.rel (0) target = $region21
  $region20: #{encoder_forward.89} parent=0 // pred_region
    _
  $region21: #{encoder_forward.89} parent=0 // pred_fallthru
    _

// kernel: encoder_forward.94
$region0: #{encoder_forward.94}
  #allocation0 [shape = 'u32[]', space=smem, size = 0x4, offset = 0x4, fixed_abs, tag = 'smem constant byte address 0x4 - core index']
  #allocation1 [shape = 'u32[144,128]{1,0:T(1,128)}', space=vmem, size = 0x12000, scoped, tag = 'internal scratch']
  %s0 = inlined_call_operand.vmem [shape: f32[2,64,8], index: 0, kind: input, shape index: {}]
  %s1 = inlined_call_operand.vmem [shape: f32[2,1,8], index: 1, kind: output, shape index: {0}]
  %s2 = inlined_call_operand.vmem [shape: f32[2,1,8], index: 2, kind: output, shape index: {1}]
  %3 = xla_tuple %s1, %s2
  %s4 = sld [smem:[#allocation0]]
  $region45: #{encoder_forward.94} parent=0
    _
  %s6 = ssub.s32 1, %s4
  %s7 = scalar_select 0, %s6, %s4
  loop: start=0, step=1, limit=4
  $region2: #{encoder_forward.94} parent=0 // loop_pre_header
    _
  $region3: #{encoder_forward.94} parent=0 // loop_header
    %s9 = sphi 0, %s13
    %p10 = scmp.ge.s32.totalorder %s9, 4
    %s19 = sphi 0, %s21
    %s22 = sphi 0, %s19
    %s23 = sphi 0, %s22
    %s39 = sphi 0, %s23
    %s45 = sphi 0, %s47
    %s48 = sphi 0, %s45
    %s49 = sphi 0, %s48
    %s65 = sphi 0, %s49
    %s71 = sphi 0, %s73
    %s74 = sphi 0, %s71
    %s75 = sphi 0, %s74
    %s91 = sphi 0, %s75
  $region4: #{encoder_forward.94} parent=0 // loop_header_branch
    %12 = sbr.rel (%p10) target = $region8
  $region5: #{encoder_forward.94} parent=0 // loop_body
    %s14 = ssub.s32 %s9, 1
    %s15 = ssub.s32 %s9, 2
    %s16 = sadd.s32 %s9, 1
    %s17 = ssub.s32 %s9, %s16
    %p18 = scmp.eq.s32.totalorder %s17, 0
    %s20 = sadd.s32 %s19, 1
    %s21 = scalar_select %p18, %s19, %s20
    %p24 = pneg %p18
    %p25 = scmp.eq.s32.totalorder %s9, 1
    %p26 = por %p24, %p25
    %p27 = scmp.ne.s32.totalorder %s19, %s22
    %p28 = scmp.eq.s32.totalorder %s9, 0
    %p29 = por %p27, %p28
    %p30 = scmp.ne.s32.totalorder %s19, %s22
    %p31 = scmp.eq.s32.totalorder %s14, 1
    %p32 = por %p30, %p31
    %p33 = scmp.ne.s32.totalorder %s22, %s23
    %p34 = scmp.eq.s32.totalorder %s14, 0
    %p35 = por %p33, %p34
    %p36 = scmp.ne.s32.totalorder %s22, %s23
    %p37 = scmp.eq.s32.totalorder %s15, 1
    %p38 = por %p36, %p37
    %p40 = scmp.ne.s32.totalorder %s23, %s39
    %p41 = scmp.eq.s32.totalorder %s15, 0
    %p42 = por %p40, %p41
    %s43 = ssub.s32 %s9, %s16
    %p44 = scmp.eq.s32.totalorder %s43, 0
    %s46 = sadd.s32 %s45, 1
    %s47 = scalar_select %p44, %s45, %s46
    %p50 = pneg %p44
    %p51 = scmp.eq.s32.totalorder %s9, 1
    %p52 = por %p50, %p51
    %p53 = scmp.ne.s32.totalorder %s45, %s48
    %p54 = scmp.eq.s32.totalorder %s9, 0
    %p55 = por %p53, %p54
    %p56 = scmp.ne.s32.totalorder %s45, %s48
    %p57 = scmp.eq.s32.totalorder %s14, 1
    %p58 = por %p56, %p57
    %p59 = scmp.ne.s32.totalorder %s48, %s49
    %p60 = scmp.eq.s32.totalorder %s14, 0
    %p61 = por %p59, %p60
    %p62 = scmp.ne.s32.totalorder %s48, %s49
    %p63 = scmp.eq.s32.totalorder %s15, 1
    %p64 = por %p62, %p63
    %p66 = scmp.ne.s32.totalorder %s49, %s65
    %p67 = scmp.eq.s32.totalorder %s15, 0
    %p68 = por %p66, %p67
    %s69 = ssub.s32 %s9, %s16
    %p70 = scmp.eq.s32.totalorder %s69, 0
    %s72 = sadd.s32 %s71, 1
    %s73 = scalar_select %p70, %s71, %s72
    %p76 = pneg %p70
    %p77 = scmp.eq.s32.totalorder %s9, 1
    %p78 = por %p76, %p77
    %p79 = scmp.ne.s32.totalorder %s71, %s74
    %p80 = scmp.eq.s32.totalorder %s9, 0
    %p81 = por %p79, %p80
    %p82 = scmp.ne.s32.totalorder %s71, %s74
    %p83 = scmp.eq.s32.totalorder %s14, 1
    %p84 = por %p82, %p83
    %p85 = scmp.ne.s32.totalorder %s74, %s75
    %p86 = scmp.eq.s32.totalorder %s14, 0
    %p87 = por %p85, %p86
    %p88 = scmp.ne.s32.totalorder %s74, %s75
    %p89 = scmp.eq.s32.totalorder %s15, 1
    %p90 = por %p88, %p89
    %p92 = scmp.ne.s32.totalorder %s75, %s91
    %p93 = scmp.eq.s32.totalorder %s15, 0
    %p94 = por %p92, %p93
    %p95 = scmp.le.s32.totalorder 1, %s9
    %p96 = scmp.lt.s32.totalorder %s9, 3
    %p97 = pnand %p95, %p96
    %p98 = pneg %p97
    // Predicated region
    $region9: #{encoder_forward.94} parent=5 // pred_check
      _
    $region10: #{encoder_forward.94} parent=5 // pred_check_branch
      %100 = sbr.rel (%p97) target = $region12
    $region11: #{encoder_forward.94} parent=5 // pred_region
      %s101 = ssub.s32 %s9, 1
    $region12: #{encoder_forward.94} parent=5 // pred_fallthru
      _
    %p102 = scmp.lt.s32.totalorder %s9, 2
    // Predicated region
    $region13: #{encoder_forward.94} parent=5 // pred_check
      %p103 = pneg %p102
    $region14: #{encoder_forward.94} parent=5 // pred_check_branch
      %105 = sbr.rel (%p103) target = $region16
    $region15: #{encoder_forward.94} parent=5 // pred_region
      // Predicated region
      $region17: #{encoder_forward.94} parent=15 // pred_check
        %p106 = pneg %p29
      $region18: #{encoder_forward.94} parent=15 // pred_check_branch
        %108 = sbr.rel (%p106) target = $region20
      $region19: #{encoder_forward.94} parent=15 // pred_region
        %p109 = scmp.lt.s32.totalorder %s9, 1
        %s110 = scalar_select %p109, %s9, 1
        %s111 = smul.addr %s110, 8
        %s112 = smul.addr %s111, 8
        %s113 = scalar_lea.vmem %s0, %s112
      $region20: #{encoder_forward.94} parent=15 // pred_fallthru
        _
    $region16: #{encoder_forward.94} parent=5 // pred_fallthru
      _
    %p114 = scmp.le.s32.totalorder 1, %s9
    %p115 = scmp.lt.s32.totalorder %s9, 3
    %p116 = pnand %p114, %p115
    %p117 = pneg %p116
    // Predicated region
    $region21: #{encoder_forward.94} parent=5 // pred_check
      _
    $region22: #{encoder_forward.94} parent=5 // pred_check_branch
      %119 = sbr.rel (%p116) target = $region24
    $region23: #{encoder_forward.94} parent=5 // pred_region
      %s120 = ssub.s32 %s9, 1
      %p121 = scmp.lt.s32.totalorder %s14, 1
      %s122 = scalar_select %p121, %s14, 1
      %s123 = smul.addr %s122, 8
      %s124 = smul.addr %s123, 8
      %s125 = scalar_lea.vmem %s0, %s124
      %p126 = pneg %p35
      %p127 = pneg %p32
      %p128 = pneg %p61
      %p129 = pneg %p58
      %p130 = scmp.lt.s32.totalorder %s14, 1
      %s131 = scalar_select %p130, %s14, 1
      %s132 = scalar_lea.vmem %s1, %s131
      %p133 = pneg %p87
      %p134 = pneg %p84
      %p135 = scmp.lt.s32.totalorder %s14, 1
      %s136 = scalar_select %p135, %s14, 1
      %s137 = scalar_lea.vmem %s2, %s136
      %p138 = scmp.lt.s32.totalorder %s14, 1
      %s139 = scalar_select %p138, %s14, 1
      %s140 = smul.addr %s139, 8
      %s141 = smul.addr %s140, 8
      %s142 = scalar_lea.vmem %s0, %s141
      %p143 = scmp.lt.s32.totalorder %s14, 1
      %s144 = scalar_select %p143, %s14, 1
      %s145 = scalar_lea.vmem %s1, %s144
      %p146 = scmp.lt.s32.totalorder %s14, 1
      %s147 = scalar_select %p146, %s14, 1
      %s148 = scalar_lea.vmem %s2, %s147
      %v149 = vld [vmem:[%s142] sm:$0xff]
      %v150 = vld [vmem:[%s142 + $0x8] sm:$0xff]
      %v151 = vld [vmem:[%s142 + $0x10] sm:$0xff]
      %v152 = vld [vmem:[%s142 + $0x18] sm:$0xff]
      %v153 = vld [vmem:[%s142 + $0x20] sm:$0xff]
      %v154 = vld [vmem:[%s142 + $0x28] sm:$0xff]
      %v155 = vld [vmem:[%s142 + $0x30] sm:$0xff]
      %v156 = vld [vmem:[%s142 + $0x38] sm:$0xff]
      %vm157 = vcmask 64512
      %v158 = vsel %vm157, %v149, 0.0
      %v159 = vsel %vm157, %v150, 0.0
      %v160 = vadd.f32 %v158, %v159
      %v161 = vsel %vm157, %v151, 0.0
      %v162 = vadd.f32 %v160, %v161
      %v163 = vsel %vm157, %v152, 0.0
      %v164 = vadd.f32 %v162, %v163
      %v165 = vsel %vm157, %v153, 0.0
      %v166 = vadd.f32 %v164, %v165
      %v167 = vsel %vm157, %v154, 0.0
      %v168 = vadd.f32 %v166, %v167
      %v169 = vsel %vm157, %v155, 0.0
      %v170 = vadd.f32 %v168, %v169
      %v171 = vsel %vm157, %v156, 0.0
      %v172 = vadd.f32 %v170, %v171
      %v173 = vrot.slane %v172, 4
      %v174 = vadd.f32 %v172, %v173
      %v175 = vrot.slane %v174, 2
      %v176 = vadd.f32 %v174, %v175
      %v177 = vrot.slane %v176, 1
      %v178 = vadd.f32 %v176, %v177
      %v179 = vrcp.pop 64.0
      %v180 = vmul.f32 %v178, %v179
      %vm181 = vcmask 57344
      %182 = vst.msk [vmem:[%s145] sm:$0x1] %vm181, %v180
      %v183 = vsel %vm157, %v149, -inf
      %v184 = vsel %vm157, %v150, -inf
      %v185 = vsel %vm157, %v151, -inf
      %v186 = vsel %vm157, %v152, -inf
      %v187 = vsel %vm157, %v153, -inf
      %v188 = vmax.f32 %v183, %v187
      %v189 = vsel %vm157, %v154, -inf
      %v190 = vmax.f32 %v184, %v189
      %v191 = vsel %vm157, %v155, -inf
      %v192 = vmax.f32 %v185, %v191
      %v193 = vsel %vm157, %v156, -inf
      %v194 = vmax.f32 %v186, %v193
      %v195 = vmax.f32 %v188, %v190
      %v196 = vmax.f32 %v192, %v194
      %v197 = vmax.f32 %v195, %v196
      %v198 = vrot.slane %v197, 4
      %v199 = vmax.f32 %v197, %v198
      %v200 = vrot.slane %v199, 2
      %v201 = vmax.f32 %v199, %v200
      %v202 = vrot.slane %v201, 1
      %v203 = vmax.f32 %v201, %v202
      %204 = vst.msk [vmem:[%s148] sm:$0x1] %vm181, %v203
      %p205 = scmp.lt.s32.totalorder %s14, 1
      %s206 = scalar_select %p205, %s14, 1
      %s207 = scalar_lea.vmem %s1, %s206
      %p208 = scmp.lt.s32.totalorder %s14, 1
      %s209 = scalar_select %p208, %s14, 1
      %s210 = scalar_lea.vmem %s2, %s209
      // Predicated region
      $region25: #{encoder_forward.94} parent=23 // pred_check
        %p211 = pneg %p58
      $region26: #{encoder_forward.94} parent=23 // pred_check_branch
        %213 = sbr.rel (%p211) target = $region28
      $region27: #{encoder_forward.94} parent=23 // pred_region
        _
      $region28: #{encoder_forward.94} parent=23 // pred_fallthru
        _
      // Predicated region
      $region29: #{encoder_forward.94} parent=23 // pred_check
        %p214 = pneg %p84
      $region30: #{encoder_forward.94} parent=23 // pred_check_branch
        %216 = sbr.rel (%p214) target = $region32
      $region31: #{encoder_forward.94} parent=23 // pred_region
        _
      $region32: #{encoder_forward.94} parent=23 // pred_fallthru
        _
    $region24: #{encoder_forward.94} parent=5 // pred_fallthru
      _
    %p217 = scmp.le.s32.totalorder 2, %s9
    // Predicated region
    $region33: #{encoder_forward.94} parent=5 // pred_check
      %p218 = pneg %p217
    $region34: #{encoder_forward.94} parent=5 // pred_check_branch
      %220 = sbr.rel (%p218) target = $region36
    $region35: #{encoder_forward.94} parent=5 // pred_region
      %s221 = ssub.s32 %s9, 2
      // Predicated region
      $region37: #{encoder_forward.94} parent=35 // pred_check
        %p222 = pneg %p64
      $region38: #{encoder_forward.94} parent=35 // pred_check_branch
        %224 = sbr.rel (%p222) target = $region40
      $region39: #{encoder_forward.94} parent=35 // pred_region
        %p225 = scmp.lt.s32.totalorder %s15, 1
        %s226 = scalar_select %p225, %s15, 1
        %s227 = scalar_lea.vmem %s1, %s226
      $region40: #{encoder_forward.94} parent=35 // pred_fallthru
        _
      // Predicated region
      $region41: #{encoder_forward.94} parent=35 // pred_check
        %p228 = pneg %p90
      $region42: #{encoder_forward.94} parent=35 // pred_check_branch
        %230 = sbr.rel (%p228) target = $region44
      $region43: #{encoder_forward.94} parent=35 // pred_region
        %p231 = scmp.lt.s32.totalorder %s15, 1
        %s232 = scalar_select %p231, %s15, 1
        %s233 = scalar_lea.vmem %s2, %s232
      $region44: #{encoder_forward.94} parent=35 // pred_fallthru
        _
    $region36: #{encoder_forward.94} parent=5 // pred_fallthru
      _
  $region6: #{encoder_forward.94} parent=0 // loop_footer
    %s13 = sadd.s32 1, %s9
  $region7: #{encoder_forward.94} parent=0 // loop_footer_branch
    %8 = sbr.rel target = $region3
  $region8: #{encoder_forward.94} parent=0 // loop_exit
    _

// kernel: encoder_forward.91
$region0: #{encoder_forward.91}
  #allocation0 [shape = 'u32[]', space=smem, size = 0x4, offset = 0x4, fixed_abs, tag = 'smem constant byte address 0x4 - core index']
  #allocation1 [shape = 'u32[144,128]{1,0:T(1,128)}', space=vmem, size = 0x12000, scoped, tag = 'internal scratch']
  %s0 = inlined_call_operand.vmem [shape: f32[128,128], index: 0, kind: input, shape index: {}]
  %s1 = inlined_call_operand.vmem [shape: f32[128,128], index: 1, kind: input, shape index: {}]
  %s2 = inlined_call_operand.vmem [shape: f32[1,128], index: 2, kind: input, shape index: {}]
  %s3 = inlined_call_operand.vmem [shape: f32[128,128], index: 3, kind: output, shape index: {}]
  %s4 = sld [smem:[#allocation0]]
  $region22: #{encoder_forward.91} parent=0
    _
  %s6 = ssub.s32 1, %s4
  %s7 = scalar_select 0, %s6, %s4
  // Predicated region
  $region2: #{encoder_forward.91} parent=0 // pred_check
    _
  $region3: #{encoder_forward.91} parent=0 // pred_check_branch
    %9 = sbr.rel (0) target = $region5
  $region4: #{encoder_forward.91} parent=0 // pred_region
    _
  $region5: #{encoder_forward.91} parent=0 // pred_fallthru
    _
  // Predicated region
  $region6: #{encoder_forward.91} parent=0 // pred_check
    _
  $region7: #{encoder_forward.91} parent=0 // pred_check_branch
    %11 = sbr.rel (0) target = $region9
  $region8: #{encoder_forward.91} parent=0 // pred_region
    _
  $region9: #{encoder_forward.91} parent=0 // pred_fallthru
    _
  // Predicated region
  $region10: #{encoder_forward.91} parent=0 // pred_check
    _
  $region11: #{encoder_forward.91} parent=0 // pred_check_branch
    %13 = sbr.rel (0) target = $region13
  $region12: #{encoder_forward.91} parent=0 // pred_region
    _
  $region13: #{encoder_forward.91} parent=0 // pred_fallthru
    _
  %v14 = vld [vmem:[%s0] sm:$0xff]
  %v15 = vld [vmem:[%s0 + $0x8] sm:$0xff]
  %v16 = vld [vmem:[%s0 + $0x10] sm:$0xff]
  %v17 = vld [vmem:[%s0 + $0x18] sm:$0xff]
  %v18 = vld [vmem:[%s0 + $0x20] sm:$0xff]
  %v19 = vld [vmem:[%s0 + $0x28] sm:$0xff]
  %v20 = vld [vmem:[%s0 + $0x30] sm:$0xff]
  %v21 = vld [vmem:[%s0 + $0x38] sm:$0xff]
  %v22 = vld [vmem:[%s0 + $0x40] sm:$0xff]
  %v23 = vld [vmem:[%s0 + $0x48] sm:$0xff]
  %v24 = vld [vmem:[%s0 + $0x50] sm:$0xff]
  %v25 = vld [vmem:[%s0 + $0x58] sm:$0xff]
  %v26 = vld [vmem:[%s0 + $0x60] sm:$0xff]
  %v27 = vld [vmem:[%s0 + $0x68] sm:$0xff]
  %v28 = vld [vmem:[%s0 + $0x70] sm:$0xff]
  %v29 = vld [vmem:[%s0 + $0x78] sm:$0xff]
  %v30 = vmul.f32 %v14, %v14
  %v31 = vmul.f32 %v15, %v15
  %v32 = vmul.f32 %v16, %v16
  %v33 = vmul.f32 %v17, %v17
  %v34 = vmul.f32 %v18, %v18
  %v35 = vmul.f32 %v19, %v19
  %v36 = vmul.f32 %v20, %v20
  %v37 = vmul.f32 %v21, %v21
  %v38 = vmul.f32 %v22, %v22
  %v39 = vmul.f32 %v23, %v23
  %v40 = vmul.f32 %v24, %v24
  %v41 = vmul.f32 %v25, %v25
  %v42 = vmul.f32 %v26, %v26
  %v43 = vmul.f32 %v27, %v27
  %v44 = vmul.f32 %v28, %v28
  %v45 = vmul.f32 %v29, %v29
  %v46 = vld [vmem:[%s1] sm:$0xff]
  %v47 = vld [vmem:[%s1 + $0x8] sm:$0xff]
  %v48 = vld [vmem:[%s1 + $0x10] sm:$0xff]
  %v49 = vld [vmem:[%s1 + $0x18] sm:$0xff]
  %v50 = vld [vmem:[%s1 + $0x20] sm:$0xff]
  %v51 = vld [vmem:[%s1 + $0x28] sm:$0xff]
  %v52 = vld [vmem:[%s1 + $0x30] sm:$0xff]
  %v53 = vld [vmem:[%s1 + $0x38] sm:$0xff]
  %v54 = vld [vmem:[%s1 + $0x40] sm:$0xff]
  %v55 = vld [vmem:[%s1 + $0x48] sm:$0xff]
  %v56 = vld [vmem:[%s1 + $0x50] sm:$0xff]
  %v57 = vld [vmem:[%s1 + $0x58] sm:$0xff]
  %v58 = vld [vmem:[%s1 + $0x60] sm:$0xff]
  %v59 = vld [vmem:[%s1 + $0x68] sm:$0xff]
  %v60 = vld [vmem:[%s1 + $0x70] sm:$0xff]
  %v61 = vld [vmem:[%s1 + $0x78] sm:$0xff]
  %v62 = vld [vmem:[%s2] sm:$0x1]
  %v64 = vlaneseq
  %v65 = vshrl.u32 %v64, 7
  %v66 = vsub.s32 0, %v65
  %v67 = vrot.slane %v62, %v66
  %69 = vmatprep.subr.mxu0 0.0
  %70 = vmatpush1.msra.mxu0 %v46
  %71 = vmatprep.subr.mxu0 0.0
  %72 = vmatpush1.msra.mxu0 %v47
  %73 = vmatprep.subr.mxu0 0.0
  %74 = vmatpush1.msra.mxu0 %v48
  %75 = vmatprep.subr.mxu0 0.0
  %76 = vmatpush1.msra.mxu0 %v49
  %77 = vmatprep.subr.mxu0 0.0
  %78 = vmatpush1.msra.mxu0 %v50
  %79 = vmatprep.subr.mxu0 0.0
  %80 = vmatpush1.msra.mxu0 %v51
  %81 = vmatprep.subr.mxu0 0.0
  %82 = vmatpush1.msra.mxu0 %v52
  %83 = vmatprep.subr.mxu0 0.0
  %84 = vmatpush1.msra.mxu0 %v53
  %85 = vmatprep.subr.mxu0 0.0
  %86 = vmatpush1.msra.mxu0 %v54
  %87 = vmatprep.subr.mxu0 0.0
  %88 = vmatpush1.msra.mxu0 %v55
  %89 = vmatprep.subr.mxu0 0.0
  %90 = vmatpush1.msra.mxu0 %v56
  %91 = vmatprep.subr.mxu0 0.0
  %92 = vmatpush1.msra.mxu0 %v57
  %93 = vmatprep.subr.mxu0 0.0
  %94 = vmatpush1.msra.mxu0 %v58
  %95 = vmatprep.subr.mxu0 0.0
  %96 = vmatpush1.msra.mxu0 %v59
  %97 = vmatprep.subr.mxu0 0.0
  %98 = vmatpush1.msra.mxu0 %v60
  %99 = vmatprep.subr.mxu0 0.0
  %100 = vmatpush1.msra.mxu0 %v61
  %101 = vmatprep.subr.mxu0 0.0
  %102 = vmatpush1.msra.mxu0 0.0
  %103 = vmatprep.subr.mxu0 0.0
  %104 = vmatpush1.msra.mxu0 0.0
  %105 = vmatprep.subr.mxu0 0.0
  %106 = vmatpush1.msra.mxu0 0.0
  %107 = vmatprep.subr.mxu0 0.0
  %108 = vmatpush1.msra.mxu0 0.0
  %109 = vmatprep.subr.mxu0 0.0
  %110 = vmatpush1.msra.mxu0 0.0
  %111 = vmatprep.subr.mxu0 0.0
  %112 = vmatpush1.msra.mxu0 0.0
  %113 = vmatprep.subr.mxu0 0.0
  %114 = vmatpush1.msra.mxu0 0.0
  %115 = vmatprep.subr.mxu0 0.0
  %116 = vmatpush1.msra.mxu0 0.0
  %117 = vmatprep.subr.mxu0 0.0
  %118 = vmatpush1.msra.mxu0 0.0
  %119 = vmatprep.subr.mxu0 0.0
  %120 = vmatpush1.msra.mxu0 0.0
  %121 = vmatprep.subr.mxu0 0.0
  %122 = vmatpush1.msra.mxu0 0.0
  %123 = vmatprep.subr.mxu0 0.0
  %124 = vmatpush1.msra.mxu0 0.0
  %125 = vmatprep.subr.mxu0 0.0
  %126 = vmatpush1.msra.mxu0 0.0
  %127 = vmatprep.subr.mxu0 0.0
  %128 = vmatpush1.msra.mxu0 0.0
  %129 = vmatprep.subr.mxu0 0.0
  %130 = vmatpush1.msra.mxu0 0.0
  %131 = vmatprep.subr.mxu0 0.0
  %132 = vmatpush1.msra.mxu0 0.0
  %133 = vmatprep.mubr.f32.mxu0 0.0
  %134 = vmatmul.mubr.f32.gmra.mrb[0].mxu0 %v30
  %v135 = vpop.f32.mrb[0].mxu0
  %v136 = vadd.f32 %v67, %v135
  %v137 = vpop.f32.mrb[0].mxu0
  %138 = vmatprep.mubr.f32.mxu0 0.0
  %139 = vmatmul.mubr.f32.gmra.mrb[0].mxu0 %v31
  %v140 = vpop.f32.mrb[0].mxu0
  %v141 = vadd.f32 %v67, %v140
  %v142 = vpop.f32.mrb[0].mxu0
  %143 = vmatprep.mubr.f32.mxu0 0.0
  %144 = vmatmul.mubr.f32.gmra.mrb[0].mxu0 %v32
  %v145 = vpop.f32.mrb[0].mxu0
  %v146 = vadd.f32 %v67, %v145
  %v147 = vpop.f32.mrb[0].mxu0
  %148 = vmatprep.mubr.f32.mxu0 0.0
  %149 = vmatmul.mubr.f32.gmra.mrb[0].mxu0 %v33
  %v150 = vpop.f32.mrb[0].mxu0
  %v151 = vadd.f32 %v67, %v150
  %v152 = vpop.f32.mrb[0].mxu0
  %153 = vmatprep.mubr.f32.mxu0 0.0
  %154 = vmatmul.mubr.f32.gmra.mrb[0].mxu0 %v34
  %v155 = vpop.f32.mrb[0].mxu0
  %v156 = vadd.f32 %v67, %v155
  %v157 = vpop.f32.mrb[0].mxu0
  %158 = vmatprep.mubr.f32.mxu0 0.0
  %159 = vmatmul.mubr.f32.gmra.mrb[0].mxu0 %v35
  %v160 = vpop.f32.mrb[0].mxu0
  %v161 = vadd.f32 %v67, %v160
  %v162 = vpop.f32.mrb[0].mxu0
  %163 = vmatprep.mubr.f32.mxu0 0.0
  %164 = vmatmul.mubr.f32.gmra.mrb[0].mxu0 %v36
  %v165 = vpop.f32.mrb[0].mxu0
  %v166 = vadd.f32 %v67, %v165
  %v167 = vpop.f32.mrb[0].mxu0
  %168 = vmatprep.mubr.f32.mxu0 0.0
  %169 = vmatmul.mubr.f32.gmra.mrb[0].mxu0 %v37
  %v170 = vpop.f32.mrb[0].mxu0
  %v171 = vadd.f32 %v67, %v170
  %v172 = vpop.f32.mrb[0].mxu0
  %173 = vmatprep.mubr.f32.mxu0 0.0
  %174 = vmatmul.mubr.f32.gmra.mrb[0].mxu0 %v38
  %v175 = vpop.f32.mrb[0].mxu0
  %v176 = vadd.f32 %v67, %v175
  %v177 = vpop.f32.mrb[0].mxu0
  %178 = vmatprep.mubr.f32.mxu0 0.0
  %179 = vmatmul.mubr.f32.gmra.mrb[0].mxu0 %v39
  %v180 = vpop.f32.mrb[0].mxu0
  %v181 = vadd.f32 %v67, %v180
  %v182 = vpop.f32.mrb[0].mxu0
  %183 = vmatprep.mubr.f32.mxu0 0.0
  %184 = vmatmul.mubr.f32.gmra.mrb[0].mxu0 %v40
  %v185 = vpop.f32.mrb[0].mxu0
  %v186 = vadd.f32 %v67, %v185
  %v187 = vpop.f32.mrb[0].mxu0
  %188 = vmatprep.mubr.f32.mxu0 0.0
  %189 = vmatmul.mubr.f32.gmra.mrb[0].mxu0 %v41
  %v190 = vpop.f32.mrb[0].mxu0
  %v191 = vadd.f32 %v67, %v190
  %v192 = vpop.f32.mrb[0].mxu0
  %193 = vmatprep.mubr.f32.mxu0 0.0
  %194 = vmatmul.mubr.f32.gmra.mrb[0].mxu0 %v42
  %v195 = vpop.f32.mrb[0].mxu0
  %v196 = vadd.f32 %v67, %v195
  %v197 = vpop.f32.mrb[0].mxu0
  %198 = vmatprep.mubr.f32.mxu0 0.0
  %199 = vmatmul.mubr.f32.gmra.mrb[0].mxu0 %v43
  %v200 = vpop.f32.mrb[0].mxu0
  %v201 = vadd.f32 %v67, %v200
  %v202 = vpop.f32.mrb[0].mxu0
  %203 = vmatprep.mubr.f32.mxu0 0.0
  %204 = vmatmul.mubr.f32.gmra.mrb[0].mxu0 %v44
  %v205 = vpop.f32.mrb[0].mxu0
  %v206 = vadd.f32 %v67, %v205
  %v207 = vpop.f32.mrb[0].mxu0
  %208 = vmatprep.mubr.f32.mxu0 0.0
  %209 = vmatmul.mubr.f32.gmra.mrb[0].mxu0 %v45
  %v210 = vpop.f32.mrb[0].mxu0
  %v211 = vadd.f32 %v67, %v210
  %v212 = vpop.f32.mrb[0].mxu0
  %213 = vdwg.mxu0
  %v214 = vmax.f32 %v136, 1e-06
  %v215 = vmax.f32 %v141, 1e-06
  %v216 = vmax.f32 %v146, 1e-06
  %v217 = vmax.f32 %v151, 1e-06
  %v218 = vmax.f32 %v156, 1e-06
  %v219 = vmax.f32 %v161, 1e-06
  %v220 = vmax.f32 %v166, 1e-06
  %v221 = vmax.f32 %v171, 1e-06
  %v222 = vmax.f32 %v176, 1e-06
  %v223 = vmax.f32 %v181, 1e-06
  %v224 = vmax.f32 %v186, 1e-06
  %v225 = vmax.f32 %v191, 1e-06
  %v226 = vmax.f32 %v196, 1e-06
  %v227 = vmax.f32 %v201, 1e-06
  %v228 = vmax.f32 %v206, 1e-06
  %v229 = vmax.f32 %v211, 1e-06
  %v230 = vrsqrt.pop %v214
  %v231 = vrsqrt.pop %v215
  %v232 = vrsqrt.pop %v216
  %v233 = vrsqrt.pop %v217
  %v234 = vrsqrt.pop %v218
  %v235 = vrsqrt.pop %v219
  %v236 = vrsqrt.pop %v220
  %v237 = vrsqrt.pop %v221
  %v238 = vrsqrt.pop %v222
  %v239 = vrsqrt.pop %v223
  %v240 = vrsqrt.pop %v224
  %v241 = vrsqrt.pop %v225
  %v242 = vrsqrt.pop %v226
  %v243 = vrsqrt.pop %v227
  %v244 = vrsqrt.pop %v228
  %v245 = vrsqrt.pop %v229
  %v246 = vmul.f32 %v14, %v230
  %v247 = vmul.f32 %v15, %v231
  %v248 = vmul.f32 %v16, %v232
  %v249 = vmul.f32 %v17, %v233
  %v250 = vmul.f32 %v18, %v234
  %v251 = vmul.f32 %v19, %v235
  %v252 = vmul.f32 %v20, %v236
  %v253 = vmul.f32 %v21, %v237
  %v254 = vmul.f32 %v22, %v238
  %v255 = vmul.f32 %v23, %v239
  %v256 = vmul.f32 %v24, %v240
  %v257 = vmul.f32 %v25, %v241
  %v258 = vmul.f32 %v26, %v242
  %v259 = vmul.f32 %v27, %v243
  %v260 = vmul.f32 %v28, %v244
  %v261 = vmul.f32 %v29, %v245
  %262 = vst [vmem:[%s3] sm:$0xff] %v246
  %263 = vst [vmem:[%s3 + $0x8] sm:$0xff] %v247
  %264 = vst [vmem:[%s3 + $0x10] sm:$0xff] %v248
  %265 = vst [vmem:[%s3 + $0x18] sm:$0xff] %v249
  %266 = vst [vmem:[%s3 + $0x20] sm:$0xff] %v250
  %267 = vst [vmem:[%s3 + $0x28] sm:$0xff] %v251
  %268 = vst [vmem:[%s3 + $0x30] sm:$0xff] %v252
  %269 = vst [vmem:[%s3 + $0x38] sm:$0xff] %v253
  %270 = vst [vmem:[%s3 + $0x40] sm:$0xff] %v254
  %271 = vst [vmem:[%s3 + $0x48] sm:$0xff] %v255
  %272 = vst [vmem:[%s3 + $0x50] sm:$0xff] %v256
  %273 = vst [vmem:[%s3 + $0x58] sm:$0xff] %v257
  %274 = vst [vmem:[%s3 + $0x60] sm:$0xff] %v258
  %275 = vst [vmem:[%s3 + $0x68] sm:$0xff] %v259
  %276 = vst [vmem:[%s3 + $0x70] sm:$0xff] %v260
  %277 = vst [vmem:[%s3 + $0x78] sm:$0xff] %v261
  // Predicated region
  $region14: #{encoder_forward.91} parent=0 // pred_check
    _
  $region15: #{encoder_forward.91} parent=0 // pred_check_branch
    %279 = sbr.rel (0) target = $region17
  $region16: #{encoder_forward.91} parent=0 // pred_region
    _
  $region17: #{encoder_forward.91} parent=0 // pred_fallthru
    _
  // Predicated region
  $region18: #{encoder_forward.91} parent=0 // pred_check
    _
  $region19: #{encoder_forward.91} parent=0 // pred_check_branch
    %281 = sbr.rel (0) target = $region21
  $region20: #{encoder_forward.91} parent=0 // pred_region
    _
  $region21: #{encoder_forward.91} parent=0 // pred_fallthru
    _

// kernel: encoder_forward.95
$region0: #{encoder_forward.95}
  #allocation0 [shape = 'u32[]', space=smem, size = 0x4, offset = 0x4, fixed_abs, tag = 'smem constant byte address 0x4 - core index']
  #allocation1 [shape = 'u32[144,128]{1,0:T(1,128)}', space=vmem, size = 0x12000, scoped, tag = 'internal scratch']
  %s0 = inlined_call_operand.vmem [shape: f32[2,64,8], index: 0, kind: input, shape index: {}]
  %s1 = inlined_call_operand.vmem [shape: f32[2,1,8], index: 1, kind: input, shape index: {}]
  %s2 = inlined_call_operand.vmem [shape: f32[2,64,8], index: 2, kind: output, shape index: {}]
  %s3 = sld [smem:[#allocation0]]
  $region41: #{encoder_forward.95} parent=0
    _
  %s5 = ssub.s32 1, %s3
  %s6 = scalar_select 0, %s5, %s3
  loop: start=0, step=1, limit=4
  $region2: #{encoder_forward.95} parent=0 // loop_pre_header
    _
  $region3: #{encoder_forward.95} parent=0 // loop_header
    %s8 = sphi 0, %s12
    %p9 = scmp.ge.s32.totalorder %s8, 4
    %s18 = sphi 0, %s20
    %s21 = sphi 0, %s18
    %s22 = sphi 0, %s21
    %s38 = sphi 0, %s22
    %s44 = sphi 0, %s46
    %s47 = sphi 0, %s44
    %s48 = sphi 0, %s47
    %s64 = sphi 0, %s48
    %s70 = sphi 0, %s72
    %s73 = sphi 0, %s70
    %s74 = sphi 0, %s73
    %s90 = sphi 0, %s74
  $region4: #{encoder_forward.95} parent=0 // loop_header_branch
    %11 = sbr.rel (%p9) target = $region8
  $region5: #{encoder_forward.95} parent=0 // loop_body
    %s13 = ssub.s32 %s8, 1
    %s14 = ssub.s32 %s8, 2
    %s15 = sadd.s32 %s8, 1
    %s16 = ssub.s32 %s8, %s15
    %p17 = scmp.eq.s32.totalorder %s16, 0
    %s19 = sadd.s32 %s18, 1
    %s20 = scalar_select %p17, %s18, %s19
    %p23 = pneg %p17
    %p24 = scmp.eq.s32.totalorder %s8, 1
    %p25 = por %p23, %p24
    %p26 = scmp.ne.s32.totalorder %s18, %s21
    %p27 = scmp.eq.s32.totalorder %s8, 0
    %p28 = por %p26, %p27
    %p29 = scmp.ne.s32.totalorder %s18, %s21
    %p30 = scmp.eq.s32.totalorder %s13, 1
    %p31 = por %p29, %p30
    %p32 = scmp.ne.s32.totalorder %s21, %s22
    %p33 = scmp.eq.s32.totalorder %s13, 0
    %p34 = por %p32, %p33
    %p35 = scmp.ne.s32.totalorder %s21, %s22
    %p36 = scmp.eq.s32.totalorder %s14, 1
    %p37 = por %p35, %p36
    %p39 = scmp.ne.s32.totalorder %s22, %s38
    %p40 = scmp.eq.s32.totalorder %s14, 0
    %p41 = por %p39, %p40
    %s42 = ssub.s32 %s8, %s15
    %p43 = scmp.eq.s32.totalorder %s42, 0
    %s45 = sadd.s32 %s44, 1
    %s46 = scalar_select %p43, %s44, %s45
    %p49 = pneg %p43
    %p50 = scmp.eq.s32.totalorder %s8, 1
    %p51 = por %p49, %p50
    %p52 = scmp.ne.s32.totalorder %s44, %s47
    %p53 = scmp.eq.s32.totalorder %s8, 0
    %p54 = por %p52, %p53
    %p55 = scmp.ne.s32.totalorder %s44, %s47
    %p56 = scmp.eq.s32.totalorder %s13, 1
    %p57 = por %p55, %p56
    %p58 = scmp.ne.s32.totalorder %s47, %s48
    %p59 = scmp.eq.s32.totalorder %s13, 0
    %p60 = por %p58, %p59
    %p61 = scmp.ne.s32.totalorder %s47, %s48
    %p62 = scmp.eq.s32.totalorder %s14, 1
    %p63 = por %p61, %p62
    %p65 = scmp.ne.s32.totalorder %s48, %s64
    %p66 = scmp.eq.s32.totalorder %s14, 0
    %p67 = por %p65, %p66
    %s68 = ssub.s32 %s8, %s15
    %p69 = scmp.eq.s32.totalorder %s68, 0
    %s71 = sadd.s32 %s70, 1
    %s72 = scalar_select %p69, %s70, %s71
    %p75 = pneg %p69
    %p76 = scmp.eq.s32.totalorder %s8, 1
    %p77 = por %p75, %p76
    %p78 = scmp.ne.s32.totalorder %s70, %s73
    %p79 = scmp.eq.s32.totalorder %s8, 0
    %p80 = por %p78, %p79
    %p81 = scmp.ne.s32.totalorder %s70, %s73
    %p82 = scmp.eq.s32.totalorder %s13, 1
    %p83 = por %p81, %p82
    %p84 = scmp.ne.s32.totalorder %s73, %s74
    %p85 = scmp.eq.s32.totalorder %s13, 0
    %p86 = por %p84, %p85
    %p87 = scmp.ne.s32.totalorder %s73, %s74
    %p88 = scmp.eq.s32.totalorder %s14, 1
    %p89 = por %p87, %p88
    %p91 = scmp.ne.s32.totalorder %s74, %s90
    %p92 = scmp.eq.s32.totalorder %s14, 0
    %p93 = por %p91, %p92
    %p94 = scmp.le.s32.totalorder 1, %s8
    %p95 = scmp.lt.s32.totalorder %s8, 3
    %p96 = pnand %p94, %p95
    %p97 = pneg %p96
    // Predicated region
    $region9: #{encoder_forward.95} parent=5 // pred_check
      _
    $region10: #{encoder_forward.95} parent=5 // pred_check_branch
      %99 = sbr.rel (%p96) target = $region12
    $region11: #{encoder_forward.95} parent=5 // pred_region
      %s100 = ssub.s32 %s8, 1
    $region12: #{encoder_forward.95} parent=5 // pred_fallthru
      _
    %p101 = scmp.lt.s32.totalorder %s8, 2
    // Predicated region
    $region13: #{encoder_forward.95} parent=5 // pred_check
      %p102 = pneg %p101
    $region14: #{encoder_forward.95} parent=5 // pred_check_branch
      %104 = sbr.rel (%p102) target = $region16
    $region15: #{encoder_forward.95} parent=5 // pred_region
      // Predicated region
      $region17: #{encoder_forward.95} parent=15 // pred_check
        %p105 = pneg %p28
      $region18: #{encoder_forward.95} parent=15 // pred_check_branch
        %107 = sbr.rel (%p105) target = $region20
      $region19: #{encoder_forward.95} parent=15 // pred_region
        %p108 = scmp.lt.s32.totalorder %s8, 1
        %s109 = scalar_select %p108, %s8, 1
        %s110 = smul.addr %s109, 8
        %s111 = smul.addr %s110, 8
        %s112 = scalar_lea.vmem %s0, %s111
      $region20: #{encoder_forward.95} parent=15 // pred_fallthru
        _
      // Predicated region
      $region21: #{encoder_forward.95} parent=15 // pred_check
        %p113 = pneg %p54
      $region22: #{encoder_forward.95} parent=15 // pred_check_branch
        %115 = sbr.rel (%p113) target = $region24
      $region23: #{encoder_forward.95} parent=15 // pred_region
        %p116 = scmp.lt.s32.totalorder %s8, 1
        %s117 = scalar_select %p116, %s8, 1
        %s118 = scalar_lea.vmem %s1, %s117
      $region24: #{encoder_forward.95} parent=15 // pred_fallthru
        _
    $region16: #{encoder_forward.95} parent=5 // pred_fallthru
      _
    %p119 = scmp.le.s32.totalorder 1, %s8
    %p120 = scmp.lt.s32.totalorder %s8, 3
    %p121 = pnand %p119, %p120
    %p122 = pneg %p121
    // Predicated region
    $region25: #{encoder_forward.95} parent=5 // pred_check
      _
    $region26: #{encoder_forward.95} parent=5 // pred_check_branch
      %124 = sbr.rel (%p121) target = $region28
    $region27: #{encoder_forward.95} parent=5 // pred_region
      %s125 = ssub.s32 %s8, 1
      %p126 = scmp.lt.s32.totalorder %s13, 1
      %s127 = scalar_select %p126, %s13, 1
      %s128 = smul.addr %s127, 8
      %s129 = smul.addr %s128, 8
      %s130 = scalar_lea.vmem %s0, %s129
      %p131 = pneg %p34
      %p132 = pneg %p31
      %p133 = scmp.lt.s32.totalorder %s13, 1
      %s134 = scalar_select %p133, %s13, 1
      %s135 = scalar_lea.vmem %s1, %s134
      %p136 = pneg %p60
      %p137 = pneg %p57
      %p138 = pneg %p86
      %p139 = pneg %p83
      %p140 = scmp.lt.s32.totalorder %s13, 1
      %s141 = scalar_select %p140, %s13, 1
      %s142 = smul.addr %s141, 8
      %s143 = smul.addr %s142, 8
      %s144 = scalar_lea.vmem %s2, %s143
      %p145 = scmp.lt.s32.totalorder %s13, 1
      %s146 = scalar_select %p145, %s13, 1
      %s147 = smul.addr %s146, 8
      %s148 = smul.addr %s147, 8
      %s149 = scalar_lea.vmem %s0, %s148
      %p150 = scmp.lt.s32.totalorder %s13, 1
      %s151 = scalar_select %p150, %s13, 1
      %s152 = scalar_lea.vmem %s1, %s151
      %p153 = scmp.lt.s32.totalorder %s13, 1
      %s154 = scalar_select %p153, %s13, 1
      %s155 = smul.addr %s154, 8
      %s156 = smul.addr %s155, 8
      %s157 = scalar_lea.vmem %s2, %s156
      %v158 = vld [vmem:[%s149] sm:$0xff]
      %v159 = vld [vmem:[%s149 + $0x8] sm:$0xff]
      %v160 = vld [vmem:[%s149 + $0x10] sm:$0xff]
      %v161 = vld [vmem:[%s149 + $0x18] sm:$0xff]
      %v162 = vld [vmem:[%s149 + $0x20] sm:$0xff]
      %v163 = vld [vmem:[%s149 + $0x28] sm:$0xff]
      %v164 = vld [vmem:[%s149 + $0x30] sm:$0xff]
      %v165 = vld [vmem:[%s149 + $0x38] sm:$0xff]
      %v166 = vld [vmem:[%s152] sm:$0x1]
      %v167 = vxor.u32 %v166, 2147483648
      %v168 = vmul.f32 %v167, 1.442695
      %v169 = vpow.pop %v168
      %v170 = vadd.f32 %v169, 1.0
      %v171 = vrcp.pop %v170
      %v172 = vmul.f32 1.0, %v171
      %v174 = vlaneseq
      %v175 = vshrl.u32 %v174, 7
      %v176 = vsub.s32 0, %v175
      %v177 = vrot.slane %v172, %v176
      %v179 = vmul.f32 %v158, %v177
      %v180 = vmul.f32 %v159, %v177
      %v181 = vmul.f32 %v160, %v177
      %v182 = vmul.f32 %v161, %v177
      %v183 = vmul.f32 %v162, %v177
      %v184 = vmul.f32 %v163, %v177
      %v185 = vmul.f32 %v164, %v177
      %v186 = vmul.f32 %v165, %v177
      %vm187 = vcmask 64512
      %188 = vst.msk [vmem:[%s157] sm:$0xff] %vm187, %v179
      %189 = vst.msk [vmem:[%s157 + $0x8] sm:$0xff] %vm187, %v180
      %190 = vst.msk [vmem:[%s157 + $0x10] sm:$0xff] %vm187, %v181
      %191 = vst.msk [vmem:[%s157 + $0x18] sm:$0xff] %vm187, %v182
      %192 = vst.msk [vmem:[%s157 + $0x20] sm:$0xff] %vm187, %v183
      %193 = vst.msk [vmem:[%s157 + $0x28] sm:$0xff] %vm187, %v184
      %194 = vst.msk [vmem:[%s157 + $0x30] sm:$0xff] %vm187, %v185
      %195 = vst.msk [vmem:[%s157 + $0x38] sm:$0xff] %vm187, %v186
      %p196 = scmp.lt.s32.totalorder %s13, 1
      %s197 = scalar_select %p196, %s13, 1
      %s198 = smul.addr %s197, 8
      %s199 = smul.addr %s198, 8
      %s200 = scalar_lea.vmem %s2, %s199
      // Predicated region
      $region29: #{encoder_forward.95} parent=27 // pred_check
        %p201 = pneg %p83
      $region30: #{encoder_forward.95} parent=27 // pred_check_branch
        %203 = sbr.rel (%p201) target = $region32
      $region31: #{encoder_forward.95} parent=27 // pred_region
        _
      $region32: #{encoder_forward.95} parent=27 // pred_fallthru
        _
    $region28: #{encoder_forward.95} parent=5 // pred_fallthru
      _
    %p204 = scmp.le.s32.totalorder 2, %s8
    // Predicated region
    $region33: #{encoder_forward.95} parent=5 // pred_check
      %p205 = pneg %p204
    $region34: #{encoder_forward.95} parent=5 // pred_check_branch
      %207 = sbr.rel (%p205) target = $region36
    $region35: #{encoder_forward.95} parent=5 // pred_region
      %s208 = ssub.s32 %s8, 2
      // Predicated region
      $region37: #{encoder_forward.95} parent=35 // pred_check
        %p209 = pneg %p89
      $region38: #{encoder_forward.95} parent=35 // pred_check_branch
        %211 = sbr.rel (%p209) target = $region40
      $region39: #{encoder_forward.95} parent=35 // pred_region
        %p212 = scmp.lt.s32.totalorder %s14, 1
        %s213 = scalar_select %p212, %s14, 1
        %s214 = smul.addr %s213, 8
        %s215 = smul.addr %s214, 8
        %s216 = scalar_lea.vmem %s2, %s215
      $region40: #{encoder_forward.95} parent=35 // pred_fallthru
        _
    $region36: #{encoder_forward.95} parent=5 // pred_fallthru
      _
  $region6: #{encoder_forward.95} parent=0 // loop_footer
    %s12 = sadd.s32 1, %s8
  $region7: #{encoder_forward.95} parent=0 // loop_footer_branch
    %7 = sbr.rel target = $region3
  $region8: #{encoder_forward.95} parent=0 // loop_exit
    _

// kernel: encoder_forward.108
$region0: #{encoder_forward.108}
  #allocation0 [shape = 'u32[]', space=smem, size = 0x4, offset = 0x4, fixed_abs, tag = 'smem constant byte address 0x4 - core index']
  #allocation1 [shape = 'u32[144,128]{1,0:T(1,128)}', space=vmem, size = 0x12000, scoped, tag = 'internal scratch']
  %s0 = inlined_call_operand.vmem [shape: bf16[128,128], index: 0, kind: input, shape index: {}]
  %s1 = inlined_call_operand.vmem [shape: bf16[128,128], index: 1, kind: input, shape index: {}]
  %s2 = inlined_call_operand.vmem [shape: f32[1,128], index: 2, kind: input, shape index: {}]
  %s3 = inlined_call_operand.vmem [shape: f32[128,128], index: 3, kind: output, shape index: {}]
  %s4 = sld [smem:[#allocation0]]
  $region22: #{encoder_forward.108} parent=0
    _
  %s6 = ssub.s32 1, %s4
  %s7 = scalar_select 0, %s6, %s4
  // Predicated region
  $region2: #{encoder_forward.108} parent=0 // pred_check
    _
  $region3: #{encoder_forward.108} parent=0 // pred_check_branch
    %9 = sbr.rel (0) target = $region5
  $region4: #{encoder_forward.108} parent=0 // pred_region
    _
  $region5: #{encoder_forward.108} parent=0 // pred_fallthru
    _
  // Predicated region
  $region6: #{encoder_forward.108} parent=0 // pred_check
    _
  $region7: #{encoder_forward.108} parent=0 // pred_check_branch
    %11 = sbr.rel (0) target = $region9
  $region8: #{encoder_forward.108} parent=0 // pred_region
    _
  $region9: #{encoder_forward.108} parent=0 // pred_fallthru
    _
  // Predicated region
  $region10: #{encoder_forward.108} parent=0 // pred_check
    _
  $region11: #{encoder_forward.108} parent=0 // pred_check_branch
    %13 = sbr.rel (0) target = $region13
  $region12: #{encoder_forward.108} parent=0 // pred_region
    _
  $region13: #{encoder_forward.108} parent=0 // pred_fallthru
    _
  %v15 = vld [vmem:[%s0] sm:$0xf]
  %v16 = vld [vmem:[%s0 + $0x4] sm:$0xf]
  %v17 = vld [vmem:[%s0 + $0x8] sm:$0xf]
  %v18 = vld [vmem:[%s0 + $0xc] sm:$0xf]
  %v19 = vld [vmem:[%s0 + $0x10] sm:$0xf]
  %v20 = vld [vmem:[%s0 + $0x14] sm:$0xf]
  %v21 = vld [vmem:[%s0 + $0x18] sm:$0xf]
  %v22 = vld [vmem:[%s0 + $0x1c] sm:$0xf]
  %v23 = vld [vmem:[%s0 + $0x20] sm:$0xf]
  %v24 = vld [vmem:[%s0 + $0x24] sm:$0xf]
  %v25 = vld [vmem:[%s0 + $0x28] sm:$0xf]
  %v26 = vld [vmem:[%s0 + $0x2c] sm:$0xf]
  %v27 = vld [vmem:[%s0 + $0x30] sm:$0xf]
  %v28 = vld [vmem:[%s0 + $0x34] sm:$0xf]
  %v29 = vld [vmem:[%s0 + $0x38] sm:$0xf]
  %v30 = vld [vmem:[%s0 + $0x3c] sm:$0xf]
  %v31 = vld [vmem:[%s1] sm:$0xf]
  %v32 = vld [vmem:[%s1 + $0x4] sm:$0xf]
  %v33 = vld [vmem:[%s1 + $0x8] sm:$0xf]
  %v34 = vld [vmem:[%s1 + $0xc] sm:$0xf]
  %v35 = vld [vmem:[%s1 + $0x10] sm:$0xf]
  %v36 = vld [vmem:[%s1 + $0x14] sm:$0xf]
  %v37 = vld [vmem:[%s1 + $0x18] sm:$0xf]
  %v38 = vld [vmem:[%s1 + $0x1c] sm:$0xf]
  %v39 = vld [vmem:[%s1 + $0x20] sm:$0xf]
  %v40 = vld [vmem:[%s1 + $0x24] sm:$0xf]
  %v41 = vld [vmem:[%s1 + $0x28] sm:$0xf]
  %v42 = vld [vmem:[%s1 + $0x2c] sm:$0xf]
  %v43 = vld [vmem:[%s1 + $0x30] sm:$0xf]
  %v44 = vld [vmem:[%s1 + $0x34] sm:$0xf]
  %v45 = vld [vmem:[%s1 + $0x38] sm:$0xf]
  %v46 = vld [vmem:[%s1 + $0x3c] sm:$0xf]
  %v47 = vld [vmem:[%s2] sm:$0x1]
  %v49 = vlaneseq
  %v50 = vshrl.u32 %v49, 7
  %v51 = vsub.s32 0, %v50
  %v52 = vrot.slane %v47, %v51
  %v70 = vunpack.c.l.b16 %v15
  %v71 = vunpack.c.l.b16 %v16
  %v72 = vunpack.c.l.b16 %v17
  %v73 = vunpack.c.l.b16 %v18
  %v74 = vunpack.c.l.b16 %v19
  %v75 = vunpack.c.l.b16 %v20
  %v76 = vunpack.c.l.b16 %v21
  %v77 = vunpack.c.l.b16 %v22
  %v78 = vunpack.c.l.b16 %v23
  %v79 = vunpack.c.l.b16 %v24
  %v80 = vunpack.c.l.b16 %v25
  %v81 = vunpack.c.l.b16 %v26
  %v82 = vunpack.c.l.b16 %v27
  %v83 = vunpack.c.l.b16 %v28
  %v84 = vunpack.c.l.b16 %v29
  %v85 = vunpack.c.l.b16 %v30
  %v86 = vpack.c.b16 %v71, %v70
  %v87 = vpack.c.b16 %v73, %v72
  %v88 = vpack.c.b16 %v75, %v74
  %v89 = vpack.c.b16 %v77, %v76
  %v90 = vpack.c.b16 %v79, %v78
  %v91 = vpack.c.b16 %v81, %v80
  %v92 = vpack.c.b16 %v83, %v82
  %v93 = vpack.c.b16 %v85, %v84
  %v118 = vunpack.c.l.b16 %v31
  %v119 = vunpack.c.l.b16 %v32
  %v120 = vunpack.c.l.b16 %v33
  %v121 = vunpack.c.l.b16 %v34
  %v122 = vunpack.c.l.b16 %v35
  %v123 = vunpack.c.l.b16 %v36
  %v124 = vunpack.c.l.b16 %v37
  %v125 = vunpack.c.l.b16 %v38
  %v126 = vunpack.c.l.b16 %v39
  %v127 = vunpack.c.l.b16 %v40
  %v128 = vunpack.c.l.b16 %v41
  %v129 = vunpack.c.l.b16 %v42
  %v130 = vunpack.c.l.b16 %v43
  %v131 = vunpack.c.l.b16 %v44
  %v132 = vunpack.c.l.b16 %v45
  %v133 = vunpack.c.l.b16 %v46
  %v134 = vpack.c.b16 %v119, %v118
  %v135 = vpack.c.b16 %v121, %v120
  %v136 = vpack.c.b16 %v123, %v122
  %v137 = vpack.c.b16 %v125, %v124
  %v138 = vpack.c.b16 %v127, %v126
  %v139 = vpack.c.b16 %v129, %v128
  %v140 = vpack.c.b16 %v131, %v130
  %v141 = vpack.c.b16 %v133, %v132
  %150 = vmatprep.subr.bf16.mxu0 0
  %151 = vmatpush1.bf16.msra.mxu0 %v134
  %152 = vmatprep.subr.bf16.mxu0 0
  %153 = vmatpush1.bf16.msra.mxu0 %v135
  %154 = vmatprep.subr.bf16.mxu0 0
  %155 = vmatpush1.bf16.msra.mxu0 %v136
  %156 = vmatprep.subr.bf16.mxu0 0
  %157 = vmatpush1.bf16.msra.mxu0 %v137
  %158 = vmatprep.subr.bf16.mxu0 0
  %159 = vmatpush1.bf16.msra.mxu0 %v138
  %160 = vmatprep.subr.bf16.mxu0 0
  %161 = vmatpush1.bf16.msra.mxu0 %v139
  %162 = vmatprep.subr.bf16.mxu0 0
  %163 = vmatpush1.bf16.msra.mxu0 %v140
  %164 = vmatprep.subr.bf16.mxu0 0
  %165 = vmatpush1.bf16.msra.mxu0 %v141
  %166 = vmatprep.subr.bf16.mxu0 0
  %167 = vmatpush1.bf16.msra.mxu0 0
  %168 = vmatprep.subr.bf16.mxu0 0
  %169 = vmatpush1.bf16.msra.mxu0 0
  %170 = vmatprep.subr.bf16.mxu0 0
  %171 = vmatpush1.bf16.msra.mxu0 0
  %172 = vmatprep.subr.bf16.mxu0 0
  %173 = vmatpush1.bf16.msra.mxu0 0
  %174 = vmatprep.subr.bf16.mxu0 0
  %175 = vmatpush1.bf16.msra.mxu0 0
  %176 = vmatprep.subr.bf16.mxu0 0
  %177 = vmatpush1.bf16.msra.mxu0 0
  %178 = vmatprep.subr.bf16.mxu0 0
  %179 = vmatpush1.bf16.msra.mxu0 0
  %180 = vmatprep.subr.bf16.mxu0 0
  %181 = vmatpush1.bf16.msra.mxu0 0
  %182 = vmatprep.mubr.bf16.mxu0 0
  %183 = vmatmul.mubr.bf16.gmra.mrb[0].mxu0 %v86
  %v184 = vpop.f32.mrb[0].mxu0
  %v185 = vadd.f32 %v52, %v184
  %v186 = vpop.f32.mrb[0].mxu0
  %v187 = vpop.f32.mrb[0].mxu0
  %v188 = vadd.f32 %v52, %v187
  %v189 = vpop.f32.mrb[0].mxu0
  %190 = vmatprep.mubr.bf16.mxu0 0
  %191 = vmatmul.mubr.bf16.gmra.mrb[0].mxu0 %v87
  %v192 = vpop.f32.mrb[0].mxu0
  %v193 = vadd.f32 %v52, %v192
  %v194 = vpop.f32.mrb[0].mxu0
  %v195 = vpop.f32.mrb[0].mxu0
  %v196 = vadd.f32 %v52, %v195
  %v197 = vpop.f32.mrb[0].mxu0
  %198 = vmatprep.mubr.bf16.mxu0 0
  %199 = vmatmul.mubr.bf16.gmra.mrb[0].mxu0 %v88
  %v200 = vpop.f32.mrb[0].mxu0
  %v201 = vadd.f32 %v52, %v200
  %v202 = vpop.f32.mrb[0].mxu0
  %v203 = vpop.f32.mrb[0].mxu0
  %v204 = vadd.f32 %v52, %v203
  %v205 = vpop.f32.mrb[0].mxu0
  %206 = vmatprep.mubr.bf16.mxu0 0
  %207 = vmatmul.mubr.bf16.gmra.mrb[0].mxu0 %v89
  %v208 = vpop.f32.mrb[0].mxu0
  %v209 = vadd.f32 %v52, %v208
  %v210 = vpop.f32.mrb[0].mxu0
  %v211 = vpop.f32.mrb[0].mxu0
  %v212 = vadd.f32 %v52, %v211
  %v213 = vpop.f32.mrb[0].mxu0
  %214 = vmatprep.mubr.bf16.mxu0 0
  %215 = vmatmul.mubr.bf16.gmra.mrb[0].mxu0 %v90
  %v216 = vpop.f32.mrb[0].mxu0
  %v217 = vadd.f32 %v52, %v216
  %v218 = vpop.f32.mrb[0].mxu0
  %v219 = vpop.f32.mrb[0].mxu0
  %v220 = vadd.f32 %v52, %v219
  %v221 = vpop.f32.mrb[0].mxu0
  %222 = vmatprep.mubr.bf16.mxu0 0
  %223 = vmatmul.mubr.bf16.gmra.mrb[0].mxu0 %v91
  %v224 = vpop.f32.mrb[0].mxu0
  %v225 = vadd.f32 %v52, %v224
  %v226 = vpop.f32.mrb[0].mxu0
  %v227 = vpop.f32.mrb[0].mxu0
  %v228 = vadd.f32 %v52, %v227
  %v229 = vpop.f32.mrb[0].mxu0
  %230 = vmatprep.mubr.bf16.mxu0 0
  %231 = vmatmul.mubr.bf16.gmra.mrb[0].mxu0 %v92
  %v232 = vpop.f32.mrb[0].mxu0
  %v233 = vadd.f32 %v52, %v232
  %v234 = vpop.f32.mrb[0].mxu0
  %v235 = vpop.f32.mrb[0].mxu0
  %v236 = vadd.f32 %v52, %v235
  %v237 = vpop.f32.mrb[0].mxu0
  %238 = vmatprep.mubr.bf16.mxu0 0
  %239 = vmatmul.mubr.bf16.gmra.mrb[0].mxu0 %v93
  %v240 = vpop.f32.mrb[0].mxu0
  %v241 = vadd.f32 %v52, %v240
  %v242 = vpop.f32.mrb[0].mxu0
  %v243 = vpop.f32.mrb[0].mxu0
  %v244 = vadd.f32 %v52, %v243
  %v245 = vpop.f32.mrb[0].mxu0
  %246 = vdwg.mxu0
  %v247 = vmax.f32 %v185, 0.0
  %v248 = vmax.f32 %v188, 0.0
  %v249 = vmax.f32 %v193, 0.0
  %v250 = vmax.f32 %v196, 0.0
  %v251 = vmax.f32 %v201, 0.0
  %v252 = vmax.f32 %v204, 0.0
  %v253 = vmax.f32 %v209, 0.0
  %v254 = vmax.f32 %v212, 0.0
  %v255 = vmax.f32 %v217, 0.0
  %v256 = vmax.f32 %v220, 0.0
  %v257 = vmax.f32 %v225, 0.0
  %v258 = vmax.f32 %v228, 0.0
  %v259 = vmax.f32 %v233, 0.0
  %v260 = vmax.f32 %v236, 0.0
  %v261 = vmax.f32 %v241, 0.0
  %v262 = vmax.f32 %v244, 0.0
  %263 = vst [vmem:[%s3] sm:$0xff] %v247
  %264 = vst [vmem:[%s3 + $0x8] sm:$0xff] %v248
  %265 = vst [vmem:[%s3 + $0x10] sm:$0xff] %v249
  %266 = vst [vmem:[%s3 + $0x18] sm:$0xff] %v250
  %267 = vst [vmem:[%s3 + $0x20] sm:$0xff] %v251
  %268 = vst [vmem:[%s3 + $0x28] sm:$0xff] %v252
  %269 = vst [vmem:[%s3 + $0x30] sm:$0xff] %v253
  %270 = vst [vmem:[%s3 + $0x38] sm:$0xff] %v254
  %271 = vst [vmem:[%s3 + $0x40] sm:$0xff] %v255
  %272 = vst [vmem:[%s3 + $0x48] sm:$0xff] %v256
  %273 = vst [vmem:[%s3 + $0x50] sm:$0xff] %v257
  %274 = vst [vmem:[%s3 + $0x58] sm:$0xff] %v258
  %275 = vst [vmem:[%s3 + $0x60] sm:$0xff] %v259
  %276 = vst [vmem:[%s3 + $0x68] sm:$0xff] %v260
  %277 = vst [vmem:[%s3 + $0x70] sm:$0xff] %v261
  %278 = vst [vmem:[%s3 + $0x78] sm:$0xff] %v262
  // Predicated region
  $region14: #{encoder_forward.108} parent=0 // pred_check
    _
  $region15: #{encoder_forward.108} parent=0 // pred_check_branch
    %280 = sbr.rel (0) target = $region17
  $region16: #{encoder_forward.108} parent=0 // pred_region
    _
  $region17: #{encoder_forward.108} parent=0 // pred_fallthru
    _
  // Predicated region
  $region18: #{encoder_forward.108} parent=0 // pred_check
    _
  $region19: #{encoder_forward.108} parent=0 // pred_check_branch
    %282 = sbr.rel (0) target = $region21
  $region20: #{encoder_forward.108} parent=0 // pred_region
    _
  $region21: #{encoder_forward.108} parent=0 // pred_fallthru
    _

// kernel: encoder_forward.111
$region0: #{encoder_forward.111}
  #allocation0 [shape = 'u32[]', space=smem, size = 0x4, offset = 0x4, fixed_abs, tag = 'smem constant byte address 0x4 - core index']
  #allocation1 [shape = 'u32[144,128]{1,0:T(1,128)}', space=vmem, size = 0x12000, scoped, tag = 'internal scratch']
  %s0 = inlined_call_operand.vmem [shape: f32[8,512], index: 0, kind: input, shape index: {}]
  %s1 = inlined_call_operand.vmem [shape: f32[8,512], index: 1, kind: input, shape index: {}]
  %s2 = inlined_call_operand.vmem [shape: f32[8,512], index: 2, kind: output, shape index: {}]
  %s3 = sld [smem:[#allocation0]]
  $region18: #{encoder_forward.111} parent=0
    _
  %s5 = ssub.s32 1, %s3
  %s6 = scalar_select 0, %s5, %s3
  // Predicated region
  $region2: #{encoder_forward.111} parent=0 // pred_check
    _
  $region3: #{encoder_forward.111} parent=0 // pred_check_branch
    %8 = sbr.rel (0) target = $region5
  $region4: #{encoder_forward.111} parent=0 // pred_region
    _
  $region5: #{encoder_forward.111} parent=0 // pred_fallthru
    _
  // Predicated region
  $region6: #{encoder_forward.111} parent=0 // pred_check
    _
  $region7: #{encoder_forward.111} parent=0 // pred_check_branch
    %10 = sbr.rel (0) target = $region9
  $region8: #{encoder_forward.111} parent=0 // pred_region
    _
  $region9: #{encoder_forward.111} parent=0 // pred_fallthru
    _
  %v11 = vld [vmem:[%s0] sm:$0xff]
  %v12 = vld [vmem:[%s0 + $0x8] sm:$0xff]
  %v13 = vld [vmem:[%s0 + $0x10] sm:$0xff]
  %v14 = vld [vmem:[%s0 + $0x18] sm:$0xff]
  %v15 = vld [vmem:[%s1] sm:$0xff]
  %v16 = vld [vmem:[%s1 + $0x8] sm:$0xff]
  %v17 = vld [vmem:[%s1 + $0x10] sm:$0xff]
  %v18 = vld [vmem:[%s1 + $0x18] sm:$0xff]
  %v19 = vadd.f32 %v11, %v15
  %v20 = vadd.f32 %v12, %v16
  %v21 = vadd.f32 %v13, %v17
  %v22 = vadd.f32 %v14, %v18
  %v23 = vmax.f32 %v19, 0.0
  %v24 = vmax.f32 %v20, 0.0
  %v25 = vmax.f32 %v21, 0.0
  %v26 = vmax.f32 %v22, 0.0
  %27 = vst [vmem:[%s2] sm:$0xff] %v23
  %28 = vst [vmem:[%s2 + $0x8] sm:$0xff] %v24
  %29 = vst [vmem:[%s2 + $0x10] sm:$0xff] %v25
  %30 = vst [vmem:[%s2 + $0x18] sm:$0xff] %v26
  // Predicated region
  $region10: #{encoder_forward.111} parent=0 // pred_check
    _
  $region11: #{encoder_forward.111} parent=0 // pred_check_branch
    %32 = sbr.rel (0) target = $region13
  $region12: #{encoder_forward.111} parent=0 // pred_region
    _
  $region13: #{encoder_forward.111} parent=0 // pred_fallthru
    _
  // Predicated region
  $region14: #{encoder_forward.111} parent=0 // pred_check
    _
  $region15: #{encoder_forward.111} parent=0 // pred_check_branch
    %34 = sbr.rel (0) target = $region17
  $region16: #{encoder_forward.111} parent=0 // pred_region
    _
  $region17: #{encoder_forward.111} parent=0 // pred_fallthru
    _

// kernel: encoder_forward.121
$region0: #{encoder_forward.121}
  #allocation0 [shape = 'u32[]', space=smem, size = 0x4, offset = 0x4, fixed_abs, tag = 'smem constant byte address 0x4 - core index']
  #allocation1 [shape = 'u32[144,128]{1,0:T(1,128)}', space=vmem, size = 0x12000, scoped, tag = 'internal scratch']
  %s0 = inlined_call_operand.vmem [shape: f32[8,512], index: 0, kind: input, shape index: {}]
  %s1 = inlined_call_operand.vmem [shape: f32[8,512], index: 1, kind: input, shape index: {}]
  %s2 = inlined_call_operand.vmem [shape: f32[8,512], index: 2, kind: input, shape index: {}]
  %s3 = inlined_call_operand.vmem [shape: f32[8,512], index: 3, kind: output, shape index: {}]
  %s4 = sld [smem:[#allocation0]]
  $region22: #{encoder_forward.121} parent=0
    _
  %s6 = ssub.s32 1, %s4
  %s7 = scalar_select 0, %s6, %s4
  // Predicated region
  $region2: #{encoder_forward.121} parent=0 // pred_check
    _
  $region3: #{encoder_forward.121} parent=0 // pred_check_branch
    %9 = sbr.rel (0) target = $region5
  $region4: #{encoder_forward.121} parent=0 // pred_region
    _
  $region5: #{encoder_forward.121} parent=0 // pred_fallthru
    _
  // Predicated region
  $region6: #{encoder_forward.121} parent=0 // pred_check
    _
  $region7: #{encoder_forward.121} parent=0 // pred_check_branch
    %11 = sbr.rel (0) target = $region9
  $region8: #{encoder_forward.121} parent=0 // pred_region
    _
  $region9: #{encoder_forward.121} parent=0 // pred_fallthru
    _
  // Predicated region
  $region10: #{encoder_forward.121} parent=0 // pred_check
    _
  $region11: #{encoder_forward.121} parent=0 // pred_check_branch
    %13 = sbr.rel (0) target = $region13
  $region12: #{encoder_forward.121} parent=0 // pred_region
    _
  $region13: #{encoder_forward.121} parent=0 // pred_fallthru
    _
  %v14 = vld [vmem:[%s0] sm:$0xff]
  %v15 = vld [vmem:[%s0 + $0x8] sm:$0xff]
  %v16 = vld [vmem:[%s0 + $0x10] sm:$0xff]
  %v17 = vld [vmem:[%s0 + $0x18] sm:$0xff]
  %v18 = vld [vmem:[%s1] sm:$0xff]
  %v19 = vld [vmem:[%s1 + $0x8] sm:$0xff]
  %v20 = vld [vmem:[%s1 + $0x10] sm:$0xff]
  %v21 = vld [vmem:[%s1 + $0x18] sm:$0xff]
  %v22 = vxor.u32 %v18, 2147483648
  %v23 = vxor.u32 %v19, 2147483648
  %v24 = vxor.u32 %v20, 2147483648
  %v25 = vxor.u32 %v21, 2147483648
  %v26 = vmul.f32 %v22, 1.442695
  %v27 = vpow.pop %v26
  %v28 = vmul.f32 %v23, 1.442695
  %v29 = vpow.pop %v28
  %v30 = vmul.f32 %v24, 1.442695
  %v31 = vpow.pop %v30
  %v32 = vmul.f32 %v25, 1.442695
  %v33 = vpow.pop %v32
  %v34 = vadd.f32 %v27, 1.0
  %v35 = vadd.f32 %v29, 1.0
  %v36 = vadd.f32 %v31, 1.0
  %v37 = vadd.f32 %v33, 1.0
  %v38 = vrcp.pop %v34
  %v39 = vmul.f32 1.0, %v38
  %v40 = vrcp.pop %v35
  %v41 = vmul.f32 1.0, %v40
  %v42 = vrcp.pop %v36
  %v43 = vmul.f32 1.0, %v42
  %v44 = vrcp.pop %v37
  %v45 = vmul.f32 1.0, %v44
  %v46 = vmul.f32 %v14, %v39
  %v47 = vmul.f32 %v15, %v41
  %v48 = vmul.f32 %v16, %v43
  %v49 = vmul.f32 %v17, %v45
  %v50 = vld [vmem:[%s2] sm:$0xff]
  %v51 = vld [vmem:[%s2 + $0x8] sm:$0xff]
  %v52 = vld [vmem:[%s2 + $0x10] sm:$0xff]
  %v53 = vld [vmem:[%s2 + $0x18] sm:$0xff]
  %v54 = vadd.f32 %v46, %v50
  %v55 = vadd.f32 %v47, %v51
  %v56 = vadd.f32 %v48, %v52
  %v57 = vadd.f32 %v49, %v53
  %58 = vst [vmem:[%s3] sm:$0xff] %v54
  %59 = vst [vmem:[%s3 + $0x8] sm:$0xff] %v55
  %60 = vst [vmem:[%s3 + $0x10] sm:$0xff] %v56
  %61 = vst [vmem:[%s3 + $0x18] sm:$0xff] %v57
  // Predicated region
  $region14: #{encoder_forward.121} parent=0 // pred_check
    _
  $region15: #{encoder_forward.121} parent=0 // pred_check_branch
    %63 = sbr.rel (0) target = $region17
  $region16: #{encoder_forward.121} parent=0 // pred_region
    _
  $region17: #{encoder_forward.121} parent=0 // pred_fallthru
    _
  // Predicated region
  $region18: #{encoder_forward.121} parent=0 // pred_check
    _
  $region19: #{encoder_forward.121} parent=0 // pred_check_branch
    %65 = sbr.rel (0) target = $region21
  $region20: #{encoder_forward.121} parent=0 // pred_region
    _
  $region21: #{encoder_forward.121} parent=0 // pred_fallthru
    _

// kernel: encoder_forward.128
$region0: #{encoder_forward.128}
  #allocation0 [shape = 'u32[]', space=smem, size = 0x4, offset = 0x4, fixed_abs, tag = 'smem constant byte address 0x4 - core index']
  #allocation1 [shape = 'u32[144,128]{1,0:T(1,128)}', space=vmem, size = 0x12000, scoped, tag = 'internal scratch']
  %s0 = inlined_call_operand.vmem [shape: bf16[32,128], index: 0, kind: input, shape index: {}]
  %s1 = inlined_call_operand.vmem [shape: bf16[128,128], index: 1, kind: input, shape index: {}]
  %s2 = inlined_call_operand.vmem [shape: f32[1,128], index: 2, kind: input, shape index: {}]
  %s3 = inlined_call_operand.vmem [shape: f32[32,128], index: 3, kind: output, shape index: {}]
  %s4 = sld [smem:[#allocation0]]
  $region22: #{encoder_forward.128} parent=0
    _
  %s6 = ssub.s32 1, %s4
  %s7 = scalar_select 0, %s6, %s4
  // Predicated region
  $region2: #{encoder_forward.128} parent=0 // pred_check
    _
  $region3: #{encoder_forward.128} parent=0 // pred_check_branch
    %9 = sbr.rel (0) target = $region5
  $region4: #{encoder_forward.128} parent=0 // pred_region
    _
  $region5: #{encoder_forward.128} parent=0 // pred_fallthru
    _
  // Predicated region
  $region6: #{encoder_forward.128} parent=0 // pred_check
    _
  $region7: #{encoder_forward.128} parent=0 // pred_check_branch
    %11 = sbr.rel (0) target = $region9
  $region8: #{encoder_forward.128} parent=0 // pred_region
    _
  $region9: #{encoder_forward.128} parent=0 // pred_fallthru
    _
  // Predicated region
  $region10: #{encoder_forward.128} parent=0 // pred_check
    _
  $region11: #{encoder_forward.128} parent=0 // pred_check_branch
    %13 = sbr.rel (0) target = $region13
  $region12: #{encoder_forward.128} parent=0 // pred_region
    _
  $region13: #{encoder_forward.128} parent=0 // pred_fallthru
    _
  %v15 = vld [vmem:[%s0] sm:$0xf]
  %v16 = vld [vmem:[%s0 + $0x4] sm:$0xf]
  %v17 = vld [vmem:[%s0 + $0x8] sm:$0xf]
  %v18 = vld [vmem:[%s0 + $0xc] sm:$0xf]
  %v19 = vld [vmem:[%s1] sm:$0xf]
  %v20 = vld [vmem:[%s1 + $0x4] sm:$0xf]
  %v21 = vld [vmem:[%s1 + $0x8] sm:$0xf]
  %v22 = vld [vmem:[%s1 + $0xc] sm:$0xf]
  %v23 = vld [vmem:[%s1 + $0x10] sm:$0xf]
  %v24 = vld [vmem:[%s1 + $0x14] sm:$0xf]
  %v25 = vld [vmem:[%s1 + $0x18] sm:$0xf]
  %v26 = vld [vmem:[%s1 + $0x1c] sm:$0xf]
  %v27 = vld [vmem:[%s1 + $0x20] sm:$0xf]
  %v28 = vld [vmem:[%s1 + $0x24] sm:$0xf]
  %v29 = vld [vmem:[%s1 + $0x28] sm:$0xf]
  %v30 = vld [vmem:[%s1 + $0x2c] sm:$0xf]
  %v31 = vld [vmem:[%s1 + $0x30] sm:$0xf]
  %v32 = vld [vmem:[%s1 + $0x34] sm:$0xf]
  %v33 = vld [vmem:[%s1 + $0x38] sm:$0xf]
  %v34 = vld [vmem:[%s1 + $0x3c] sm:$0xf]
  %v35 = vld [vmem:[%s2] sm:$0x1]
  %v37 = vlaneseq
  %v38 = vshrl.u32 %v37, 7
  %v39 = vsub.s32 0, %v38
  %v40 = vrot.slane %v35, %v39
  %v46 = vunpack.c.l.b16 %v15
  %v47 = vunpack.c.l.b16 %v16
  %v48 = vunpack.c.l.b16 %v17
  %v49 = vunpack.c.l.b16 %v18
  %v50 = vpack.c.b16 %v47, %v46
  %v51 = vpack.c.b16 %v49, %v48
  %v70 = vunpack.c.l.b16 %v19
  %v71 = vunpack.c.l.b16 %v20
  %v72 = vunpack.c.l.b16 %v21
  %v73 = vunpack.c.l.b16 %v22
  %v74 = vunpack.c.l.b16 %v23
  %v75 = vunpack.c.l.b16 %v24
  %v76 = vunpack.c.l.b16 %v25
  %v77 = vunpack.c.l.b16 %v26
  %v78 = vunpack.c.l.b16 %v27
  %v79 = vunpack.c.l.b16 %v28
  %v80 = vunpack.c.l.b16 %v29
  %v81 = vunpack.c.l.b16 %v30
  %v82 = vunpack.c.l.b16 %v31
  %v83 = vunpack.c.l.b16 %v32
  %v84 = vunpack.c.l.b16 %v33
  %v85 = vunpack.c.l.b16 %v34
  %v86 = vpack.c.b16 %v71, %v70
  %v87 = vpack.c.b16 %v73, %v72
  %v88 = vpack.c.b16 %v75, %v74
  %v89 = vpack.c.b16 %v77, %v76
  %v90 = vpack.c.b16 %v79, %v78
  %v91 = vpack.c.b16 %v81, %v80
  %v92 = vpack.c.b16 %v83, %v82
  %v93 = vpack.c.b16 %v85, %v84
  %102 = vmatprep.subr.bf16.mxu0 0
  %103 = vmatpush1.bf16.msra.mxu0 %v86
  %104 = vmatprep.subr.bf16.mxu0 0
  %105 = vmatpush1.bf16.msra.mxu0 %v87
  %106 = vmatprep.subr.bf16.mxu0 0
  %107 = vmatpush1.bf16.msra.mxu0 %v88
  %108 = vmatprep.subr.bf16.mxu0 0
  %109 = vmatpush1.bf16.msra.mxu0 %v89
  %110 = vmatprep.subr.bf16.mxu0 0
  %111 = vmatpush1.bf16.msra.mxu0 %v90
  %112 = vmatprep.subr.bf16.mxu0 0
  %113 = vmatpush1.bf16.msra.mxu0 %v91
  %114 = vmatprep.subr.bf16.mxu0 0
  %115 = vmatpush1.bf16.msra.mxu0 %v92
  %116 = vmatprep.subr.bf16.mxu0 0
  %117 = vmatpush1.bf16.msra.mxu0 %v93
  %118 = vmatprep.subr.bf16.mxu0 0
  %119 = vmatpush1.bf16.msra.mxu0 0
  %120 = vmatprep.subr.bf16.mxu0 0
  %121 = vmatpush1.bf16.msra.mxu0 0
  %122 = vmatprep.subr.bf16.mxu0 0
  %123 = vmatpush1.bf16.msra.mxu0 0
  %124 = vmatprep.subr.bf16.mxu0 0
  %125 = vmatpush1.bf16.msra.mxu0 0
  %126 = vmatprep.subr.bf16.mxu0 0
  %127 = vmatpush1.bf16.msra.mxu0 0
  %128 = vmatprep.subr.bf16.mxu0 0
  %129 = vmatpush1.bf16.msra.mxu0 0
  %130 = vmatprep.subr.bf16.mxu0 0
  %131 = vmatpush1.bf16.msra.mxu0 0
  %132 = vmatprep.subr.bf16.mxu0 0
  %133 = vmatpush1.bf16.msra.mxu0 0
  %134 = vmatprep.mubr.bf16.mxu0 0
  %135 = vmatmul.mubr.bf16.gmra.mrb[0].mxu0 %v50
  %v136 = vpop.f32.mrb[0].mxu0
  %v137 = vadd.f32 %v40, %v136
  %v138 = vpop.f32.mrb[0].mxu0
  %v139 = vpop.f32.mrb[0].mxu0
  %v140 = vadd.f32 %v40, %v139
  %v141 = vpop.f32.mrb[0].mxu0
  %142 = vmatprep.mubr.bf16.mxu0 0
  %143 = vmatmul.mubr.bf16.gmra.mrb[0].mxu0 %v51
  %v144 = vpop.f32.mrb[0].mxu0
  %v145 = vadd.f32 %v40, %v144
  %v146 = vpop.f32.mrb[0].mxu0
  %v147 = vpop.f32.mrb[0].mxu0
  %v148 = vadd.f32 %v40, %v147
  %v149 = vpop.f32.mrb[0].mxu0
  %150 = vdwg.mxu0
  %151 = vst [vmem:[%s3] sm:$0xff] %v137
  %152 = vst [vmem:[%s3 + $0x8] sm:$0xff] %v140
  %153 = vst [vmem:[%s3 + $0x10] sm:$0xff] %v145
  %154 = vst [vmem:[%s3 + $0x18] sm:$0xff] %v148
  // Predicated region
  $region14: #{encoder_forward.128} parent=0 // pred_check
    _
  $region15: #{encoder_forward.128} parent=0 // pred_check_branch
    %156 = sbr.rel (0) target = $region17
  $region16: #{encoder_forward.128} parent=0 // pred_region
    _
  $region17: #{encoder_forward.128} parent=0 // pred_fallthru
    _
  // Predicated region
  $region18: #{encoder_forward.128} parent=0 // pred_check
    _
  $region19: #{encoder_forward.128} parent=0 // pred_check_branch
    %158 = sbr.rel (0) target = $region21
  $region20: #{encoder_forward.128} parent=0 // pred_region
    _
  $region21: #{encoder_forward.128} parent=0 // pred_fallthru
    _

// kernel: encoder_forward.125
$region0: #{encoder_forward.125}
  #allocation0 [shape = 'u32[]', space=smem, size = 0x4, offset = 0x4, fixed_abs, tag = 'smem constant byte address 0x4 - core index']
  #allocation1 [shape = 'u32[144,128]{1,0:T(1,128)}', space=vmem, size = 0x12000, scoped, tag = 'internal scratch']
  %s0 = inlined_call_operand.vmem [shape: bf16[32,128], index: 0, kind: input, shape index: {}]
  %s1 = inlined_call_operand.vmem [shape: bf16[128,128], index: 1, kind: input, shape index: {}]
  %s2 = inlined_call_operand.vmem [shape: f32[1,128], index: 2, kind: input, shape index: {}]
  %s3 = inlined_call_operand.vmem [shape: f32[32,128], index: 3, kind: output, shape index: {}]
  %s4 = sld [smem:[#allocation0]]
  $region22: #{encoder_forward.125} parent=0
    _
  %s6 = ssub.s32 1, %s4
  %s7 = scalar_select 0, %s6, %s4
  // Predicated region
  $region2: #{encoder_forward.125} parent=0 // pred_check
    _
  $region3: #{encoder_forward.125} parent=0 // pred_check_branch
    %9 = sbr.rel (0) target = $region5
  $region4: #{encoder_forward.125} parent=0 // pred_region
    _
  $region5: #{encoder_forward.125} parent=0 // pred_fallthru
    _
  // Predicated region
  $region6: #{encoder_forward.125} parent=0 // pred_check
    _
  $region7: #{encoder_forward.125} parent=0 // pred_check_branch
    %11 = sbr.rel (0) target = $region9
  $region8: #{encoder_forward.125} parent=0 // pred_region
    _
  $region9: #{encoder_forward.125} parent=0 // pred_fallthru
    _
  // Predicated region
  $region10: #{encoder_forward.125} parent=0 // pred_check
    _
  $region11: #{encoder_forward.125} parent=0 // pred_check_branch
    %13 = sbr.rel (0) target = $region13
  $region12: #{encoder_forward.125} parent=0 // pred_region
    _
  $region13: #{encoder_forward.125} parent=0 // pred_fallthru
    _
  %v15 = vld [vmem:[%s0] sm:$0xf]
  %v16 = vld [vmem:[%s0 + $0x4] sm:$0xf]
  %v17 = vld [vmem:[%s0 + $0x8] sm:$0xf]
  %v18 = vld [vmem:[%s0 + $0xc] sm:$0xf]
  %v19 = vld [vmem:[%s1] sm:$0xf]
  %v20 = vld [vmem:[%s1 + $0x4] sm:$0xf]
  %v21 = vld [vmem:[%s1 + $0x8] sm:$0xf]
  %v22 = vld [vmem:[%s1 + $0xc] sm:$0xf]
  %v23 = vld [vmem:[%s1 + $0x10] sm:$0xf]
  %v24 = vld [vmem:[%s1 + $0x14] sm:$0xf]
  %v25 = vld [vmem:[%s1 + $0x18] sm:$0xf]
  %v26 = vld [vmem:[%s1 + $0x1c] sm:$0xf]
  %v27 = vld [vmem:[%s1 + $0x20] sm:$0xf]
  %v28 = vld [vmem:[%s1 + $0x24] sm:$0xf]
  %v29 = vld [vmem:[%s1 + $0x28] sm:$0xf]
  %v30 = vld [vmem:[%s1 + $0x2c] sm:$0xf]
  %v31 = vld [vmem:[%s1 + $0x30] sm:$0xf]
  %v32 = vld [vmem:[%s1 + $0x34] sm:$0xf]
  %v33 = vld [vmem:[%s1 + $0x38] sm:$0xf]
  %v34 = vld [vmem:[%s1 + $0x3c] sm:$0xf]
  %v35 = vld [vmem:[%s2] sm:$0x1]
  %v37 = vlaneseq
  %v38 = vshrl.u32 %v37, 7
  %v39 = vsub.s32 0, %v38
  %v40 = vrot.slane %v35, %v39
  %v46 = vunpack.c.l.b16 %v15
  %v47 = vunpack.c.l.b16 %v16
  %v48 = vunpack.c.l.b16 %v17
  %v49 = vunpack.c.l.b16 %v18
  %v50 = vpack.c.b16 %v47, %v46
  %v51 = vpack.c.b16 %v49, %v48
  %v70 = vunpack.c.l.b16 %v19
  %v71 = vunpack.c.l.b16 %v20
  %v72 = vunpack.c.l.b16 %v21
  %v73 = vunpack.c.l.b16 %v22
  %v74 = vunpack.c.l.b16 %v23
  %v75 = vunpack.c.l.b16 %v24
  %v76 = vunpack.c.l.b16 %v25
  %v77 = vunpack.c.l.b16 %v26
  %v78 = vunpack.c.l.b16 %v27
  %v79 = vunpack.c.l.b16 %v28
  %v80 = vunpack.c.l.b16 %v29
  %v81 = vunpack.c.l.b16 %v30
  %v82 = vunpack.c.l.b16 %v31
  %v83 = vunpack.c.l.b16 %v32
  %v84 = vunpack.c.l.b16 %v33
  %v85 = vunpack.c.l.b16 %v34
  %v86 = vpack.c.b16 %v71, %v70
  %v87 = vpack.c.b16 %v73, %v72
  %v88 = vpack.c.b16 %v75, %v74
  %v89 = vpack.c.b16 %v77, %v76
  %v90 = vpack.c.b16 %v79, %v78
  %v91 = vpack.c.b16 %v81, %v80
  %v92 = vpack.c.b16 %v83, %v82
  %v93 = vpack.c.b16 %v85, %v84
  %102 = vmatprep.subr.bf16.mxu0 0
  %103 = vmatpush1.bf16.msra.mxu0 %v86
  %104 = vmatprep.subr.bf16.mxu0 0
  %105 = vmatpush1.bf16.msra.mxu0 %v87
  %106 = vmatprep.subr.bf16.mxu0 0
  %107 = vmatpush1.bf16.msra.mxu0 %v88
  %108 = vmatprep.subr.bf16.mxu0 0
  %109 = vmatpush1.bf16.msra.mxu0 %v89
  %110 = vmatprep.subr.bf16.mxu0 0
  %111 = vmatpush1.bf16.msra.mxu0 %v90
  %112 = vmatprep.subr.bf16.mxu0 0
  %113 = vmatpush1.bf16.msra.mxu0 %v91
  %114 = vmatprep.subr.bf16.mxu0 0
  %115 = vmatpush1.bf16.msra.mxu0 %v92
  %116 = vmatprep.subr.bf16.mxu0 0
  %117 = vmatpush1.bf16.msra.mxu0 %v93
  %118 = vmatprep.subr.bf16.mxu0 0
  %119 = vmatpush1.bf16.msra.mxu0 0
  %120 = vmatprep.subr.bf16.mxu0 0
  %121 = vmatpush1.bf16.msra.mxu0 0
  %122 = vmatprep.subr.bf16.mxu0 0
  %123 = vmatpush1.bf16.msra.mxu0 0
  %124 = vmatprep.subr.bf16.mxu0 0
  %125 = vmatpush1.bf16.msra.mxu0 0
  %126 = vmatprep.subr.bf16.mxu0 0
  %127 = vmatpush1.bf16.msra.mxu0 0
  %128 = vmatprep.subr.bf16.mxu0 0
  %129 = vmatpush1.bf16.msra.mxu0 0
  %130 = vmatprep.subr.bf16.mxu0 0
  %131 = vmatpush1.bf16.msra.mxu0 0
  %132 = vmatprep.subr.bf16.mxu0 0
  %133 = vmatpush1.bf16.msra.mxu0 0
  %134 = vmatprep.mubr.bf16.mxu0 0
  %135 = vmatmul.mubr.bf16.gmra.mrb[0].mxu0 %v50
  %v136 = vpop.f32.mrb[0].mxu0
  %v137 = vadd.f32 %v40, %v136
  %v138 = vpop.f32.mrb[0].mxu0
  %v139 = vpop.f32.mrb[0].mxu0
  %v140 = vadd.f32 %v40, %v139
  %v141 = vpop.f32.mrb[0].mxu0
  %142 = vmatprep.mubr.bf16.mxu0 0
  %143 = vmatmul.mubr.bf16.gmra.mrb[0].mxu0 %v51
  %v144 = vpop.f32.mrb[0].mxu0
  %v145 = vadd.f32 %v40, %v144
  %v146 = vpop.f32.mrb[0].mxu0
  %v147 = vpop.f32.mrb[0].mxu0
  %v148 = vadd.f32 %v40, %v147
  %v149 = vpop.f32.mrb[0].mxu0
  %150 = vdwg.mxu0
  %vm151 = vcmp.ge.f32.partialorder %v137, 0.0
  %vm152 = vcmp.ge.f32.partialorder %v140, 0.0
  %vm153 = vcmp.ge.f32.partialorder %v145, 0.0
  %vm154 = vcmp.ge.f32.partialorder %v148, 0.0
  %v155 = vmul.f32 %v137, 0.01
  %v156 = vmul.f32 %v140, 0.01
  %v157 = vmul.f32 %v145, 0.01
  %v158 = vmul.f32 %v148, 0.01
  %v159 = vsel %vm151, %v137, %v155
  %v160 = vsel %vm152, %v140, %v156
  %v161 = vsel %vm153, %v145, %v157
  %v162 = vsel %vm154, %v148, %v158
  %163 = vst [vmem:[%s3] sm:$0xff] %v159
  %164 = vst [vmem:[%s3 + $0x8] sm:$0xff] %v160
  %165 = vst [vmem:[%s3 + $0x10] sm:$0xff] %v161
  %166 = vst [vmem:[%s3 + $0x18] sm:$0xff] %v162
  // Predicated region
  $region14: #{encoder_forward.125} parent=0 // pred_check
    _
  $region15: #{encoder_forward.125} parent=0 // pred_check_branch
    %168 = sbr.rel (0) target = $region17
  $region16: #{encoder_forward.125} parent=0 // pred_region
    _
  $region17: #{encoder_forward.125} parent=0 // pred_fallthru
    _
  // Predicated region
  $region18: #{encoder_forward.125} parent=0 // pred_check
    _
  $region19: #{encoder_forward.125} parent=0 // pred_check_branch
    %170 = sbr.rel (0) target = $region21
  $region20: #{encoder_forward.125} parent=0 // pred_region
    _
  $region21: #{encoder_forward.125} parent=0 // pred_fallthru
    _

// kernel: encoder_forward.127
$region0: #{encoder_forward.127}
  #allocation0 [shape = 'u32[]', space=smem, size = 0x4, offset = 0x4, fixed_abs, tag = 'smem constant byte address 0x4 - core index']
  #allocation1 [shape = 'u32[144,128]{1,0:T(1,128)}', space=vmem, size = 0x12000, scoped, tag = 'internal scratch']
  %s0 = inlined_call_operand.vmem [shape: f32[32,128], index: 0, kind: input, shape index: {}]
  %s1 = inlined_call_operand.vmem [shape: f32[128,128], index: 1, kind: input, shape index: {}]
  %s2 = inlined_call_operand.vmem [shape: f32[1,128], index: 2, kind: input, shape index: {}]
  %s3 = inlined_call_operand.vmem [shape: f32[32,128], index: 3, kind: output, shape index: {}]
  %s4 = sld [smem:[#allocation0]]
  $region22: #{encoder_forward.127} parent=0
    _
  %s6 = ssub.s32 1, %s4
  %s7 = scalar_select 0, %s6, %s4
  // Predicated region
  $region2: #{encoder_forward.127} parent=0 // pred_check
    _
  $region3: #{encoder_forward.127} parent=0 // pred_check_branch
    %9 = sbr.rel (0) target = $region5
  $region4: #{encoder_forward.127} parent=0 // pred_region
    _
  $region5: #{encoder_forward.127} parent=0 // pred_fallthru
    _
  // Predicated region
  $region6: #{encoder_forward.127} parent=0 // pred_check
    _
  $region7: #{encoder_forward.127} parent=0 // pred_check_branch
    %11 = sbr.rel (0) target = $region9
  $region8: #{encoder_forward.127} parent=0 // pred_region
    _
  $region9: #{encoder_forward.127} parent=0 // pred_fallthru
    _
  // Predicated region
  $region10: #{encoder_forward.127} parent=0 // pred_check
    _
  $region11: #{encoder_forward.127} parent=0 // pred_check_branch
    %13 = sbr.rel (0) target = $region13
  $region12: #{encoder_forward.127} parent=0 // pred_region
    _
  $region13: #{encoder_forward.127} parent=0 // pred_fallthru
    _
  %v14 = vld [vmem:[%s0] sm:$0xff]
  %v15 = vld [vmem:[%s0 + $0x8] sm:$0xff]
  %v16 = vld [vmem:[%s0 + $0x10] sm:$0xff]
  %v17 = vld [vmem:[%s0 + $0x18] sm:$0xff]
  %v18 = vmul.f32 %v14, %v14
  %v19 = vmul.f32 %v15, %v15
  %v20 = vmul.f32 %v16, %v16
  %v21 = vmul.f32 %v17, %v17
  %v22 = vld [vmem:[%s1] sm:$0xff]
  %v23 = vld [vmem:[%s1 + $0x8] sm:$0xff]
  %v24 = vld [vmem:[%s1 + $0x10] sm:$0xff]
  %v25 = vld [vmem:[%s1 + $0x18] sm:$0xff]
  %v26 = vld [vmem:[%s1 + $0x20] sm:$0xff]
  %v27 = vld [vmem:[%s1 + $0x28] sm:$0xff]
  %v28 = vld [vmem:[%s1 + $0x30] sm:$0xff]
  %v29 = vld [vmem:[%s1 + $0x38] sm:$0xff]
  %v30 = vld [vmem:[%s1 + $0x40] sm:$0xff]
  %v31 = vld [vmem:[%s1 + $0x48] sm:$0xff]
  %v32 = vld [vmem:[%s1 + $0x50] sm:$0xff]
  %v33 = vld [vmem:[%s1 + $0x58] sm:$0xff]
  %v34 = vld [vmem:[%s1 + $0x60] sm:$0xff]
  %v35 = vld [vmem:[%s1 + $0x68] sm:$0xff]
  %v36 = vld [vmem:[%s1 + $0x70] sm:$0xff]
  %v37 = vld [vmem:[%s1 + $0x78] sm:$0xff]
  %v38 = vld [vmem:[%s2] sm:$0x1]
  %v40 = vlaneseq
  %v41 = vshrl.u32 %v40, 7
  %v42 = vsub.s32 0, %v41
  %v43 = vrot.slane %v38, %v42
  %45 = vmatprep.subr.mxu0 0.0
  %46 = vmatpush1.msra.mxu0 %v22
  %47 = vmatprep.subr.mxu0 0.0
  %48 = vmatpush1.msra.mxu0 %v23
  %49 = vmatprep.subr.mxu0 0.0
  %50 = vmatpush1.msra.mxu0 %v24
  %51 = vmatprep.subr.mxu0 0.0
  %52 = vmatpush1.msra.mxu0 %v25
  %53 = vmatprep.subr.mxu0 0.0
  %54 = vmatpush1.msra.mxu0 %v26
  %55 = vmatprep.subr.mxu0 0.0
  %56 = vmatpush1.msra.mxu0 %v27
  %57 = vmatprep.subr.mxu0 0.0
  %58 = vmatpush1.msra.mxu0 %v28
  %59 = vmatprep.subr.mxu0 0.0
  %60 = vmatpush1.msra.mxu0 %v29
  %61 = vmatprep.subr.mxu0 0.0
  %62 = vmatpush1.msra.mxu0 %v30
  %63 = vmatprep.subr.mxu0 0.0
  %64 = vmatpush1.msra.mxu0 %v31
  %65 = vmatprep.subr.mxu0 0.0
  %66 = vmatpush1.msra.mxu0 %v32
  %67 = vmatprep.subr.mxu0 0.0
  %68 = vmatpush1.msra.mxu0 %v33
  %69 = vmatprep.subr.mxu0 0.0
  %70 = vmatpush1.msra.mxu0 %v34
  %71 = vmatprep.subr.mxu0 0.0
  %72 = vmatpush1.msra.mxu0 %v35
  %73 = vmatprep.subr.mxu0 0.0
  %74 = vmatpush1.msra.mxu0 %v36
  %75 = vmatprep.subr.mxu0 0.0
  %76 = vmatpush1.msra.mxu0 %v37
  %77 = vmatprep.subr.mxu0 0.0
  %78 = vmatpush1.msra.mxu0 0.0
  %79 = vmatprep.subr.mxu0 0.0
  %80 = vmatpush1.msra.mxu0 0.0
  %81 = vmatprep.subr.mxu0 0.0
  %82 = vmatpush1.msra.mxu0 0.0
  %83 = vmatprep.subr.mxu0 0.0
  %84 = vmatpush1.msra.mxu0 0.0
  %85 = vmatprep.subr.mxu0 0.0
  %86 = vmatpush1.msra.mxu0 0.0
  %87 = vmatprep.subr.mxu0 0.0
  %88 = vmatpush1.msra.mxu0 0.0
  %89 = vmatprep.subr.mxu0 0.0
  %90 = vmatpush1.msra.mxu0 0.0
  %91 = vmatprep.subr.mxu0 0.0
  %92 = vmatpush1.msra.mxu0 0.0
  %93 = vmatprep.subr.mxu0 0.0
  %94 = vmatpush1.msra.mxu0 0.0
  %95 = vmatprep.subr.mxu0 0.0
  %96 = vmatpush1.msra.mxu0 0.0
  %97 = vmatprep.subr.mxu0 0.0
  %98 = vmatpush1.msra.mxu0 0.0
  %99 = vmatprep.subr.mxu0 0.0
  %100 = vmatpush1.msra.mxu0 0.0
  %101 = vmatprep.subr.mxu0 0.0
  %102 = vmatpush1.msra.mxu0 0.0
  %103 = vmatprep.subr.mxu0 0.0
  %104 = vmatpush1.msra.mxu0 0.0
  %105 = vmatprep.subr.mxu0 0.0
  %106 = vmatpush1.msra.mxu0 0.0
  %107 = vmatprep.subr.mxu0 0.0
  %108 = vmatpush1.msra.mxu0 0.0
  %109 = vmatprep.mubr.f32.mxu0 0.0
  %110 = vmatmul.mubr.f32.gmra.mrb[0].mxu0 %v18
  %v111 = vpop.f32.mrb[0].mxu0
  %v112 = vadd.f32 %v43, %v111
  %v113 = vpop.f32.mrb[0].mxu0
  %114 = vmatprep.mubr.f32.mxu0 0.0
  %115 = vmatmul.mubr.f32.gmra.mrb[0].mxu0 %v19
  %v116 = vpop.f32.mrb[0].mxu0
  %v117 = vadd.f32 %v43, %v116
  %v118 = vpop.f32.mrb[0].mxu0
  %119 = vmatprep.mubr.f32.mxu0 0.0
  %120 = vmatmul.mubr.f32.gmra.mrb[0].mxu0 %v20
  %v121 = vpop.f32.mrb[0].mxu0
  %v122 = vadd.f32 %v43, %v121
  %v123 = vpop.f32.mrb[0].mxu0
  %124 = vmatprep.mubr.f32.mxu0 0.0
  %125 = vmatmul.mubr.f32.gmra.mrb[0].mxu0 %v21
  %v126 = vpop.f32.mrb[0].mxu0
  %v127 = vadd.f32 %v43, %v126
  %v128 = vpop.f32.mrb[0].mxu0
  %129 = vdwg.mxu0
  %v130 = vmax.f32 %v112, 1e-06
  %v131 = vmax.f32 %v117, 1e-06
  %v132 = vmax.f32 %v122, 1e-06
  %v133 = vmax.f32 %v127, 1e-06
  %v134 = vrsqrt.pop %v130
  %v135 = vrsqrt.pop %v131
  %v136 = vrsqrt.pop %v132
  %v137 = vrsqrt.pop %v133
  %v138 = vmul.f32 %v14, %v134
  %v139 = vmul.f32 %v15, %v135
  %v140 = vmul.f32 %v16, %v136
  %v141 = vmul.f32 %v17, %v137
  %142 = vst [vmem:[%s3] sm:$0xff] %v138
  %143 = vst [vmem:[%s3 + $0x8] sm:$0xff] %v139
  %144 = vst [vmem:[%s3 + $0x10] sm:$0xff] %v140
  %145 = vst [vmem:[%s3 + $0x18] sm:$0xff] %v141
  // Predicated region
  $region14: #{encoder_forward.127} parent=0 // pred_check
    _
  $region15: #{encoder_forward.127} parent=0 // pred_check_branch
    %147 = sbr.rel (0) target = $region17
  $region16: #{encoder_forward.127} parent=0 // pred_region
    _
  $region17: #{encoder_forward.127} parent=0 // pred_fallthru
    _
  // Predicated region
  $region18: #{encoder_forward.127} parent=0 // pred_check
    _
  $region19: #{encoder_forward.127} parent=0 // pred_check_branch
    %149 = sbr.rel (0) target = $region21
  $region20: #{encoder_forward.127} parent=0 // pred_region
    _
  $region21: #{encoder_forward.127} parent=0 // pred_fallthru
    _

// kernel: encoder_forward.134
$region0: #{encoder_forward.134}
  #allocation0 [shape = 'u32[]', space=smem, size = 0x4, offset = 0x4, fixed_abs, tag = 'smem constant byte address 0x4 - core index']
  #allocation1 [shape = 'u32[144,128]{1,0:T(1,128)}', space=vmem, size = 0x12000, scoped, tag = 'internal scratch']
  %s0 = inlined_call_operand.vmem [shape: f32[2,4,16], index: 0, kind: input, shape index: {}]
  %s1 = inlined_call_operand.vmem [shape: f32[2,1,16], index: 1, kind: output, shape index: {0}]
  %s2 = inlined_call_operand.vmem [shape: f32[2,1,16], index: 2, kind: output, shape index: {1}]
  %3 = xla_tuple %s1, %s2
  %s4 = sld [smem:[#allocation0]]
  $region45: #{encoder_forward.134} parent=0
    _
  %s6 = ssub.s32 1, %s4
  %s7 = scalar_select 0, %s6, %s4
  loop: start=0, step=1, limit=4
  $region2: #{encoder_forward.134} parent=0 // loop_pre_header
    _
  $region3: #{encoder_forward.134} parent=0 // loop_header
    %s9 = sphi 0, %s13
    %p10 = scmp.ge.s32.totalorder %s9, 4
    %s19 = sphi 0, %s21
    %s22 = sphi 0, %s19
    %s23 = sphi 0, %s22
    %s39 = sphi 0, %s23
    %s45 = sphi 0, %s47
    %s48 = sphi 0, %s45
    %s49 = sphi 0, %s48
    %s65 = sphi 0, %s49
    %s71 = sphi 0, %s73
    %s74 = sphi 0, %s71
    %s75 = sphi 0, %s74
    %s91 = sphi 0, %s75
  $region4: #{encoder_forward.134} parent=0 // loop_header_branch
    %12 = sbr.rel (%p10) target = $region8
  $region5: #{encoder_forward.134} parent=0 // loop_body
    %s14 = ssub.s32 %s9, 1
    %s15 = ssub.s32 %s9, 2
    %s16 = sadd.s32 %s9, 1
    %s17 = ssub.s32 %s9, %s16
    %p18 = scmp.eq.s32.totalorder %s17, 0
    %s20 = sadd.s32 %s19, 1
    %s21 = scalar_select %p18, %s19, %s20
    %p24 = pneg %p18
    %p25 = scmp.eq.s32.totalorder %s9, 1
    %p26 = por %p24, %p25
    %p27 = scmp.ne.s32.totalorder %s19, %s22
    %p28 = scmp.eq.s32.totalorder %s9, 0
    %p29 = por %p27, %p28
    %p30 = scmp.ne.s32.totalorder %s19, %s22
    %p31 = scmp.eq.s32.totalorder %s14, 1
    %p32 = por %p30, %p31
    %p33 = scmp.ne.s32.totalorder %s22, %s23
    %p34 = scmp.eq.s32.totalorder %s14, 0
    %p35 = por %p33, %p34
    %p36 = scmp.ne.s32.totalorder %s22, %s23
    %p37 = scmp.eq.s32.totalorder %s15, 1
    %p38 = por %p36, %p37
    %p40 = scmp.ne.s32.totalorder %s23, %s39
    %p41 = scmp.eq.s32.totalorder %s15, 0
    %p42 = por %p40, %p41
    %s43 = ssub.s32 %s9, %s16
    %p44 = scmp.eq.s32.totalorder %s43, 0
    %s46 = sadd.s32 %s45, 1
    %s47 = scalar_select %p44, %s45, %s46
    %p50 = pneg %p44
    %p51 = scmp.eq.s32.totalorder %s9, 1
    %p52 = por %p50, %p51
    %p53 = scmp.ne.s32.totalorder %s45, %s48
    %p54 = scmp.eq.s32.totalorder %s9, 0
    %p55 = por %p53, %p54
    %p56 = scmp.ne.s32.totalorder %s45, %s48
    %p57 = scmp.eq.s32.totalorder %s14, 1
    %p58 = por %p56, %p57
    %p59 = scmp.ne.s32.totalorder %s48, %s49
    %p60 = scmp.eq.s32.totalorder %s14, 0
    %p61 = por %p59, %p60
    %p62 = scmp.ne.s32.totalorder %s48, %s49
    %p63 = scmp.eq.s32.totalorder %s15, 1
    %p64 = por %p62, %p63
    %p66 = scmp.ne.s32.totalorder %s49, %s65
    %p67 = scmp.eq.s32.totalorder %s15, 0
    %p68 = por %p66, %p67
    %s69 = ssub.s32 %s9, %s16
    %p70 = scmp.eq.s32.totalorder %s69, 0
    %s72 = sadd.s32 %s71, 1
    %s73 = scalar_select %p70, %s71, %s72
    %p76 = pneg %p70
    %p77 = scmp.eq.s32.totalorder %s9, 1
    %p78 = por %p76, %p77
    %p79 = scmp.ne.s32.totalorder %s71, %s74
    %p80 = scmp.eq.s32.totalorder %s9, 0
    %p81 = por %p79, %p80
    %p82 = scmp.ne.s32.totalorder %s71, %s74
    %p83 = scmp.eq.s32.totalorder %s14, 1
    %p84 = por %p82, %p83
    %p85 = scmp.ne.s32.totalorder %s74, %s75
    %p86 = scmp.eq.s32.totalorder %s14, 0
    %p87 = por %p85, %p86
    %p88 = scmp.ne.s32.totalorder %s74, %s75
    %p89 = scmp.eq.s32.totalorder %s15, 1
    %p90 = por %p88, %p89
    %p92 = scmp.ne.s32.totalorder %s75, %s91
    %p93 = scmp.eq.s32.totalorder %s15, 0
    %p94 = por %p92, %p93
    %p95 = scmp.le.s32.totalorder 1, %s9
    %p96 = scmp.lt.s32.totalorder %s9, 3
    %p97 = pnand %p95, %p96
    %p98 = pneg %p97
    // Predicated region
    $region9: #{encoder_forward.134} parent=5 // pred_check
      _
    $region10: #{encoder_forward.134} parent=5 // pred_check_branch
      %100 = sbr.rel (%p97) target = $region12
    $region11: #{encoder_forward.134} parent=5 // pred_region
      %s101 = ssub.s32 %s9, 1
    $region12: #{encoder_forward.134} parent=5 // pred_fallthru
      _
    %p102 = scmp.lt.s32.totalorder %s9, 2
    // Predicated region
    $region13: #{encoder_forward.134} parent=5 // pred_check
      %p103 = pneg %p102
    $region14: #{encoder_forward.134} parent=5 // pred_check_branch
      %105 = sbr.rel (%p103) target = $region16
    $region15: #{encoder_forward.134} parent=5 // pred_region
      // Predicated region
      $region17: #{encoder_forward.134} parent=15 // pred_check
        %p106 = pneg %p29
      $region18: #{encoder_forward.134} parent=15 // pred_check_branch
        %108 = sbr.rel (%p106) target = $region20
      $region19: #{encoder_forward.134} parent=15 // pred_region
        %p109 = scmp.lt.s32.totalorder %s9, 1
        %s110 = scalar_select %p109, %s9, 1
        %s111 = smul.addr %s110, 4
        %s112 = scalar_lea.vmem %s0, %s111
      $region20: #{encoder_forward.134} parent=15 // pred_fallthru
        _
    $region16: #{encoder_forward.134} parent=5 // pred_fallthru
      _
    %p113 = scmp.le.s32.totalorder 1, %s9
    %p114 = scmp.lt.s32.totalorder %s9, 3
    %p115 = pnand %p113, %p114
    %p116 = pneg %p115
    // Predicated region
    $region21: #{encoder_forward.134} parent=5 // pred_check
      _
    $region22: #{encoder_forward.134} parent=5 // pred_check_branch
      %118 = sbr.rel (%p115) target = $region24
    $region23: #{encoder_forward.134} parent=5 // pred_region
      %s119 = ssub.s32 %s9, 1
      %p120 = scmp.lt.s32.totalorder %s14, 1
      %s121 = scalar_select %p120, %s14, 1
      %s122 = smul.addr %s121, 4
      %s123 = scalar_lea.vmem %s0, %s122
      %p124 = pneg %p35
      %p125 = pneg %p32
      %p126 = pneg %p61
      %p127 = pneg %p58
      %p128 = scmp.lt.s32.totalorder %s14, 1
      %s129 = scalar_select %p128, %s14, 1
      %s130 = scalar_lea.vmem %s1, %s129
      %p131 = pneg %p87
      %p132 = pneg %p84
      %p133 = scmp.lt.s32.totalorder %s14, 1
      %s134 = scalar_select %p133, %s14, 1
      %s135 = scalar_lea.vmem %s2, %s134
      %p136 = scmp.lt.s32.totalorder %s14, 1
      %s137 = scalar_select %p136, %s14, 1
      %s138 = smul.addr %s137, 4
      %s139 = scalar_lea.vmem %s0, %s138
      %p140 = scmp.lt.s32.totalorder %s14, 1
      %s141 = scalar_select %p140, %s14, 1
      %s142 = scalar_lea.vmem %s1, %s141
      %p143 = scmp.lt.s32.totalorder %s14, 1
      %s144 = scalar_select %p143, %s14, 1
      %s145 = scalar_lea.vmem %s2, %s144
      %v146 = vld [vmem:[%s139] sm:$0xf]
      %vm147 = vcmask 125952
      %v148 = vsel %vm147, %v146, 0.0
      %v149 = vrot.slane %v148, 4
      %v150 = vadd.f32 %v148, %v149
      %v151 = vrot.slane %v150, 2
      %v152 = vadd.f32 %v150, %v151
      %v153 = vrot.slane %v152, 1
      %v154 = vadd.f32 %v152, %v153
      %v155 = vrcp.pop 4.0
      %v156 = vmul.f32 %v154, %v155
      %vm157 = vcmask 122880
      %158 = vst.msk [vmem:[%s142] sm:$0x1] %vm157, %v156
      %v159 = vsel %vm147, %v146, -inf
      %v160 = vrot.slane %v159, 4
      %v161 = vmax.f32 %v159, %v160
      %v162 = vrot.slane %v161, 2
      %v163 = vmax.f32 %v161, %v162
      %v164 = vrot.slane %v163, 1
      %v165 = vmax.f32 %v163, %v164
      %166 = vst.msk [vmem:[%s145] sm:$0x1] %vm157, %v165
      %p167 = scmp.lt.s32.totalorder %s14, 1
      %s168 = scalar_select %p167, %s14, 1
      %s169 = scalar_lea.vmem %s1, %s168
      %p170 = scmp.lt.s32.totalorder %s14, 1
      %s171 = scalar_select %p170, %s14, 1
      %s172 = scalar_lea.vmem %s2, %s171
      // Predicated region
      $region25: #{encoder_forward.134} parent=23 // pred_check
        %p173 = pneg %p58
      $region26: #{encoder_forward.134} parent=23 // pred_check_branch
        %175 = sbr.rel (%p173) target = $region28
      $region27: #{encoder_forward.134} parent=23 // pred_region
        _
      $region28: #{encoder_forward.134} parent=23 // pred_fallthru
        _
      // Predicated region
      $region29: #{encoder_forward.134} parent=23 // pred_check
        %p176 = pneg %p84
      $region30: #{encoder_forward.134} parent=23 // pred_check_branch
        %178 = sbr.rel (%p176) target = $region32
      $region31: #{encoder_forward.134} parent=23 // pred_region
        _
      $region32: #{encoder_forward.134} parent=23 // pred_fallthru
        _
    $region24: #{encoder_forward.134} parent=5 // pred_fallthru
      _
    %p179 = scmp.le.s32.totalorder 2, %s9
    // Predicated region
    $region33: #{encoder_forward.134} parent=5 // pred_check
      %p180 = pneg %p179
    $region34: #{encoder_forward.134} parent=5 // pred_check_branch
      %182 = sbr.rel (%p180) target = $region36
    $region35: #{encoder_forward.134} parent=5 // pred_region
      %s183 = ssub.s32 %s9, 2
      // Predicated region
      $region37: #{encoder_forward.134} parent=35 // pred_check
        %p184 = pneg %p64
      $region38: #{encoder_forward.134} parent=35 // pred_check_branch
        %186 = sbr.rel (%p184) target = $region40
      $region39: #{encoder_forward.134} parent=35 // pred_region
        %p187 = scmp.lt.s32.totalorder %s15, 1
        %s188 = scalar_select %p187, %s15, 1
        %s189 = scalar_lea.vmem %s1, %s188
      $region40: #{encoder_forward.134} parent=35 // pred_fallthru
        _
      // Predicated region
      $region41: #{encoder_forward.134} parent=35 // pred_check
        %p190 = pneg %p90
      $region42: #{encoder_forward.134} parent=35 // pred_check_branch
        %192 = sbr.rel (%p190) target = $region44
      $region43: #{encoder_forward.134} parent=35 // pred_region
        %p193 = scmp.lt.s32.totalorder %s15, 1
        %s194 = scalar_select %p193, %s15, 1
        %s195 = scalar_lea.vmem %s2, %s194
      $region44: #{encoder_forward.134} parent=35 // pred_fallthru
        _
    $region36: #{encoder_forward.134} parent=5 // pred_fallthru
      _
  $region6: #{encoder_forward.134} parent=0 // loop_footer
    %s13 = sadd.s32 1, %s9
  $region7: #{encoder_forward.134} parent=0 // loop_footer_branch
    %8 = sbr.rel target = $region3
  $region8: #{encoder_forward.134} parent=0 // loop_exit
    _

// kernel: encoder_forward.133
$region0: #{encoder_forward.133}
  #allocation0 [shape = 'u32[]', space=smem, size = 0x4, offset = 0x4, fixed_abs, tag = 'smem constant byte address 0x4 - core index']
  #allocation1 [shape = 'u32[144,128]{1,0:T(1,128)}', space=vmem, size = 0x12000, scoped, tag = 'internal scratch']
  %s0 = inlined_call_operand.vmem [shape: bf16[16,128], index: 0, kind: input, shape index: {}]
  %s1 = inlined_call_operand.vmem [shape: bf16[128,128], index: 1, kind: input, shape index: {}]
  %s2 = inlined_call_operand.vmem [shape: f32[1,128], index: 2, kind: input, shape index: {}]
  %s3 = inlined_call_operand.vmem [shape: f32[16,128], index: 3, kind: output, shape index: {}]
  %s4 = sld [smem:[#allocation0]]
  $region22: #{encoder_forward.133} parent=0
    _
  %s6 = ssub.s32 1, %s4
  %s7 = scalar_select 0, %s6, %s4
  // Predicated region
  $region2: #{encoder_forward.133} parent=0 // pred_check
    _
  $region3: #{encoder_forward.133} parent=0 // pred_check_branch
    %9 = sbr.rel (0) target = $region5
  $region4: #{encoder_forward.133} parent=0 // pred_region
    _
  $region5: #{encoder_forward.133} parent=0 // pred_fallthru
    _
  // Predicated region
  $region6: #{encoder_forward.133} parent=0 // pred_check
    _
  $region7: #{encoder_forward.133} parent=0 // pred_check_branch
    %11 = sbr.rel (0) target = $region9
  $region8: #{encoder_forward.133} parent=0 // pred_region
    _
  $region9: #{encoder_forward.133} parent=0 // pred_fallthru
    _
  // Predicated region
  $region10: #{encoder_forward.133} parent=0 // pred_check
    _
  $region11: #{encoder_forward.133} parent=0 // pred_check_branch
    %13 = sbr.rel (0) target = $region13
  $region12: #{encoder_forward.133} parent=0 // pred_region
    _
  $region13: #{encoder_forward.133} parent=0 // pred_fallthru
    _
  %v15 = vld [vmem:[%s0] sm:$0xf]
  %v16 = vld [vmem:[%s0 + $0x4] sm:$0xf]
  %v17 = vld [vmem:[%s1] sm:$0xf]
  %v18 = vld [vmem:[%s1 + $0x4] sm:$0xf]
  %v19 = vld [vmem:[%s1 + $0x8] sm:$0xf]
  %v20 = vld [vmem:[%s1 + $0xc] sm:$0xf]
  %v21 = vld [vmem:[%s1 + $0x10] sm:$0xf]
  %v22 = vld [vmem:[%s1 + $0x14] sm:$0xf]
  %v23 = vld [vmem:[%s1 + $0x18] sm:$0xf]
  %v24 = vld [vmem:[%s1 + $0x1c] sm:$0xf]
  %v25 = vld [vmem:[%s1 + $0x20] sm:$0xf]
  %v26 = vld [vmem:[%s1 + $0x24] sm:$0xf]
  %v27 = vld [vmem:[%s1 + $0x28] sm:$0xf]
  %v28 = vld [vmem:[%s1 + $0x2c] sm:$0xf]
  %v29 = vld [vmem:[%s1 + $0x30] sm:$0xf]
  %v30 = vld [vmem:[%s1 + $0x34] sm:$0xf]
  %v31 = vld [vmem:[%s1 + $0x38] sm:$0xf]
  %v32 = vld [vmem:[%s1 + $0x3c] sm:$0xf]
  %v33 = vld [vmem:[%s2] sm:$0x1]
  %v35 = vlaneseq
  %v36 = vshrl.u32 %v35, 7
  %v37 = vsub.s32 0, %v36
  %v38 = vrot.slane %v33, %v37
  %v42 = vunpack.c.l.b16 %v15
  %v43 = vunpack.c.l.b16 %v16
  %v44 = vpack.c.b16 %v43, %v42
  %v62 = vunpack.c.l.b16 %v17
  %v63 = vunpack.c.l.b16 %v18
  %v64 = vunpack.c.l.b16 %v19
  %v65 = vunpack.c.l.b16 %v20
  %v66 = vunpack.c.l.b16 %v21
  %v67 = vunpack.c.l.b16 %v22
  %v68 = vunpack.c.l.b16 %v23
  %v69 = vunpack.c.l.b16 %v24
  %v70 = vunpack.c.l.b16 %v25
  %v71 = vunpack.c.l.b16 %v26
  %v72 = vunpack.c.l.b16 %v27
  %v73 = vunpack.c.l.b16 %v28
  %v74 = vunpack.c.l.b16 %v29
  %v75 = vunpack.c.l.b16 %v30
  %v76 = vunpack.c.l.b16 %v31
  %v77 = vunpack.c.l.b16 %v32
  %v78 = vpack.c.b16 %v63, %v62
  %v79 = vpack.c.b16 %v65, %v64
  %v80 = vpack.c.b16 %v67, %v66
  %v81 = vpack.c.b16 %v69, %v68
  %v82 = vpack.c.b16 %v71, %v70
  %v83 = vpack.c.b16 %v73, %v72
  %v84 = vpack.c.b16 %v75, %v74
  %v85 = vpack.c.b16 %v77, %v76
  %94 = vmatprep.subr.bf16.mxu0 0
  %95 = vmatpush1.bf16.msra.mxu0 %v78
  %96 = vmatprep.subr.bf16.mxu0 0
  %97 = vmatpush1.bf16.msra.mxu0 %v79
  %98 = vmatprep.subr.bf16.mxu0 0
  %99 = vmatpush1.bf16.msra.mxu0 %v80
  %100 = vmatprep.subr.bf16.mxu0 0
  %101 = vmatpush1.bf16.msra.mxu0 %v81
  %102 = vmatprep.subr.bf16.mxu0 0
  %103 = vmatpush1.bf16.msra.mxu0 %v82
  %104 = vmatprep.subr.bf16.mxu0 0
  %105 = vmatpush1.bf16.msra.mxu0 %v83
  %106 = vmatprep.subr.bf16.mxu0 0
  %107 = vmatpush1.bf16.msra.mxu0 %v84
  %108 = vmatprep.subr.bf16.mxu0 0
  %109 = vmatpush1.bf16.msra.mxu0 %v85
  %110 = vmatprep.subr.bf16.mxu0 0
  %111 = vmatpush1.bf16.msra.mxu0 0
  %112 = vmatprep.subr.bf16.mxu0 0
  %113 = vmatpush1.bf16.msra.mxu0 0
  %114 = vmatprep.subr.bf16.mxu0 0
  %115 = vmatpush1.bf16.msra.mxu0 0
  %116 = vmatprep.subr.bf16.mxu0 0
  %117 = vmatpush1.bf16.msra.mxu0 0
  %118 = vmatprep.subr.bf16.mxu0 0
  %119 = vmatpush1.bf16.msra.mxu0 0
  %120 = vmatprep.subr.bf16.mxu0 0
  %121 = vmatpush1.bf16.msra.mxu0 0
  %122 = vmatprep.subr.bf16.mxu0 0
  %123 = vmatpush1.bf16.msra.mxu0 0
  %124 = vmatprep.subr.bf16.mxu0 0
  %125 = vmatpush1.bf16.msra.mxu0 0
  %126 = vmatprep.mubr.bf16.mxu0 0
  %127 = vmatmul.mubr.bf16.gmra.mrb[0].mxu0 %v44
  %v128 = vpop.f32.mrb[0].mxu0
  %v129 = vadd.f32 %v38, %v128
  %v130 = vpop.f32.mrb[0].mxu0
  %v131 = vpop.f32.mrb[0].mxu0
  %v132 = vadd.f32 %v38, %v131
  %v133 = vpop.f32.mrb[0].mxu0
  %134 = vdwg.mxu0
  %135 = vst [vmem:[%s3] sm:$0xff] %v129
  %136 = vst [vmem:[%s3 + $0x8] sm:$0xff] %v132
  // Predicated region
  $region14: #{encoder_forward.133} parent=0 // pred_check
    _
  $region15: #{encoder_forward.133} parent=0 // pred_check_branch
    %138 = sbr.rel (0) target = $region17
  $region16: #{encoder_forward.133} parent=0 // pred_region
    _
  $region17: #{encoder_forward.133} parent=0 // pred_fallthru
    _
  // Predicated region
  $region18: #{encoder_forward.133} parent=0 // pred_check
    _
  $region19: #{encoder_forward.133} parent=0 // pred_check_branch
    %140 = sbr.rel (0) target = $region21
  $region20: #{encoder_forward.133} parent=0 // pred_region
    _
  $region21: #{encoder_forward.133} parent=0 // pred_fallthru
    _

// kernel: encoder_forward.135
$region0: #{encoder_forward.135}
  #allocation0 [shape = 'u32[]', space=smem, size = 0x4, offset = 0x4, fixed_abs, tag = 'smem constant byte address 0x4 - core index']
  #allocation1 [shape = 'u32[144,128]{1,0:T(1,128)}', space=vmem, size = 0x12000, scoped, tag = 'internal scratch']
  %s0 = inlined_call_operand.vmem [shape: f32[2,4,16], index: 0, kind: input, shape index: {}]
  %s1 = inlined_call_operand.vmem [shape: f32[2,1,16], index: 1, kind: input, shape index: {}]
  %s2 = inlined_call_operand.vmem [shape: f32[2,4,16], index: 2, kind: output, shape index: {}]
  %s3 = sld [smem:[#allocation0]]
  $region41: #{encoder_forward.135} parent=0
    _
  %s5 = ssub.s32 1, %s3
  %s6 = scalar_select 0, %s5, %s3
  loop: start=0, step=1, limit=4
  $region2: #{encoder_forward.135} parent=0 // loop_pre_header
    _
  $region3: #{encoder_forward.135} parent=0 // loop_header
    %s8 = sphi 0, %s12
    %p9 = scmp.ge.s32.totalorder %s8, 4
    %s18 = sphi 0, %s20
    %s21 = sphi 0, %s18
    %s22 = sphi 0, %s21
    %s38 = sphi 0, %s22
    %s44 = sphi 0, %s46
    %s47 = sphi 0, %s44
    %s48 = sphi 0, %s47
    %s64 = sphi 0, %s48
    %s70 = sphi 0, %s72
    %s73 = sphi 0, %s70
    %s74 = sphi 0, %s73
    %s90 = sphi 0, %s74
  $region4: #{encoder_forward.135} parent=0 // loop_header_branch
    %11 = sbr.rel (%p9) target = $region8
  $region5: #{encoder_forward.135} parent=0 // loop_body
    %s13 = ssub.s32 %s8, 1
    %s14 = ssub.s32 %s8, 2
    %s15 = sadd.s32 %s8, 1
    %s16 = ssub.s32 %s8, %s15
    %p17 = scmp.eq.s32.totalorder %s16, 0
    %s19 = sadd.s32 %s18, 1
    %s20 = scalar_select %p17, %s18, %s19
    %p23 = pneg %p17
    %p24 = scmp.eq.s32.totalorder %s8, 1
    %p25 = por %p23, %p24
    %p26 = scmp.ne.s32.totalorder %s18, %s21
    %p27 = scmp.eq.s32.totalorder %s8, 0
    %p28 = por %p26, %p27
    %p29 = scmp.ne.s32.totalorder %s18, %s21
    %p30 = scmp.eq.s32.totalorder %s13, 1
    %p31 = por %p29, %p30
    %p32 = scmp.ne.s32.totalorder %s21, %s22
    %p33 = scmp.eq.s32.totalorder %s13, 0
    %p34 = por %p32, %p33
    %p35 = scmp.ne.s32.totalorder %s21, %s22
    %p36 = scmp.eq.s32.totalorder %s14, 1
    %p37 = por %p35, %p36
    %p39 = scmp.ne.s32.totalorder %s22, %s38
    %p40 = scmp.eq.s32.totalorder %s14, 0
    %p41 = por %p39, %p40
    %s42 = ssub.s32 %s8, %s15
    %p43 = scmp.eq.s32.totalorder %s42, 0
    %s45 = sadd.s32 %s44, 1
    %s46 = scalar_select %p43, %s44, %s45
    %p49 = pneg %p43
    %p50 = scmp.eq.s32.totalorder %s8, 1
    %p51 = por %p49, %p50
    %p52 = scmp.ne.s32.totalorder %s44, %s47
    %p53 = scmp.eq.s32.totalorder %s8, 0
    %p54 = por %p52, %p53
    %p55 = scmp.ne.s32.totalorder %s44, %s47
    %p56 = scmp.eq.s32.totalorder %s13, 1
    %p57 = por %p55, %p56
    %p58 = scmp.ne.s32.totalorder %s47, %s48
    %p59 = scmp.eq.s32.totalorder %s13, 0
    %p60 = por %p58, %p59
    %p61 = scmp.ne.s32.totalorder %s47, %s48
    %p62 = scmp.eq.s32.totalorder %s14, 1
    %p63 = por %p61, %p62
    %p65 = scmp.ne.s32.totalorder %s48, %s64
    %p66 = scmp.eq.s32.totalorder %s14, 0
    %p67 = por %p65, %p66
    %s68 = ssub.s32 %s8, %s15
    %p69 = scmp.eq.s32.totalorder %s68, 0
    %s71 = sadd.s32 %s70, 1
    %s72 = scalar_select %p69, %s70, %s71
    %p75 = pneg %p69
    %p76 = scmp.eq.s32.totalorder %s8, 1
    %p77 = por %p75, %p76
    %p78 = scmp.ne.s32.totalorder %s70, %s73
    %p79 = scmp.eq.s32.totalorder %s8, 0
    %p80 = por %p78, %p79
    %p81 = scmp.ne.s32.totalorder %s70, %s73
    %p82 = scmp.eq.s32.totalorder %s13, 1
    %p83 = por %p81, %p82
    %p84 = scmp.ne.s32.totalorder %s73, %s74
    %p85 = scmp.eq.s32.totalorder %s13, 0
    %p86 = por %p84, %p85
    %p87 = scmp.ne.s32.totalorder %s73, %s74
    %p88 = scmp.eq.s32.totalorder %s14, 1
    %p89 = por %p87, %p88
    %p91 = scmp.ne.s32.totalorder %s74, %s90
    %p92 = scmp.eq.s32.totalorder %s14, 0
    %p93 = por %p91, %p92
    %p94 = scmp.le.s32.totalorder 1, %s8
    %p95 = scmp.lt.s32.totalorder %s8, 3
    %p96 = pnand %p94, %p95
    %p97 = pneg %p96
    // Predicated region
    $region9: #{encoder_forward.135} parent=5 // pred_check
      _
    $region10: #{encoder_forward.135} parent=5 // pred_check_branch
      %99 = sbr.rel (%p96) target = $region12
    $region11: #{encoder_forward.135} parent=5 // pred_region
      %s100 = ssub.s32 %s8, 1
    $region12: #{encoder_forward.135} parent=5 // pred_fallthru
      _
    %p101 = scmp.lt.s32.totalorder %s8, 2
    // Predicated region
    $region13: #{encoder_forward.135} parent=5 // pred_check
      %p102 = pneg %p101
    $region14: #{encoder_forward.135} parent=5 // pred_check_branch
      %104 = sbr.rel (%p102) target = $region16
    $region15: #{encoder_forward.135} parent=5 // pred_region
      // Predicated region
      $region17: #{encoder_forward.135} parent=15 // pred_check
        %p105 = pneg %p28
      $region18: #{encoder_forward.135} parent=15 // pred_check_branch
        %107 = sbr.rel (%p105) target = $region20
      $region19: #{encoder_forward.135} parent=15 // pred_region
        %p108 = scmp.lt.s32.totalorder %s8, 1
        %s109 = scalar_select %p108, %s8, 1
        %s110 = smul.addr %s109, 4
        %s111 = scalar_lea.vmem %s0, %s110
      $region20: #{encoder_forward.135} parent=15 // pred_fallthru
        _
      // Predicated region
      $region21: #{encoder_forward.135} parent=15 // pred_check
        %p112 = pneg %p54
      $region22: #{encoder_forward.135} parent=15 // pred_check_branch
        %114 = sbr.rel (%p112) target = $region24
      $region23: #{encoder_forward.135} parent=15 // pred_region
        %p115 = scmp.lt.s32.totalorder %s8, 1
        %s116 = scalar_select %p115, %s8, 1
        %s117 = scalar_lea.vmem %s1, %s116
      $region24: #{encoder_forward.135} parent=15 // pred_fallthru
        _
    $region16: #{encoder_forward.135} parent=5 // pred_fallthru
      _
    %p118 = scmp.le.s32.totalorder 1, %s8
    %p119 = scmp.lt.s32.totalorder %s8, 3
    %p120 = pnand %p118, %p119
    %p121 = pneg %p120
    // Predicated region
    $region25: #{encoder_forward.135} parent=5 // pred_check
      _
    $region26: #{encoder_forward.135} parent=5 // pred_check_branch
      %123 = sbr.rel (%p120) target = $region28
    $region27: #{encoder_forward.135} parent=5 // pred_region
      %s124 = ssub.s32 %s8, 1
      %p125 = scmp.lt.s32.totalorder %s13, 1
      %s126 = scalar_select %p125, %s13, 1
      %s127 = smul.addr %s126, 4
      %s128 = scalar_lea.vmem %s0, %s127
      %p129 = pneg %p34
      %p130 = pneg %p31
      %p131 = scmp.lt.s32.totalorder %s13, 1
      %s132 = scalar_select %p131, %s13, 1
      %s133 = scalar_lea.vmem %s1, %s132
      %p134 = pneg %p60
      %p135 = pneg %p57
      %p136 = pneg %p86
      %p137 = pneg %p83
      %p138 = scmp.lt.s32.totalorder %s13, 1
      %s139 = scalar_select %p138, %s13, 1
      %s140 = smul.addr %s139, 4
      %s141 = scalar_lea.vmem %s2, %s140
      %p142 = scmp.lt.s32.totalorder %s13, 1
      %s143 = scalar_select %p142, %s13, 1
      %s144 = smul.addr %s143, 4
      %s145 = scalar_lea.vmem %s0, %s144
      %p146 = scmp.lt.s32.totalorder %s13, 1
      %s147 = scalar_select %p146, %s13, 1
      %s148 = scalar_lea.vmem %s1, %s147
      %p149 = scmp.lt.s32.totalorder %s13, 1
      %s150 = scalar_select %p149, %s13, 1
      %s151 = smul.addr %s150, 4
      %s152 = scalar_lea.vmem %s2, %s151
      %v153 = vld [vmem:[%s145] sm:$0xf]
      %v154 = vld [vmem:[%s148] sm:$0x1]
      %v155 = vxor.u32 %v154, 2147483648
      %v156 = vmul.f32 %v155, 1.442695
      %v157 = vpow.pop %v156
      %v158 = vadd.f32 %v157, 1.0
      %v159 = vrcp.pop %v158
      %v160 = vmul.f32 1.0, %v159
      %v162 = vlaneseq
      %v163 = vshrl.u32 %v162, 7
      %v164 = vsub.s32 0, %v163
      %v165 = vrot.slane %v160, %v164
      %v167 = vmul.f32 %v153, %v165
      %vm168 = vcmask 125952
      %169 = vst.msk [vmem:[%s152] sm:$0xf] %vm168, %v167
      %p170 = scmp.lt.s32.totalorder %s13, 1
      %s171 = scalar_select %p170, %s13, 1
      %s172 = smul.addr %s171, 4
      %s173 = scalar_lea.vmem %s2, %s172
      // Predicated region
      $region29: #{encoder_forward.135} parent=27 // pred_check
        %p174 = pneg %p83
      $region30: #{encoder_forward.135} parent=27 // pred_check_branch
        %176 = sbr.rel (%p174) target = $region32
      $region31: #{encoder_forward.135} parent=27 // pred_region
        _
      $region32: #{encoder_forward.135} parent=27 // pred_fallthru
        _
    $region28: #{encoder_forward.135} parent=5 // pred_fallthru
      _
    %p177 = scmp.le.s32.totalorder 2, %s8
    // Predicated region
    $region33: #{encoder_forward.135} parent=5 // pred_check
      %p178 = pneg %p177
    $region34: #{encoder_forward.135} parent=5 // pred_check_branch
      %180 = sbr.rel (%p178) target = $region36
    $region35: #{encoder_forward.135} parent=5 // pred_region
      %s181 = ssub.s32 %s8, 2
      // Predicated region
      $region37: #{encoder_forward.135} parent=35 // pred_check
        %p182 = pneg %p89
      $region38: #{encoder_forward.135} parent=35 // pred_check_branch
        %184 = sbr.rel (%p182) target = $region40
      $region39: #{encoder_forward.135} parent=35 // pred_region
        %p185 = scmp.lt.s32.totalorder %s14, 1
        %s186 = scalar_select %p185, %s14, 1
        %s187 = smul.addr %s186, 4
        %s188 = scalar_lea.vmem %s2, %s187
      $region40: #{encoder_forward.135} parent=35 // pred_fallthru
        _
    $region36: #{encoder_forward.135} parent=5 // pred_fallthru
      _
  $region6: #{encoder_forward.135} parent=0 // loop_footer
    %s12 = sadd.s32 1, %s8
  $region7: #{encoder_forward.135} parent=0 // loop_footer_branch
    %7 = sbr.rel target = $region3
  $region8: #{encoder_forward.135} parent=0 // loop_exit
    _

// kernel: encoder_forward.148
$region0: #{encoder_forward.148}
  #allocation0 [shape = 'u32[]', space=smem, size = 0x4, offset = 0x4, fixed_abs, tag = 'smem constant byte address 0x4 - core index']
  #allocation1 [shape = 'u32[144,128]{1,0:T(1,128)}', space=vmem, size = 0x12000, scoped, tag = 'internal scratch']
  %s0 = inlined_call_operand.vmem [shape: bf16[16,128], index: 0, kind: input, shape index: {}]
  %s1 = inlined_call_operand.vmem [shape: bf16[128,128], index: 1, kind: input, shape index: {}]
  %s2 = inlined_call_operand.vmem [shape: f32[1,128], index: 2, kind: input, shape index: {}]
  %s3 = inlined_call_operand.vmem [shape: f32[16,128], index: 3, kind: output, shape index: {}]
  %s4 = sld [smem:[#allocation0]]
  $region22: #{encoder_forward.148} parent=0
    _
  %s6 = ssub.s32 1, %s4
  %s7 = scalar_select 0, %s6, %s4
  // Predicated region
  $region2: #{encoder_forward.148} parent=0 // pred_check
    _
  $region3: #{encoder_forward.148} parent=0 // pred_check_branch
    %9 = sbr.rel (0) target = $region5
  $region4: #{encoder_forward.148} parent=0 // pred_region
    _
  $region5: #{encoder_forward.148} parent=0 // pred_fallthru
    _
  // Predicated region
  $region6: #{encoder_forward.148} parent=0 // pred_check
    _
  $region7: #{encoder_forward.148} parent=0 // pred_check_branch
    %11 = sbr.rel (0) target = $region9
  $region8: #{encoder_forward.148} parent=0 // pred_region
    _
  $region9: #{encoder_forward.148} parent=0 // pred_fallthru
    _
  // Predicated region
  $region10: #{encoder_forward.148} parent=0 // pred_check
    _
  $region11: #{encoder_forward.148} parent=0 // pred_check_branch
    %13 = sbr.rel (0) target = $region13
  $region12: #{encoder_forward.148} parent=0 // pred_region
    _
  $region13: #{encoder_forward.148} parent=0 // pred_fallthru
    _
  %v15 = vld [vmem:[%s0] sm:$0xf]
  %v16 = vld [vmem:[%s0 + $0x4] sm:$0xf]
  %v17 = vld [vmem:[%s1] sm:$0xf]
  %v18 = vld [vmem:[%s1 + $0x4] sm:$0xf]
  %v19 = vld [vmem:[%s1 + $0x8] sm:$0xf]
  %v20 = vld [vmem:[%s1 + $0xc] sm:$0xf]
  %v21 = vld [vmem:[%s1 + $0x10] sm:$0xf]
  %v22 = vld [vmem:[%s1 + $0x14] sm:$0xf]
  %v23 = vld [vmem:[%s1 + $0x18] sm:$0xf]
  %v24 = vld [vmem:[%s1 + $0x1c] sm:$0xf]
  %v25 = vld [vmem:[%s1 + $0x20] sm:$0xf]
  %v26 = vld [vmem:[%s1 + $0x24] sm:$0xf]
  %v27 = vld [vmem:[%s1 + $0x28] sm:$0xf]
  %v28 = vld [vmem:[%s1 + $0x2c] sm:$0xf]
  %v29 = vld [vmem:[%s1 + $0x30] sm:$0xf]
  %v30 = vld [vmem:[%s1 + $0x34] sm:$0xf]
  %v31 = vld [vmem:[%s1 + $0x38] sm:$0xf]
  %v32 = vld [vmem:[%s1 + $0x3c] sm:$0xf]
  %v33 = vld [vmem:[%s2] sm:$0x1]
  %v35 = vlaneseq
  %v36 = vshrl.u32 %v35, 7
  %v37 = vsub.s32 0, %v36
  %v38 = vrot.slane %v33, %v37
  %v42 = vunpack.c.l.b16 %v15
  %v43 = vunpack.c.l.b16 %v16
  %v44 = vpack.c.b16 %v43, %v42
  %v62 = vunpack.c.l.b16 %v17
  %v63 = vunpack.c.l.b16 %v18
  %v64 = vunpack.c.l.b16 %v19
  %v65 = vunpack.c.l.b16 %v20
  %v66 = vunpack.c.l.b16 %v21
  %v67 = vunpack.c.l.b16 %v22
  %v68 = vunpack.c.l.b16 %v23
  %v69 = vunpack.c.l.b16 %v24
  %v70 = vunpack.c.l.b16 %v25
  %v71 = vunpack.c.l.b16 %v26
  %v72 = vunpack.c.l.b16 %v27
  %v73 = vunpack.c.l.b16 %v28
  %v74 = vunpack.c.l.b16 %v29
  %v75 = vunpack.c.l.b16 %v30
  %v76 = vunpack.c.l.b16 %v31
  %v77 = vunpack.c.l.b16 %v32
  %v78 = vpack.c.b16 %v63, %v62
  %v79 = vpack.c.b16 %v65, %v64
  %v80 = vpack.c.b16 %v67, %v66
  %v81 = vpack.c.b16 %v69, %v68
  %v82 = vpack.c.b16 %v71, %v70
  %v83 = vpack.c.b16 %v73, %v72
  %v84 = vpack.c.b16 %v75, %v74
  %v85 = vpack.c.b16 %v77, %v76
  %94 = vmatprep.subr.bf16.mxu0 0
  %95 = vmatpush1.bf16.msra.mxu0 %v78
  %96 = vmatprep.subr.bf16.mxu0 0
  %97 = vmatpush1.bf16.msra.mxu0 %v79
  %98 = vmatprep.subr.bf16.mxu0 0
  %99 = vmatpush1.bf16.msra.mxu0 %v80
  %100 = vmatprep.subr.bf16.mxu0 0
  %101 = vmatpush1.bf16.msra.mxu0 %v81
  %102 = vmatprep.subr.bf16.mxu0 0
  %103 = vmatpush1.bf16.msra.mxu0 %v82
  %104 = vmatprep.subr.bf16.mxu0 0
  %105 = vmatpush1.bf16.msra.mxu0 %v83
  %106 = vmatprep.subr.bf16.mxu0 0
  %107 = vmatpush1.bf16.msra.mxu0 %v84
  %108 = vmatprep.subr.bf16.mxu0 0
  %109 = vmatpush1.bf16.msra.mxu0 %v85
  %110 = vmatprep.subr.bf16.mxu0 0
  %111 = vmatpush1.bf16.msra.mxu0 0
  %112 = vmatprep.subr.bf16.mxu0 0
  %113 = vmatpush1.bf16.msra.mxu0 0
  %114 = vmatprep.subr.bf16.mxu0 0
  %115 = vmatpush1.bf16.msra.mxu0 0
  %116 = vmatprep.subr.bf16.mxu0 0
  %117 = vmatpush1.bf16.msra.mxu0 0
  %118 = vmatprep.subr.bf16.mxu0 0
  %119 = vmatpush1.bf16.msra.mxu0 0
  %120 = vmatprep.subr.bf16.mxu0 0
  %121 = vmatpush1.bf16.msra.mxu0 0
  %122 = vmatprep.subr.bf16.mxu0 0
  %123 = vmatpush1.bf16.msra.mxu0 0
  %124 = vmatprep.subr.bf16.mxu0 0
  %125 = vmatpush1.bf16.msra.mxu0 0
  %126 = vmatprep.mubr.bf16.mxu0 0
  %127 = vmatmul.mubr.bf16.gmra.mrb[0].mxu0 %v44
  %v128 = vpop.f32.mrb[0].mxu0
  %v129 = vadd.f32 %v38, %v128
  %v130 = vpop.f32.mrb[0].mxu0
  %v131 = vpop.f32.mrb[0].mxu0
  %v132 = vadd.f32 %v38, %v131
  %v133 = vpop.f32.mrb[0].mxu0
  %134 = vdwg.mxu0
  %v135 = vmax.f32 %v129, 0.0
  %v136 = vmax.f32 %v132, 0.0
  %137 = vst [vmem:[%s3] sm:$0xff] %v135
  %138 = vst [vmem:[%s3 + $0x8] sm:$0xff] %v136
  // Predicated region
  $region14: #{encoder_forward.148} parent=0 // pred_check
    _
  $region15: #{encoder_forward.148} parent=0 // pred_check_branch
    %140 = sbr.rel (0) target = $region17
  $region16: #{encoder_forward.148} parent=0 // pred_region
    _
  $region17: #{encoder_forward.148} parent=0 // pred_fallthru
    _
  // Predicated region
  $region18: #{encoder_forward.148} parent=0 // pred_check
    _
  $region19: #{encoder_forward.148} parent=0 // pred_check_branch
    %142 = sbr.rel (0) target = $region21
  $region20: #{encoder_forward.148} parent=0 // pred_region
    _
  $region21: #{encoder_forward.148} parent=0 // pred_fallthru
    _

</llo_original>
